<compile_context>
chip_gen: v7x
topology: tpu7x:2x2x1
jax: 0.10.0
libtpu: 0.0.40
codegen_flags: <defaults>
</compile_context>

<pallas_src>
import functools
import math

import jax
import jax.numpy as jnp
from jax.experimental import pallas as pl
from jax.experimental.pallas import tpu as pltpu  # noqa: F401  (TPU backend import)

MODEL_DIM = 64
NUM_HEADS = 8
HEAD_DIM = MODEL_DIM // NUM_HEADS       # 8
NUM_NODES = NUM_HEADS                   # required by the module's own reshape logic
BATCH = 2
IN_STEPS = 4


def attention_kernel(x_ref, wqkv_t_ref, wbd_ref, bias_ref, maskh_ref, o_ref,
                     *, bt, n_nodes, n_heads, head_dim):
    """Single-invocation attention over all bt = batch*steps rows.

    x_ref      : (bt*N, D)       VMEM  bf16   flattened input
    wqkv_t_ref : (D, 3D)         VMEM  bf16   pre-transposed qkv weight
    wbd_ref    : (N*H*d, H*D)    VMEM  bf16   out_proj fused with torch's
                                              transpose(-1,-2).flatten(-2)
    bias_ref   : (1, H*D)        VMEM  f32    per-head replicated out_proj bias
    maskh_ref  : (H, D)          VMEM  f32    maskh[h, c] = (c // d == h)
    o_ref      : (bt, H*D)       VMEM  f32    lane-dense output slab
    """
    N, H, d = n_nodes, n_heads, head_dim
    D = H * d

    # --- QKV projection: one (bt*N, D) @ (D, 3D) MXU call, bf16 in / f32 acc ---
    qkv = jnp.dot(x_ref[...], wqkv_t_ref[...],
                  preferred_element_type=jnp.float32)            # (bt*N, 3D) f32

    q = qkv[:, :D].reshape(bt, N, D)                             # (bt, N, D)
    k = qkv[:, D:2 * D].reshape(bt, N, D)
    v = qkv[:, 2 * D:].reshape(bt, N, D)

    # --- block-diagonal-per-head K and V: row r = h*N + m only holds head h's
    #     columns [h*d, (h+1)*d), so one matmul covers all heads at once --------
    maskh = maskh_ref[...]                                       # (H, D) f32
    kbd = (k[:, None, :, :] * maskh[None, :, None, :]).reshape(bt, H * N, D)
    vbd = (v[:, None, :, :] * maskh[None, :, None, :]).reshape(bt, H * N, D)

    # --- all-head scores: (bt, N, D) x (bt, H*N, D) -> (bt, N, H*N) ------------
    scale = 1.0 / math.sqrt(d)
    s = jax.lax.dot_general(q, kbd, (((2,), (2,)), ((0,), (0,))),
                            preferred_element_type=jnp.float32) * scale

    # --- softmax per (bt, query node, head) over the N key nodes (f32) ---------
    s4 = s.reshape(bt, N, H, N)
    s4 = s4 - jnp.max(s4, axis=-1, keepdims=True)
    p4 = jnp.exp(s4)
    p4 = p4 * pl.reciprocal(jnp.sum(p4, axis=-1, keepdims=True), approx=True)
    p = p4.reshape(bt, N, H * N)

    # --- all-head P @ V: (bt, N, H*N) x (bt, H*N, D) -> (bt, N, D) -------------
    # o[bt, n, h*d + e] = attention output for head h, node n, channel e.
    o = jax.lax.dot_general(p, vbd, (((2,), (1,)), ((0,), (0,))),
                            preferred_element_type=jnp.float32)

    # --- out_proj fused with torch's transpose(-1,-2).flatten(-2) --------------
    # The host-built wbd block matrix absorbs the (h, e, n) -> (h, o) gather, so
    # the kernel just flattens o in its natural (n, h, e) order and does one
    # lane-dense (bt, 512) @ (512, 512) matmul; the store is a full (bt, 512) slab.
    merged = o.reshape(bt, N * D).astype(wbd_ref.dtype)          # (bt, N*H*d) bf16
    out = jnp.dot(merged, wbd_ref[...],
                  preferred_element_type=jnp.float32) + bias_ref[...]
    o_ref[...] = out.astype(o_ref.dtype)


def attention_layer(x, wqkv, wout, bout):
    """x: (B, T, N, D); wqkv: (3D, D); wout: (D, D); bout: (D,). Returns (B, T, H, D)."""
    B, T, N, D = x.shape
    H = NUM_HEADS
    d = D // H
    assert D == MODEL_DIM and N == NUM_NODES and N * d == D
    BT = B * T

    # Flatten + cast matmul operands host-side (free in XLA, halves weight DMA).
    xf = x.reshape(BT * N, D).astype(jnp.bfloat16)               # (BT*N, D)
    wqkv_t = wqkv.T.astype(jnp.bfloat16)                         # (D, 3D)

    # Fold out_proj + torch's transpose(-1,-2).flatten(-2) into one block matrix:
    #   wbd[n*D + h*d + e, h*D + o] = wout[o, e*N + n]
    a = wout.reshape(D, d, N).transpose(1, 2, 0)                 # a[e, n, o] = wout[o, e*N + n]
    eye_h = jnp.eye(H, dtype=wout.dtype)
    wbd = jnp.einsum('eno,gh->ngeho', a, eye_h).reshape(N * H * d, H * D)
    wbd = wbd.astype(jnp.bfloat16)                               # (512, 512)
    bias_flat = jnp.tile(bout, H).reshape(1, H * D).astype(jnp.float32)

    # Per-head column mask used in-kernel to build block-diagonal K / V.
    col_head = jnp.arange(D, dtype=jnp.int32) // d
    head_ids = jnp.arange(H, dtype=jnp.int32)
    maskh = (col_head[None, :] == head_ids[:, None]).astype(jnp.float32)   # (H, D)

    kernel = functools.partial(attention_kernel, bt=BT, n_nodes=N,
                               n_heads=H, head_dim=d)

    out = pl.pallas_call(
        kernel,
        out_shape=jax.ShapeDtypeStruct((BT, H * D), jnp.float32),
        grid=(1,),
        in_specs=[
            pl.BlockSpec((BT * N, D), lambda i: (0, 0)),
            pl.BlockSpec((D, 3 * D), lambda i: (0, 0)),
            pl.BlockSpec((N * H * d, H * D), lambda i: (0, 0)),
            pl.BlockSpec((1, H * D), lambda i: (0, 0)),
            pl.BlockSpec((H, D), lambda i: (0, 0)),
        ],
        out_specs=pl.BlockSpec((BT, H * D), lambda i: (0, 0)),
    )(xf, wqkv_t, wbd, bias_flat, maskh)

    return out.reshape(B, T, H, D)


def reference(x, wqkv, wout, bout):
    """Pure-JAX mirror of the PyTorch fast=False forward, for correctness check."""
    B, T, N, D = x.shape
    H, d = NUM_HEADS, HEAD_DIM
    qkv = jnp.einsum('btnd,ed->btne', x, wqkv)           # Linear, no bias
    q, k, v = jnp.split(qkv, 3, axis=-1)

    def to_heads(a):  # torch.stack(torch.split(a, d, -1), dim=2) -> (B, T, H, N, d)
        return jnp.stack(jnp.split(a, H, axis=-1), axis=2)

    qs, ks, vs = to_heads(q), to_heads(k), to_heads(v)
    s = jnp.einsum('bthnd,bthmd->bthnm', qs, ks) / math.sqrt(d)
    p = jax.nn.softmax(s, axis=-1)
    o = jnp.einsum('bthnm,bthmd->bthnd', p, vs)          # (B, T, H, N, d)
    o = jnp.swapaxes(o, -1, -2).reshape(B, T, H, d * N)  # transpose(-1,-2).flatten(-2)
    return o @ wout.T + bout


if __name__ == "__main__":
    key = jax.random.PRNGKey(0)
    kx, k1, k2, k3 = jax.random.split(key, 4)

    D = MODEL_DIM
    bound = 1.0 / math.sqrt(D)
    x = jax.random.normal(kx, (BATCH, IN_STEPS, NUM_NODES, D), dtype=jnp.float32)
    wqkv = jax.random.uniform(k1, (3 * D, D), jnp.float32, -bound, bound)   # qkv.weight
    wout = jax.random.uniform(k2, (D, D), jnp.float32, -bound, bound)       # out_proj.weight
    bout = jax.random.uniform(k3, (D,), jnp.float32, -bound, bound)         # out_proj.bias

    out = jax.jit(attention_layer)(x, wqkv, wout, bout)
    out = jax.block_until_ready(out)

    ref = reference(x, wqkv, wout, bout)
    assert out.shape == ref.shape == (BATCH, IN_STEPS, NUM_HEADS, D)
    # bf16 operands on the projection matmuls (f32 accumulation) plus the EUP
    # approximate softmax reciprocal give ~1e-3 absolute error vs the f32
    # reference; 1e-2 tolerance is still ~30x below the O(0.3) output scale, so
    # any head/node layout or permutation bug is still caught.
    assert jnp.allclose(out, ref, rtol=1e-2, atol=1e-2), "mismatch vs reference"

    print("KERNEL_OK")
</pallas_src>

<mosaic_0001>
module attributes {stable_mosaic.version = 11 : i64} {
  func.func @attention_kernel(%arg0: i32, %arg1: memref<64x64xbf16, #tpu.memory_space<vmem>>, %arg2: memref<64x192xbf16, #tpu.memory_space<vmem>>, %arg3: memref<512x512xbf16, #tpu.memory_space<vmem>>, %arg4: memref<1x512xf32, #tpu.memory_space<vmem>>, %arg5: memref<8x64xf32, #tpu.memory_space<vmem>>, %arg6: memref<8x512xf32, #tpu.memory_space<vmem>>) attributes {dimension_semantics = [#tpu.dimension_semantics<arbitrary>], iteration_bounds = array<i64: 1>, scalar_prefetch = 0 : i64, scratch_operands = 0 : i64, tpu.core_type = #tpu.core_type<tc>, window_params = [{pipeline_mode = #tpu.pipeline_mode<synchronous>, transform_indices = @transform_0, window_bounds = array<i64: 64, 64>}, {pipeline_mode = #tpu.pipeline_mode<synchronous>, transform_indices = @transform_1, window_bounds = array<i64: 64, 192>}, {pipeline_mode = #tpu.pipeline_mode<synchronous>, transform_indices = @transform_2, window_bounds = array<i64: 512, 512>}, {pipeline_mode = #tpu.pipeline_mode<synchronous>, transform_indices = @transform_3, window_bounds = array<i64: 1, 512>}, {pipeline_mode = #tpu.pipeline_mode<synchronous>, transform_indices = @transform_4, window_bounds = array<i64: 8, 64>}, {pipeline_mode = #tpu.pipeline_mode<synchronous>, transform_indices = @transform_5, window_bounds = array<i64: 8, 512>}]} {
    %c0 = arith.constant 0 : index
    %c0_0 = arith.constant 0 : index
    %0 = vector.load %arg1[%c0, %c0_0] : memref<64x64xbf16, #tpu.memory_space<vmem>>, vector<64x64xbf16>
    %c0_1 = arith.constant 0 : index
    %c0_2 = arith.constant 0 : index
    %1 = vector.load %arg2[%c0_1, %c0_2] : memref<64x192xbf16, #tpu.memory_space<vmem>>, vector<64x192xbf16>
    %cst = arith.constant dense<0.000000e+00> : vector<64x192xf32>
    %2 = tpu.matmul %0, %1, %cst {dimension_numbers = #tpu.dot_dimension_numbers<[1], [0], [0], [1], [0, 0, 1, 1], [], []>} : vector<64x64xbf16>, vector<64x192xbf16>, vector<64x192xf32> -> vector<64x192xf32>
    %3 = vector.extract_strided_slice %2 {offsets = [0, 0], sizes = [64, 64], strides = [1, 1]} : vector<64x192xf32> to vector<64x64xf32>
    %4 = vector.shape_cast %3 : vector<64x64xf32> to vector<8x8x64xf32>
    %5 = vector.extract_strided_slice %2 {offsets = [0, 64], sizes = [64, 64], strides = [1, 1]} : vector<64x192xf32> to vector<64x64xf32>
    %6 = vector.shape_cast %5 : vector<64x64xf32> to vector<8x8x64xf32>
    %7 = vector.extract_strided_slice %2 {offsets = [0, 128], sizes = [64, 64], strides = [1, 1]} : vector<64x192xf32> to vector<64x64xf32>
    %8 = vector.shape_cast %7 : vector<64x64xf32> to vector<8x8x64xf32>
    %c0_3 = arith.constant 0 : index
    %c0_4 = arith.constant 0 : index
    %9 = vector.load %arg5[%c0_3, %c0_4] : memref<8x64xf32, #tpu.memory_space<vmem>>, vector<8x64xf32>
    %10 = vector.shape_cast %6 : vector<8x8x64xf32> to vector<8x1x8x64xf32>
    %11 = vector.shape_cast %9 : vector<8x64xf32> to vector<1x8x1x64xf32>
    %12 = vector.broadcast %10 : vector<8x1x8x64xf32> to vector<8x8x8x64xf32>
    %13 = vector.broadcast %11 : vector<1x8x1x64xf32> to vector<8x8x8x64xf32>
    %14 = arith.mulf %12, %13 : vector<8x8x8x64xf32>
    %15 = vector.shape_cast %14 : vector<8x8x8x64xf32> to vector<8x64x64xf32>
    %16 = vector.shape_cast %8 : vector<8x8x64xf32> to vector<8x1x8x64xf32>
    %17 = vector.shape_cast %9 : vector<8x64xf32> to vector<1x8x1x64xf32>
    %18 = vector.broadcast %16 : vector<8x1x8x64xf32> to vector<8x8x8x64xf32>
    %19 = vector.broadcast %17 : vector<1x8x1x64xf32> to vector<8x8x8x64xf32>
    %20 = arith.mulf %18, %19 : vector<8x8x8x64xf32>
    %21 = vector.shape_cast %20 : vector<8x8x8x64xf32> to vector<8x64x64xf32>
    %cst_5 = arith.constant dense<0.000000e+00> : vector<8x8x64xf32>
    %22 = tpu.matmul %4, %15, %cst_5 {dimension_numbers = #tpu.dot_dimension_numbers<[2], [2], [1], [1], [0, 0, 0, 1, 1, 1], [0], [0]>} : vector<8x8x64xf32>, vector<8x64x64xf32>, vector<8x8x64xf32> -> vector<8x8x64xf32>
    %cst_6 = arith.constant 0.353553385 : f32
    %23 = vector.broadcast %cst_6 : f32 to vector<8x8x64xf32>
    %24 = arith.mulf %22, %23 : vector<8x8x64xf32>
    %25 = vector.shape_cast %24 : vector<8x8x64xf32> to vector<8x8x8x8xf32>
    %cst_7 = arith.constant dense<0xFF800000> : vector<8x8x8xf32>
    %26 = vector.multi_reduction <maximumf>, %25, %cst_7 [3] : vector<8x8x8x8xf32> to vector<8x8x8xf32>
    %27 = vector.shape_cast %26 : vector<8x8x8xf32> to vector<8x8x8x1xf32>
    %28 = vector.broadcast %27 : vector<8x8x8x1xf32> to vector<8x8x8x8xf32>
    %29 = arith.subf %25, %28 : vector<8x8x8x8xf32>
    %30 = math.exp %29 : vector<8x8x8x8xf32>
    %cst_8 = arith.constant dense<0.000000e+00> : vector<8x8x8xf32>
    %31 = vector.multi_reduction <add>, %30, %cst_8 [3] : vector<8x8x8x8xf32> to vector<8x8x8xf32>
    %32 = vector.shape_cast %31 : vector<8x8x8xf32> to vector<8x8x8x1xf32>
    %33 = tpu.reciprocal %32 {approx = true} : vector<8x8x8x1xf32> -> vector<8x8x8x1xf32>
    %34 = vector.broadcast %33 : vector<8x8x8x1xf32> to vector<8x8x8x8xf32>
    %35 = arith.mulf %30, %34 : vector<8x8x8x8xf32>
    %36 = vector.shape_cast %35 : vector<8x8x8x8xf32> to vector<8x8x64xf32>
    %cst_9 = arith.constant dense<0.000000e+00> : vector<8x8x64xf32>
    %37 = tpu.matmul %36, %21, %cst_9 {dimension_numbers = #tpu.dot_dimension_numbers<[2], [1], [1], [2], [0, 0, 0, 1, 1, 2], [0], [0]>} : vector<8x8x64xf32>, vector<8x64x64xf32>, vector<8x8x64xf32> -> vector<8x8x64xf32>
    %38 = vector.shape_cast %37 : vector<8x8x64xf32> to vector<8x512xf32>
    %39 = arith.truncf %38 : vector<8x512xf32> to vector<8x512xbf16>
    %c0_10 = arith.constant 0 : index
    %c0_11 = arith.constant 0 : index
    %40 = vector.load %arg3[%c0_10, %c0_11] : memref<512x512xbf16, #tpu.memory_space<vmem>>, vector<512x512xbf16>
    %cst_12 = arith.constant dense<0.000000e+00> : vector<8x512xf32>
    %41 = tpu.matmul %39, %40, %cst_12 {dimension_numbers = #tpu.dot_dimension_numbers<[1], [0], [0], [1], [0, 0, 1, 1], [], []>} : vector<8x512xbf16>, vector<512x512xbf16>, vector<8x512xf32> -> vector<8x512xf32>
    %c0_13 = arith.constant 0 : index
    %c0_14 = arith.constant 0 : index
    %42 = vector.load %arg4[%c0_13, %c0_14] : memref<1x512xf32, #tpu.memory_space<vmem>>, vector<1x512xf32>
    %43 = vector.broadcast %42 : vector<1x512xf32> to vector<8x512xf32>
    %44 = arith.addf %41, %43 : vector<8x512xf32>
    %c0_15 = arith.constant 0 : index
    %c0_16 = arith.constant 0 : index
    %45 = vector.load %arg6[%c0_15, %c0_16] : memref<8x512xf32, #tpu.memory_space<vmem>>, vector<8x512xf32>
    tpu.vector_store %arg6[%c0_15, %c0_16], %44 {strides = array<i32>} : memref<8x512xf32, #tpu.memory_space<vmem>>, vector<8x512xf32>,
    return
  }
  func.func @transform_0(%arg0: i32) -> (i32, i32) {
    %c0_i32 = arith.constant 0 : i32
    %c0_i32_0 = arith.constant 0 : i32
    %c0_i32_1 = arith.constant 0 : i32
    return %c0_i32, %c0_i32_0 : i32, i32
  }
  func.func @transform_1(%arg0: i32) -> (i32, i32) {
    %c0_i32 = arith.constant 0 : i32
    %c0_i32_0 = arith.constant 0 : i32
    %c0_i32_1 = arith.constant 0 : i32
    return %c0_i32, %c0_i32_0 : i32, i32
  }
  func.func @transform_2(%arg0: i32) -> (i32, i32) {
    %c0_i32 = arith.constant 0 : i32
    %c0_i32_0 = arith.constant 0 : i32
    %c0_i32_1 = arith.constant 0 : i32
    return %c0_i32, %c0_i32_0 : i32, i32
  }
  func.func @transform_3(%arg0: i32) -> (i32, i32) {
    %c0_i32 = arith.constant 0 : i32
    %c0_i32_0 = arith.constant 0 : i32
    %c0_i32_1 = arith.constant 0 : i32
    return %c0_i32, %c0_i32_0 : i32, i32
  }
  func.func @transform_4(%arg0: i32) -> (i32, i32) {
    %c0_i32 = arith.constant 0 : i32
    %c0_i32_0 = arith.constant 0 : i32
    %c0_i32_1 = arith.constant 0 : i32
    return %c0_i32, %c0_i32_0 : i32, i32
  }
  func.func @transform_5(%arg0: i32) -> (i32, i32) {
    %c0_i32 = arith.constant 0 : i32
    %c0_i32_0 = arith.constant 0 : i32
    %c0_i32_1 = arith.constant 0 : i32
    return %c0_i32, %c0_i32_0 : i32, i32
  }
}

</mosaic_0001>

<llo_original>
// kernel: tile.8
$region0: #{tile.8}
  #allocation0 [shape = 's32[1]{0}', space=sflag, size = 0x4, scoped, tag = 'scoped memory for tile.8']
  %s0 = inlined_call_operand.vmem [shape: f32[64], index: 0, kind: input, shape index: {}]
  %s1 = inlined_call_operand.vmem [shape: f32[8,64], index: 1, kind: output, shape index: {}]
  // Predicated region
  $region2: #{tile.8} parent=0 // pred_check
    _
  $region3: #{tile.8} parent=0 // pred_check_branch
    %3 = sbr.rel (0) target = $region5
  $region4: #{tile.8} parent=0 // pred_region
    _
  $region5: #{tile.8} parent=0 // pred_fallthru
    _
  %v4 = vld [vmem:[%s0] ss:$0 sm:$0xff]
  %5 = vst [vmem:[%s1] sm:$0xff] %v4

// kernel: tile.9
$region0: #{tile.9}
  %s0 = inlined_call_operand.vmem [shape: f32[8,64], index: 0, kind: input, shape index: {}]
  %s1 = inlined_call_operand.vmem [shape: f32[1,512], index: 1, kind: output, shape index: {}]
  $region1: #{tile.9} parent=0
    #allocation0 [shape = 'u8[16384]{0}', space=vmem, size = 0x4000, scoped, tag = 'scoped mem for output reshape']
    %v2 = vld [vmem:[%s0] ss:$2 sm:$0xf]
    %vm3 = vcmask 523264
    %4 = vst.msk [vmem:[#allocation0] ss:$8 sm:$0xf] %vm3, %v2
    %s5 = scalar_lea.vmem %s0, 1
    %v6 = vld [vmem:[%s5] ss:$2 sm:$0xf]
    %7 = vrot.lane.b32.xlu0 %v6, 64
    %v8 = vpop.permute.xlu0 %7
    %vm9 = vcmask 1048064
    %10 = vst.msk [vmem:[#allocation0] ss:$8 sm:$0xf] %vm9, %v8
    %s12 = sshllo.u32 0, 1
    %v14 = vld [vmem:[#allocation0] sm:%s12]
    %s15 = sshllo.u32 0, 1
    %16 = vst [vmem:[%s1] sm:%s15] %v14
    %s17 = scalar_lea.vmem [#allocation0], 8
    %v18 = vld [vmem:[%s17] sm:%s12]
    %s19 = sshllo.u32 0, 1
    %s20 = scalar_lea.vmem %s1, 1
    %21 = vst [vmem:[%s20] sm:%s19] %v18
    %s22 = scalar_lea.vmem [#allocation0], 16
    %v23 = vld [vmem:[%s22] sm:%s12]
    %s24 = sshllo.u32 0, 1
    %s25 = smul.addr 1, 2
    %s26 = scalar_lea.vmem %s1, %s25
    %27 = vst [vmem:[%s26] sm:%s24] %v23
    %s28 = scalar_lea.vmem [#allocation0], 24
    %v29 = vld [vmem:[%s28] sm:%s12]
    %s30 = sshllo.u32 0, 1
    %s31 = smul.addr 1, 3
    %s32 = scalar_lea.vmem %s1, %s31
    %33 = vst [vmem:[%s32] sm:%s30] %v29

// kernel: attention_layer.1
$region0: #{attention_layer.1}
  #allocation0 [shape = 'u32[]', space=smem, size = 0x4, offset = 0x4, fixed_abs, tag = 'smem constant byte address 0x4 - core index']
  #allocation1 [shape = 'u32[144,128]{1,0:T(1,128)}', space=vmem, size = 0x12000, scoped, tag = 'internal scratch']
  %s0 = inlined_call_operand.vmem [shape: bf16[64,64], index: 0, kind: input, shape index: {}]
  %s1 = inlined_call_operand.vmem [shape: bf16[64,192], index: 1, kind: input, shape index: {}]
  %s2 = inlined_call_operand.vmem [shape: bf16[512,512], index: 2, kind: input, shape index: {}]
  %s3 = inlined_call_operand.vmem [shape: f32[1,512], index: 3, kind: input, shape index: {}]
  %s4 = inlined_call_operand.vmem [shape: f32[8,64], index: 4, kind: input, shape index: {}]
  %s5 = inlined_call_operand.vmem [shape: f32[8,512], index: 5, kind: output, shape index: {}]
  %s6 = sld [smem:[#allocation0]]
  $region30: #{attention_layer.1} parent=0
    _
  %s8 = ssub.s32 1, %s6
  %s9 = scalar_select 0, %s8, %s6
  // Predicated region
  $region2: #{attention_layer.1} parent=0 // pred_check
    _
  $region3: #{attention_layer.1} parent=0 // pred_check_branch
    %11 = sbr.rel (0) target = $region5
  $region4: #{attention_layer.1} parent=0 // pred_region
    _
  $region5: #{attention_layer.1} parent=0 // pred_fallthru
    _
  // Predicated region
  $region6: #{attention_layer.1} parent=0 // pred_check
    _
  $region7: #{attention_layer.1} parent=0 // pred_check_branch
    %13 = sbr.rel (0) target = $region9
  $region8: #{attention_layer.1} parent=0 // pred_region
    _
  $region9: #{attention_layer.1} parent=0 // pred_fallthru
    _
  // Predicated region
  $region10: #{attention_layer.1} parent=0 // pred_check
    _
  $region11: #{attention_layer.1} parent=0 // pred_check_branch
    %15 = sbr.rel (0) target = $region13
  $region12: #{attention_layer.1} parent=0 // pred_region
    _
  $region13: #{attention_layer.1} parent=0 // pred_fallthru
    _
  // Predicated region
  $region14: #{attention_layer.1} parent=0 // pred_check
    _
  $region15: #{attention_layer.1} parent=0 // pred_check_branch
    %17 = sbr.rel (0) target = $region17
  $region16: #{attention_layer.1} parent=0 // pred_region
    _
  $region17: #{attention_layer.1} parent=0 // pred_fallthru
    _
  // Predicated region
  $region18: #{attention_layer.1} parent=0 // pred_check
    _
  $region19: #{attention_layer.1} parent=0 // pred_check_branch
    %19 = sbr.rel (0) target = $region21
  $region20: #{attention_layer.1} parent=0 // pred_region
    _
  $region21: #{attention_layer.1} parent=0 // pred_fallthru
    _
  %v21 = vld [vmem:[%s0] sm:$0xf]
  %v22 = vld [vmem:[%s0 + $0x4] sm:$0xf]
  %v23 = vld [vmem:[%s0 + $0x8] sm:$0xf]
  %v24 = vld [vmem:[%s0 + $0xc] sm:$0xf]
  %v25 = vld [vmem:[%s0 + $0x10] sm:$0xf]
  %v26 = vld [vmem:[%s0 + $0x14] sm:$0xf]
  %v27 = vld [vmem:[%s0 + $0x18] sm:$0xf]
  %v28 = vld [vmem:[%s0 + $0x1c] sm:$0xf]
  %v29 = vld [vmem:[%s1] sm:$0xff]
  %v30 = vld [vmem:[%s1 + $0x8] sm:$0xff]
  %v31 = vld [vmem:[%s1 + $0x10] sm:$0xff]
  %v32 = vld [vmem:[%s1 + $0x18] sm:$0xff]
  %v33 = vld [vmem:[%s1 + $0x20] sm:$0xff]
  %v34 = vld [vmem:[%s1 + $0x28] sm:$0xff]
  %v35 = vld [vmem:[%s1 + $0x30] sm:$0xff]
  %v36 = vld [vmem:[%s1 + $0x38] sm:$0xff]
  %v45 = vunpack.c.l.b16 %v21
  %v46 = vunpack.c.l.b16 %v22
  %v47 = vunpack.c.l.b16 %v23
  %v48 = vunpack.c.l.b16 %v24
  %v49 = vunpack.c.l.b16 %v25
  %v50 = vunpack.c.l.b16 %v26
  %v51 = vunpack.c.l.b16 %v27
  %v52 = vunpack.c.l.b16 %v28
  %v53 = vpack.c.b16 %v46, %v45
  %v54 = vpack.c.b16 %v48, %v47
  %v55 = vpack.c.b16 %v50, %v49
  %v56 = vpack.c.b16 %v52, %v51
  %v65 = vunpack.c.l.b16 %v29
  %v66 = vunpack.c.h.b16 %v29
  %v67 = vunpack.c.l.b16 %v30
  %v68 = vunpack.c.h.b16 %v30
  %v69 = vunpack.c.l.b16 %v31
  %v70 = vunpack.c.h.b16 %v31
  %v71 = vunpack.c.l.b16 %v32
  %v72 = vunpack.c.h.b16 %v32
  %v73 = vunpack.c.l.b16 %v33
  %v74 = vunpack.c.h.b16 %v33
  %v75 = vunpack.c.l.b16 %v34
  %v76 = vunpack.c.h.b16 %v34
  %v77 = vunpack.c.l.b16 %v35
  %v78 = vunpack.c.h.b16 %v35
  %v79 = vunpack.c.l.b16 %v36
  %v80 = vunpack.c.h.b16 %v36
  %v81 = vpack.c.b16 %v67, %v65
  %v82 = vpack.c.b16 %v68, %v66
  %v83 = vpack.c.b16 %v71, %v69
  %v84 = vpack.c.b16 %v72, %v70
  %v85 = vpack.c.b16 %v75, %v73
  %v86 = vpack.c.b16 %v76, %v74
  %v87 = vpack.c.b16 %v79, %v77
  %v88 = vpack.c.b16 %v80, %v78
  %vm97 = vcmask 523264
  %v99 = vsel %vm97, %v53, 0
  %v102 = vsel %vm97, %v54, 0
  %v105 = vsel %vm97, %v55, 0
  %v108 = vsel %vm97, %v56, 0
  %110 = vmatprep.subr.bf16.mxu0 %v82
  %111 = vmatpush1.bf16.msra.mxu0 %v81
  %112 = vmatprep.subr.bf16.mxu0 %v84
  %113 = vmatpush1.bf16.msra.mxu0 %v83
  %114 = vmatprep.subr.bf16.mxu0 %v86
  %115 = vmatpush1.bf16.msra.mxu0 %v85
  %116 = vmatprep.subr.bf16.mxu0 %v88
  %117 = vmatpush1.bf16.msra.mxu0 %v87
  %118 = vmatprep.subr.bf16.mxu0 0
  %119 = vmatpush1.bf16.msra.mxu0 0
  %120 = vmatprep.subr.bf16.mxu0 0
  %121 = vmatpush1.bf16.msra.mxu0 0
  %122 = vmatprep.subr.bf16.mxu0 0
  %123 = vmatpush1.bf16.msra.mxu0 0
  %124 = vmatprep.subr.bf16.mxu0 0
  %125 = vmatpush1.bf16.msra.mxu0 0
  %126 = vmatprep.subr.bf16.mxu0 0
  %127 = vmatpush1.bf16.msra.mxu0 0
  %128 = vmatprep.subr.bf16.mxu0 0
  %129 = vmatpush1.bf16.msra.mxu0 0
  %130 = vmatprep.subr.bf16.mxu0 0
  %131 = vmatpush1.bf16.msra.mxu0 0
  %132 = vmatprep.subr.bf16.mxu0 0
  %133 = vmatpush1.bf16.msra.mxu0 0
  %134 = vmatprep.subr.bf16.mxu0 0
  %135 = vmatpush1.bf16.msra.mxu0 0
  %136 = vmatprep.subr.bf16.mxu0 0
  %137 = vmatpush1.bf16.msra.mxu0 0
  %138 = vmatprep.subr.bf16.mxu0 0
  %139 = vmatpush1.bf16.msra.mxu0 0
  %140 = vmatprep.subr.bf16.mxu0 0
  %141 = vmatpush1.bf16.msra.mxu0 0
  %142 = vmatprep.mubr.bf16.mxu0 0
  %143 = vmatmul.mubr.bf16.gmra.mrb[0].mxu0 %v99
  %v144 = vpop.f32.mrb[0].mxu0
  %v145 = vadd.f32 0.0, %v144
  %v146 = vpop.f32.mrb[0].mxu0
  %v147 = vadd.f32 0.0, %v146
  %v148 = vpop.f32.mrb[0].mxu0
  %v149 = vadd.f32 0.0, %v148
  %v150 = vpop.f32.mrb[0].mxu0
  %v151 = vadd.f32 0.0, %v150
  %152 = vmatprep.mubr.bf16.mxu0 0
  %153 = vmatmul.mubr.bf16.gmra.mrb[0].mxu0 %v102
  %v154 = vpop.f32.mrb[0].mxu0
  %v155 = vadd.f32 0.0, %v154
  %v156 = vpop.f32.mrb[0].mxu0
  %v157 = vadd.f32 0.0, %v156
  %v158 = vpop.f32.mrb[0].mxu0
  %v159 = vadd.f32 0.0, %v158
  %v160 = vpop.f32.mrb[0].mxu0
  %v161 = vadd.f32 0.0, %v160
  %162 = vmatprep.mubr.bf16.mxu0 0
  %163 = vmatmul.mubr.bf16.gmra.mrb[0].mxu0 %v105
  %v164 = vpop.f32.mrb[0].mxu0
  %v165 = vadd.f32 0.0, %v164
  %v166 = vpop.f32.mrb[0].mxu0
  %v167 = vadd.f32 0.0, %v166
  %v168 = vpop.f32.mrb[0].mxu0
  %v169 = vadd.f32 0.0, %v168
  %v170 = vpop.f32.mrb[0].mxu0
  %v171 = vadd.f32 0.0, %v170
  %172 = vmatprep.mubr.bf16.mxu0 0
  %173 = vmatmul.mubr.bf16.gmra.mrb[0].mxu0 %v108
  %v174 = vpop.f32.mrb[0].mxu0
  %v175 = vadd.f32 0.0, %v174
  %v176 = vpop.f32.mrb[0].mxu0
  %v177 = vadd.f32 0.0, %v176
  %v178 = vpop.f32.mrb[0].mxu0
  %v179 = vadd.f32 0.0, %v178
  %v180 = vpop.f32.mrb[0].mxu0
  %v181 = vadd.f32 0.0, %v180
  %182 = vdwg.mxu0
  %v183 = vld [vmem:[%s4] sm:$0xff]
  %v185 = vcombine.high %v183, %v183
  %v187 = vunpack.c.l.s4 1966171168
  %v188 = vunpack.c.0.s8 %v187
  %v189 = vlaneseq
  %v190 = vshrl.u32 %v189, 7
  %v191 = vsub.s32 %v188, %v190
  %v192 = vrot.slane %v183, %v191
  %v194 = vunpack.c.l.s4 1966171168
  %v195 = vunpack.c.0.s8 %v194
  %v196 = vlaneseq
  %v197 = vshrl.u32 %v196, 7
  %v198 = vsub.s32 %v195, %v197
  %v199 = vrot.slane %v185, %v198
  %v200 = vcombine.high %v192, %v192
  %v201 = vcombine.high %v199, %v199
  %v203 = vunpack.c.l.s4 1966171168
  %v204 = vunpack.c.0.s8 %v203
  %v205 = vlaneseq
  %v206 = vshrl.u32 %v205, 7
  %v207 = vsub.s32 %v204, %v206
  %v208 = vrot.slane %v192, %v207
  %v210 = vunpack.c.l.s4 1966171168
  %v211 = vunpack.c.0.s8 %v210
  %v212 = vlaneseq
  %v213 = vshrl.u32 %v212, 7
  %v214 = vsub.s32 %v211, %v213
  %v215 = vrot.slane %v199, %v214
  %v217 = vunpack.c.l.s4 1966171168
  %v218 = vunpack.c.0.s8 %v217
  %v219 = vlaneseq
  %v220 = vshrl.u32 %v219, 7
  %v221 = vsub.s32 %v218, %v220
  %v222 = vrot.slane %v200, %v221
  %v224 = vunpack.c.l.s4 1966171168
  %v225 = vunpack.c.0.s8 %v224
  %v226 = vlaneseq
  %v227 = vshrl.u32 %v226, 7
  %v228 = vsub.s32 %v225, %v227
  %v229 = vrot.slane %v201, %v228
  %v230 = vcombine.high %v208, %v208
  %v231 = vcombine.high %v215, %v215
  %v232 = vcombine.high %v222, %v222
  %v233 = vcombine.high %v229, %v229
  %v234 = vlaneseq
  %v235 = vshrl.u32 %v234, 7
  %v236 = vsub.s32 0, %v235
  %v237 = vrot.slane %v208, %v236
  %v238 = vlaneseq
  %v239 = vshrl.u32 %v238, 7
  %v240 = vsub.s32 0, %v239
  %v241 = vrot.slane %v222, %v240
  %v242 = vlaneseq
  %v243 = vshrl.u32 %v242, 7
  %v244 = vsub.s32 0, %v243
  %v245 = vrot.slane %v230, %v244
  %v246 = vlaneseq
  %v247 = vshrl.u32 %v246, 7
  %v248 = vsub.s32 0, %v247
  %v249 = vrot.slane %v232, %v248
  %v250 = vlaneseq
  %v251 = vshrl.u32 %v250, 7
  %v252 = vsub.s32 0, %v251
  %v253 = vrot.slane %v215, %v252
  %v254 = vlaneseq
  %v255 = vshrl.u32 %v254, 7
  %v256 = vsub.s32 0, %v255
  %v257 = vrot.slane %v229, %v256
  %v258 = vlaneseq
  %v259 = vshrl.u32 %v258, 7
  %v260 = vsub.s32 0, %v259
  %v261 = vrot.slane %v231, %v260
  %v262 = vlaneseq
  %v263 = vshrl.u32 %v262, 7
  %v264 = vsub.s32 0, %v263
  %v265 = vrot.slane %v233, %v264
  %274 = vrot.lane.b32.xlu0 %v237, 64
  %v275 = vpop.permute.xlu0 %274
  %276 = vrot.lane.b32.xlu0 %v241, 64
  %v277 = vpop.permute.xlu0 %276
  %278 = vrot.lane.b32.xlu0 %v245, 64
  %v279 = vpop.permute.xlu0 %278
  %280 = vrot.lane.b32.xlu0 %v249, 64
  %v281 = vpop.permute.xlu0 %280
  %282 = vrot.lane.b32.xlu0 %v253, 64
  %v283 = vpop.permute.xlu0 %282
  %284 = vrot.lane.b32.xlu0 %v257, 64
  %v285 = vpop.permute.xlu0 %284
  %286 = vrot.lane.b32.xlu0 %v261, 64
  %v287 = vpop.permute.xlu0 %286
  %288 = vrot.lane.b32.xlu0 %v265, 64
  %v289 = vpop.permute.xlu0 %288
  %v298 = vmul.f32 %v145, %v275
  %v299 = vmul.f32 %v145, %v277
  %v300 = vmul.f32 %v145, %v279
  %v301 = vmul.f32 %v145, %v281
  %v302 = vmul.f32 %v145, %v283
  %v303 = vmul.f32 %v145, %v285
  %v304 = vmul.f32 %v145, %v287
  %v305 = vmul.f32 %v145, %v289
  %v306 = vmul.f32 %v149, %v275
  %v307 = vmul.f32 %v149, %v277
  %v308 = vmul.f32 %v149, %v279
  %v309 = vmul.f32 %v149, %v281
  %v310 = vmul.f32 %v149, %v283
  %v311 = vmul.f32 %v149, %v285
  %v312 = vmul.f32 %v149, %v287
  %v313 = vmul.f32 %v149, %v289
  %v314 = vmul.f32 %v155, %v275
  %v315 = vmul.f32 %v155, %v277
  %v316 = vmul.f32 %v155, %v279
  %v317 = vmul.f32 %v155, %v281
  %v318 = vmul.f32 %v155, %v283
  %v319 = vmul.f32 %v155, %v285
  %v320 = vmul.f32 %v155, %v287
  %v321 = vmul.f32 %v155, %v289
  %v322 = vmul.f32 %v159, %v275
  %v323 = vmul.f32 %v159, %v277
  %v324 = vmul.f32 %v159, %v279
  %v325 = vmul.f32 %v159, %v281
  %v326 = vmul.f32 %v159, %v283
  %v327 = vmul.f32 %v159, %v285
  %v328 = vmul.f32 %v159, %v287
  %v329 = vmul.f32 %v159, %v289
  %v330 = vmul.f32 %v165, %v275
  %v331 = vmul.f32 %v165, %v277
  %v332 = vmul.f32 %v165, %v279
  %v333 = vmul.f32 %v165, %v281
  %v334 = vmul.f32 %v165, %v283
  %v335 = vmul.f32 %v165, %v285
  %v336 = vmul.f32 %v165, %v287
  %v337 = vmul.f32 %v165, %v289
  %v338 = vmul.f32 %v169, %v275
  %v339 = vmul.f32 %v169, %v277
  %v340 = vmul.f32 %v169, %v279
  %v341 = vmul.f32 %v169, %v281
  %v342 = vmul.f32 %v169, %v283
  %v343 = vmul.f32 %v169, %v285
  %v344 = vmul.f32 %v169, %v287
  %v345 = vmul.f32 %v169, %v289
  %v346 = vmul.f32 %v175, %v275
  %v347 = vmul.f32 %v175, %v277
  %v348 = vmul.f32 %v175, %v279
  %v349 = vmul.f32 %v175, %v281
  %v350 = vmul.f32 %v175, %v283
  %v351 = vmul.f32 %v175, %v285
  %v352 = vmul.f32 %v175, %v287
  %v353 = vmul.f32 %v175, %v289
  %v354 = vmul.f32 %v179, %v275
  %v355 = vmul.f32 %v179, %v277
  %v356 = vmul.f32 %v179, %v279
  %v357 = vmul.f32 %v179, %v281
  %v358 = vmul.f32 %v179, %v283
  %v359 = vmul.f32 %v179, %v285
  %v360 = vmul.f32 %v179, %v287
  %v361 = vmul.f32 %v179, %v289
  %v362 = vmul.f32 %v147, %v237
  %v363 = vmul.f32 %v147, %v241
  %v364 = vmul.f32 %v147, %v245
  %v365 = vmul.f32 %v147, %v249
  %v366 = vmul.f32 %v147, %v253
  %v367 = vmul.f32 %v147, %v257
  %v368 = vmul.f32 %v147, %v261
  %v369 = vmul.f32 %v147, %v265
  %v370 = vmul.f32 %v151, %v237
  %v371 = vmul.f32 %v151, %v241
  %v372 = vmul.f32 %v151, %v245
  %v373 = vmul.f32 %v151, %v249
  %v374 = vmul.f32 %v151, %v253
  %v375 = vmul.f32 %v151, %v257
  %v376 = vmul.f32 %v151, %v261
  %v377 = vmul.f32 %v151, %v265
  %v378 = vmul.f32 %v157, %v237
  %v379 = vmul.f32 %v157, %v241
  %v380 = vmul.f32 %v157, %v245
  %v381 = vmul.f32 %v157, %v249
  %v382 = vmul.f32 %v157, %v253
  %v383 = vmul.f32 %v157, %v257
  %v384 = vmul.f32 %v157, %v261
  %v385 = vmul.f32 %v157, %v265
  %v386 = vmul.f32 %v161, %v237
  %v387 = vmul.f32 %v161, %v241
  %v388 = vmul.f32 %v161, %v245
  %v389 = vmul.f32 %v161, %v249
  %v390 = vmul.f32 %v161, %v253
  %v391 = vmul.f32 %v161, %v257
  %v392 = vmul.f32 %v161, %v261
  %v393 = vmul.f32 %v161, %v265
  %v394 = vmul.f32 %v167, %v237
  %v395 = vmul.f32 %v167, %v241
  %v396 = vmul.f32 %v167, %v245
  %v397 = vmul.f32 %v167, %v249
  %v398 = vmul.f32 %v167, %v253
  %v399 = vmul.f32 %v167, %v257
  %v400 = vmul.f32 %v167, %v261
  %v401 = vmul.f32 %v167, %v265
  %v402 = vmul.f32 %v171, %v237
  %v403 = vmul.f32 %v171, %v241
  %v404 = vmul.f32 %v171, %v245
  %v405 = vmul.f32 %v171, %v249
  %v406 = vmul.f32 %v171, %v253
  %v407 = vmul.f32 %v171, %v257
  %v408 = vmul.f32 %v171, %v261
  %v409 = vmul.f32 %v171, %v265
  %v410 = vmul.f32 %v177, %v237
  %v411 = vmul.f32 %v177, %v241
  %v412 = vmul.f32 %v177, %v245
  %v413 = vmul.f32 %v177, %v249
  %v414 = vmul.f32 %v177, %v253
  %v415 = vmul.f32 %v177, %v257
  %v416 = vmul.f32 %v177, %v261
  %v417 = vmul.f32 %v177, %v265
  %v418 = vmul.f32 %v181, %v237
  %v419 = vmul.f32 %v181, %v241
  %v420 = vmul.f32 %v181, %v245
  %v421 = vmul.f32 %v181, %v249
  %v422 = vmul.f32 %v181, %v253
  %v423 = vmul.f32 %v181, %v257
  %v424 = vmul.f32 %v181, %v261
  %v425 = vmul.f32 %v181, %v265
  %434 = vrot.lane.b32.xlu0 %v298, 64
  %v435 = vpop.permute.xlu0 %434
  %436 = vrot.lane.b32.xlu0 %v299, 64
  %v437 = vpop.permute.xlu0 %436
  %438 = vrot.lane.b32.xlu0 %v300, 64
  %v439 = vpop.permute.xlu0 %438
  %440 = vrot.lane.b32.xlu0 %v301, 64
  %v441 = vpop.permute.xlu0 %440
  %442 = vrot.lane.b32.xlu0 %v302, 64
  %v443 = vpop.permute.xlu0 %442
  %444 = vrot.lane.b32.xlu0 %v303, 64
  %v445 = vpop.permute.xlu0 %444
  %446 = vrot.lane.b32.xlu0 %v304, 64
  %v447 = vpop.permute.xlu0 %446
  %448 = vrot.lane.b32.xlu0 %v305, 64
  %v449 = vpop.permute.xlu0 %448
  %v451 = vsel %vm97, %v145, 0
  %v453 = vsel %vm97, %v435, 0
  %v455 = vsel %vm97, %v437, 0
  %v457 = vsel %vm97, %v439, 0
  %v459 = vsel %vm97, %v441, 0
  %v461 = vsel %vm97, %v443, 0
  %v463 = vsel %vm97, %v445, 0
  %v465 = vsel %vm97, %v447, 0
  %v467 = vsel %vm97, %v449, 0
  %469 = vmatprep.subr.mxu0 0.0
  %470 = vmatpush1.xpose.msra.mxu0 %v453
  %471 = vmatprep.subr.mxu0 0.0
  %472 = vmatpush1.xpose.msra.mxu0 %v455
  %473 = vmatprep.subr.mxu0 0.0
  %474 = vmatpush1.xpose.msra.mxu0 %v457
  %475 = vmatprep.subr.mxu0 0.0
  %476 = vmatpush1.xpose.msra.mxu0 %v459
  %477 = vmatprep.subr.mxu0 0.0
  %478 = vmatpush1.xpose.msra.mxu0 %v461
  %479 = vmatprep.subr.mxu0 0.0
  %480 = vmatpush1.xpose.msra.mxu0 %v463
  %481 = vmatprep.subr.mxu0 0.0
  %482 = vmatpush1.xpose.msra.mxu0 %v465
  %483 = vmatprep.subr.mxu0 0.0
  %484 = vmatpush1.xpose.msra.mxu0 %v467
  %485 = vmatprep.subr.mxu0 0.0
  %486 = vmatpush1.xpose.msra.mxu0 0.0
  %487 = vmatprep.subr.mxu0 0.0
  %488 = vmatpush1.xpose.msra.mxu0 0.0
  %489 = vmatprep.subr.mxu0 0.0
  %490 = vmatpush1.xpose.msra.mxu0 0.0
  %491 = vmatprep.subr.mxu0 0.0
  %492 = vmatpush1.xpose.msra.mxu0 0.0
  %493 = vmatprep.subr.mxu0 0.0
  %494 = vmatpush1.xpose.msra.mxu0 0.0
  %495 = vmatprep.subr.mxu0 0.0
  %496 = vmatpush1.xpose.msra.mxu0 0.0
  %497 = vmatprep.subr.mxu0 0.0
  %498 = vmatpush1.xpose.msra.mxu0 0.0
  %499 = vmatprep.subr.mxu0 0.0
  %500 = vmatpush1.xpose.msra.mxu0 0.0
  %501 = vmatprep.subr.mxu0 0.0
  %502 = vmatpush1.xpose.msra.mxu0 0.0
  %503 = vmatprep.subr.mxu0 0.0
  %504 = vmatpush1.xpose.msra.mxu0 0.0
  %505 = vmatprep.subr.mxu0 0.0
  %506 = vmatpush1.xpose.msra.mxu0 0.0
  %507 = vmatprep.subr.mxu0 0.0
  %508 = vmatpush1.xpose.msra.mxu0 0.0
  %509 = vmatprep.subr.mxu0 0.0
  %510 = vmatpush1.xpose.msra.mxu0 0.0
  %511 = vmatprep.subr.mxu0 0.0
  %512 = vmatpush1.xpose.msra.mxu0 0.0
  %513 = vmatprep.subr.mxu0 0.0
  %514 = vmatpush1.xpose.msra.mxu0 0.0
  %515 = vmatprep.subr.mxu0 0.0
  %516 = vmatpush1.xpose.msra.mxu0 0.0
  %517 = vmatprep.subr.mxu0 0.0
  %518 = vmatpush1.xpose.msra.mxu0 0.0
  %519 = vmatprep.subr.mxu0 0.0
  %520 = vmatpush1.xpose.msra.mxu0 0.0
  %521 = vmatprep.subr.mxu0 0.0
  %522 = vmatpush1.xpose.msra.mxu0 0.0
  %523 = vmatprep.subr.mxu0 0.0
  %524 = vmatpush1.xpose.msra.mxu0 0.0
  %525 = vmatprep.subr.mxu0 0.0
  %526 = vmatpush1.xpose.msra.mxu0 0.0
  %527 = vmatprep.subr.mxu0 0.0
  %528 = vmatpush1.xpose.msra.mxu0 0.0
  %529 = vmatprep.subr.mxu0 0.0
  %530 = vmatpush1.xpose.msra.mxu0 0.0
  %531 = vmatprep.subr.mxu0 0.0
  %532 = vmatpush1.xpose.msra.mxu0 0.0
  %533 = vmatprep.mubr.f32.mxu0 0.0
  %534 = vmatmul.mubr.f32.gmra.mrb[0].mxu0 %v451
  %v535 = vpop.f32.mrb[0].mxu0
  %v536 = vadd.f32 0.0, %v535
  %v537 = vpop.f32.mrb[0].mxu0
  %538 = vdwg.mxu0
  %547 = vrot.lane.b32.xlu0 %v306, 64
  %v548 = vpop.permute.xlu0 %547
  %549 = vrot.lane.b32.xlu0 %v307, 64
  %v550 = vpop.permute.xlu0 %549
  %551 = vrot.lane.b32.xlu0 %v308, 64
  %v552 = vpop.permute.xlu0 %551
  %553 = vrot.lane.b32.xlu0 %v309, 64
  %v554 = vpop.permute.xlu0 %553
  %555 = vrot.lane.b32.xlu0 %v310, 64
  %v556 = vpop.permute.xlu0 %555
  %557 = vrot.lane.b32.xlu0 %v311, 64
  %v558 = vpop.permute.xlu0 %557
  %559 = vrot.lane.b32.xlu0 %v312, 64
  %v560 = vpop.permute.xlu0 %559
  %561 = vrot.lane.b32.xlu0 %v313, 64
  %v562 = vpop.permute.xlu0 %561
  %v564 = vsel %vm97, %v149, 0
  %v566 = vsel %vm97, %v548, 0
  %v568 = vsel %vm97, %v550, 0
  %v570 = vsel %vm97, %v552, 0
  %v572 = vsel %vm97, %v554, 0
  %v574 = vsel %vm97, %v556, 0
  %v576 = vsel %vm97, %v558, 0
  %v578 = vsel %vm97, %v560, 0
  %v580 = vsel %vm97, %v562, 0
  %582 = vmatprep.subr.mxu0 0.0
  %583 = vmatpush1.xpose.msra.mxu0 %v566
  %584 = vmatprep.subr.mxu0 0.0
  %585 = vmatpush1.xpose.msra.mxu0 %v568
  %586 = vmatprep.subr.mxu0 0.0
  %587 = vmatpush1.xpose.msra.mxu0 %v570
  %588 = vmatprep.subr.mxu0 0.0
  %589 = vmatpush1.xpose.msra.mxu0 %v572
  %590 = vmatprep.subr.mxu0 0.0
  %591 = vmatpush1.xpose.msra.mxu0 %v574
  %592 = vmatprep.subr.mxu0 0.0
  %593 = vmatpush1.xpose.msra.mxu0 %v576
  %594 = vmatprep.subr.mxu0 0.0
  %595 = vmatpush1.xpose.msra.mxu0 %v578
  %596 = vmatprep.subr.mxu0 0.0
  %597 = vmatpush1.xpose.msra.mxu0 %v580
  %598 = vmatprep.subr.mxu0 0.0
  %599 = vmatpush1.xpose.msra.mxu0 0.0
  %600 = vmatprep.subr.mxu0 0.0
  %601 = vmatpush1.xpose.msra.mxu0 0.0
  %602 = vmatprep.subr.mxu0 0.0
  %603 = vmatpush1.xpose.msra.mxu0 0.0
  %604 = vmatprep.subr.mxu0 0.0
  %605 = vmatpush1.xpose.msra.mxu0 0.0
  %606 = vmatprep.subr.mxu0 0.0
  %607 = vmatpush1.xpose.msra.mxu0 0.0
  %608 = vmatprep.subr.mxu0 0.0
  %609 = vmatpush1.xpose.msra.mxu0 0.0
  %610 = vmatprep.subr.mxu0 0.0
  %611 = vmatpush1.xpose.msra.mxu0 0.0
  %612 = vmatprep.subr.mxu0 0.0
  %613 = vmatpush1.xpose.msra.mxu0 0.0
  %614 = vmatprep.subr.mxu0 0.0
  %615 = vmatpush1.xpose.msra.mxu0 0.0
  %616 = vmatprep.subr.mxu0 0.0
  %617 = vmatpush1.xpose.msra.mxu0 0.0
  %618 = vmatprep.subr.mxu0 0.0
  %619 = vmatpush1.xpose.msra.mxu0 0.0
  %620 = vmatprep.subr.mxu0 0.0
  %621 = vmatpush1.xpose.msra.mxu0 0.0
  %622 = vmatprep.subr.mxu0 0.0
  %623 = vmatpush1.xpose.msra.mxu0 0.0
  %624 = vmatprep.subr.mxu0 0.0
  %625 = vmatpush1.xpose.msra.mxu0 0.0
  %626 = vmatprep.subr.mxu0 0.0
  %627 = vmatpush1.xpose.msra.mxu0 0.0
  %628 = vmatprep.subr.mxu0 0.0
  %629 = vmatpush1.xpose.msra.mxu0 0.0
  %630 = vmatprep.subr.mxu0 0.0
  %631 = vmatpush1.xpose.msra.mxu0 0.0
  %632 = vmatprep.subr.mxu0 0.0
  %633 = vmatpush1.xpose.msra.mxu0 0.0
  %634 = vmatprep.subr.mxu0 0.0
  %635 = vmatpush1.xpose.msra.mxu0 0.0
  %636 = vmatprep.subr.mxu0 0.0
  %637 = vmatpush1.xpose.msra.mxu0 0.0
  %638 = vmatprep.subr.mxu0 0.0
  %639 = vmatpush1.xpose.msra.mxu0 0.0
  %640 = vmatprep.subr.mxu0 0.0
  %641 = vmatpush1.xpose.msra.mxu0 0.0
  %642 = vmatprep.subr.mxu0 0.0
  %643 = vmatpush1.xpose.msra.mxu0 0.0
  %644 = vmatprep.subr.mxu0 0.0
  %645 = vmatpush1.xpose.msra.mxu0 0.0
  %646 = vmatprep.mubr.f32.mxu0 0.0
  %647 = vmatmul.mubr.f32.gmra.mrb[0].mxu0 %v564
  %v648 = vpop.f32.mrb[0].mxu0
  %v649 = vadd.f32 0.0, %v648
  %v650 = vpop.f32.mrb[0].mxu0
  %651 = vdwg.mxu0
  %660 = vrot.lane.b32.xlu0 %v314, 64
  %v661 = vpop.permute.xlu0 %660
  %662 = vrot.lane.b32.xlu0 %v315, 64
  %v663 = vpop.permute.xlu0 %662
  %664 = vrot.lane.b32.xlu0 %v316, 64
  %v665 = vpop.permute.xlu0 %664
  %666 = vrot.lane.b32.xlu0 %v317, 64
  %v667 = vpop.permute.xlu0 %666
  %668 = vrot.lane.b32.xlu0 %v318, 64
  %v669 = vpop.permute.xlu0 %668
  %670 = vrot.lane.b32.xlu0 %v319, 64
  %v671 = vpop.permute.xlu0 %670
  %672 = vrot.lane.b32.xlu0 %v320, 64
  %v673 = vpop.permute.xlu0 %672
  %674 = vrot.lane.b32.xlu0 %v321, 64
  %v675 = vpop.permute.xlu0 %674
  %v677 = vsel %vm97, %v155, 0
  %v679 = vsel %vm97, %v661, 0
  %v681 = vsel %vm97, %v663, 0
  %v683 = vsel %vm97, %v665, 0
  %v685 = vsel %vm97, %v667, 0
  %v687 = vsel %vm97, %v669, 0
  %v689 = vsel %vm97, %v671, 0
  %v691 = vsel %vm97, %v673, 0
  %v693 = vsel %vm97, %v675, 0
  %695 = vmatprep.subr.mxu0 0.0
  %696 = vmatpush1.xpose.msra.mxu0 %v679
  %697 = vmatprep.subr.mxu0 0.0
  %698 = vmatpush1.xpose.msra.mxu0 %v681
  %699 = vmatprep.subr.mxu0 0.0
  %700 = vmatpush1.xpose.msra.mxu0 %v683
  %701 = vmatprep.subr.mxu0 0.0
  %702 = vmatpush1.xpose.msra.mxu0 %v685
  %703 = vmatprep.subr.mxu0 0.0
  %704 = vmatpush1.xpose.msra.mxu0 %v687
  %705 = vmatprep.subr.mxu0 0.0
  %706 = vmatpush1.xpose.msra.mxu0 %v689
  %707 = vmatprep.subr.mxu0 0.0
  %708 = vmatpush1.xpose.msra.mxu0 %v691
  %709 = vmatprep.subr.mxu0 0.0
  %710 = vmatpush1.xpose.msra.mxu0 %v693
  %711 = vmatprep.subr.mxu0 0.0
  %712 = vmatpush1.xpose.msra.mxu0 0.0
  %713 = vmatprep.subr.mxu0 0.0
  %714 = vmatpush1.xpose.msra.mxu0 0.0
  %715 = vmatprep.subr.mxu0 0.0
  %716 = vmatpush1.xpose.msra.mxu0 0.0
  %717 = vmatprep.subr.mxu0 0.0
  %718 = vmatpush1.xpose.msra.mxu0 0.0
  %719 = vmatprep.subr.mxu0 0.0
  %720 = vmatpush1.xpose.msra.mxu0 0.0
  %721 = vmatprep.subr.mxu0 0.0
  %722 = vmatpush1.xpose.msra.mxu0 0.0
  %723 = vmatprep.subr.mxu0 0.0
  %724 = vmatpush1.xpose.msra.mxu0 0.0
  %725 = vmatprep.subr.mxu0 0.0
  %726 = vmatpush1.xpose.msra.mxu0 0.0
  %727 = vmatprep.subr.mxu0 0.0
  %728 = vmatpush1.xpose.msra.mxu0 0.0
  %729 = vmatprep.subr.mxu0 0.0
  %730 = vmatpush1.xpose.msra.mxu0 0.0
  %731 = vmatprep.subr.mxu0 0.0
  %732 = vmatpush1.xpose.msra.mxu0 0.0
  %733 = vmatprep.subr.mxu0 0.0
  %734 = vmatpush1.xpose.msra.mxu0 0.0
  %735 = vmatprep.subr.mxu0 0.0
  %736 = vmatpush1.xpose.msra.mxu0 0.0
  %737 = vmatprep.subr.mxu0 0.0
  %738 = vmatpush1.xpose.msra.mxu0 0.0
  %739 = vmatprep.subr.mxu0 0.0
  %740 = vmatpush1.xpose.msra.mxu0 0.0
  %741 = vmatprep.subr.mxu0 0.0
  %742 = vmatpush1.xpose.msra.mxu0 0.0
  %743 = vmatprep.subr.mxu0 0.0
  %744 = vmatpush1.xpose.msra.mxu0 0.0
  %745 = vmatprep.subr.mxu0 0.0
  %746 = vmatpush1.xpose.msra.mxu0 0.0
  %747 = vmatprep.subr.mxu0 0.0
  %748 = vmatpush1.xpose.msra.mxu0 0.0
  %749 = vmatprep.subr.mxu0 0.0
  %750 = vmatpush1.xpose.msra.mxu0 0.0
  %751 = vmatprep.subr.mxu0 0.0
  %752 = vmatpush1.xpose.msra.mxu0 0.0
  %753 = vmatprep.subr.mxu0 0.0
  %754 = vmatpush1.xpose.msra.mxu0 0.0
  %755 = vmatprep.subr.mxu0 0.0
  %756 = vmatpush1.xpose.msra.mxu0 0.0
  %757 = vmatprep.subr.mxu0 0.0
  %758 = vmatpush1.xpose.msra.mxu0 0.0
  %759 = vmatprep.mubr.f32.mxu0 0.0
  %760 = vmatmul.mubr.f32.gmra.mrb[0].mxu0 %v677
  %v761 = vpop.f32.mrb[0].mxu0
  %v762 = vadd.f32 0.0, %v761
  %v763 = vpop.f32.mrb[0].mxu0
  %764 = vdwg.mxu0
  %773 = vrot.lane.b32.xlu0 %v322, 64
  %v774 = vpop.permute.xlu0 %773
  %775 = vrot.lane.b32.xlu0 %v323, 64
  %v776 = vpop.permute.xlu0 %775
  %777 = vrot.lane.b32.xlu0 %v324, 64
  %v778 = vpop.permute.xlu0 %777
  %779 = vrot.lane.b32.xlu0 %v325, 64
  %v780 = vpop.permute.xlu0 %779
  %781 = vrot.lane.b32.xlu0 %v326, 64
  %v782 = vpop.permute.xlu0 %781
  %783 = vrot.lane.b32.xlu0 %v327, 64
  %v784 = vpop.permute.xlu0 %783
  %785 = vrot.lane.b32.xlu0 %v328, 64
  %v786 = vpop.permute.xlu0 %785
  %787 = vrot.lane.b32.xlu0 %v329, 64
  %v788 = vpop.permute.xlu0 %787
  %v790 = vsel %vm97, %v159, 0
  %v792 = vsel %vm97, %v774, 0
  %v794 = vsel %vm97, %v776, 0
  %v796 = vsel %vm97, %v778, 0
  %v798 = vsel %vm97, %v780, 0
  %v800 = vsel %vm97, %v782, 0
  %v802 = vsel %vm97, %v784, 0
  %v804 = vsel %vm97, %v786, 0
  %v806 = vsel %vm97, %v788, 0
  %808 = vmatprep.subr.mxu0 0.0
  %809 = vmatpush1.xpose.msra.mxu0 %v792
  %810 = vmatprep.subr.mxu0 0.0
  %811 = vmatpush1.xpose.msra.mxu0 %v794
  %812 = vmatprep.subr.mxu0 0.0
  %813 = vmatpush1.xpose.msra.mxu0 %v796
  %814 = vmatprep.subr.mxu0 0.0
  %815 = vmatpush1.xpose.msra.mxu0 %v798
  %816 = vmatprep.subr.mxu0 0.0
  %817 = vmatpush1.xpose.msra.mxu0 %v800
  %818 = vmatprep.subr.mxu0 0.0
  %819 = vmatpush1.xpose.msra.mxu0 %v802
  %820 = vmatprep.subr.mxu0 0.0
  %821 = vmatpush1.xpose.msra.mxu0 %v804
  %822 = vmatprep.subr.mxu0 0.0
  %823 = vmatpush1.xpose.msra.mxu0 %v806
  %824 = vmatprep.subr.mxu0 0.0
  %825 = vmatpush1.xpose.msra.mxu0 0.0
  %826 = vmatprep.subr.mxu0 0.0
  %827 = vmatpush1.xpose.msra.mxu0 0.0
  %828 = vmatprep.subr.mxu0 0.0
  %829 = vmatpush1.xpose.msra.mxu0 0.0
  %830 = vmatprep.subr.mxu0 0.0
  %831 = vmatpush1.xpose.msra.mxu0 0.0
  %832 = vmatprep.subr.mxu0 0.0
  %833 = vmatpush1.xpose.msra.mxu0 0.0
  %834 = vmatprep.subr.mxu0 0.0
  %835 = vmatpush1.xpose.msra.mxu0 0.0
  %836 = vmatprep.subr.mxu0 0.0
  %837 = vmatpush1.xpose.msra.mxu0 0.0
  %838 = vmatprep.subr.mxu0 0.0
  %839 = vmatpush1.xpose.msra.mxu0 0.0
  %840 = vmatprep.subr.mxu0 0.0
  %841 = vmatpush1.xpose.msra.mxu0 0.0
  %842 = vmatprep.subr.mxu0 0.0
  %843 = vmatpush1.xpose.msra.mxu0 0.0
  %844 = vmatprep.subr.mxu0 0.0
  %845 = vmatpush1.xpose.msra.mxu0 0.0
  %846 = vmatprep.subr.mxu0 0.0
  %847 = vmatpush1.xpose.msra.mxu0 0.0
  %848 = vmatprep.subr.mxu0 0.0
  %849 = vmatpush1.xpose.msra.mxu0 0.0
  %850 = vmatprep.subr.mxu0 0.0
  %851 = vmatpush1.xpose.msra.mxu0 0.0
  %852 = vmatprep.subr.mxu0 0.0
  %853 = vmatpush1.xpose.msra.mxu0 0.0
  %854 = vmatprep.subr.mxu0 0.0
  %855 = vmatpush1.xpose.msra.mxu0 0.0
  %856 = vmatprep.subr.mxu0 0.0
  %857 = vmatpush1.xpose.msra.mxu0 0.0
  %858 = vmatprep.subr.mxu0 0.0
  %859 = vmatpush1.xpose.msra.mxu0 0.0
  %860 = vmatprep.subr.mxu0 0.0
  %861 = vmatpush1.xpose.msra.mxu0 0.0
  %862 = vmatprep.subr.mxu0 0.0
  %863 = vmatpush1.xpose.msra.mxu0 0.0
  %864 = vmatprep.subr.mxu0 0.0
  %865 = vmatpush1.xpose.msra.mxu0 0.0
  %866 = vmatprep.subr.mxu0 0.0
  %867 = vmatpush1.xpose.msra.mxu0 0.0
  %868 = vmatprep.subr.mxu0 0.0
  %869 = vmatpush1.xpose.msra.mxu0 0.0
  %870 = vmatprep.subr.mxu0 0.0
  %871 = vmatpush1.xpose.msra.mxu0 0.0
  %872 = vmatprep.mubr.f32.mxu0 0.0
  %873 = vmatmul.mubr.f32.gmra.mrb[0].mxu0 %v790
  %v874 = vpop.f32.mrb[0].mxu0
  %v875 = vadd.f32 0.0, %v874
  %v876 = vpop.f32.mrb[0].mxu0
  %877 = vdwg.mxu0
  %886 = vrot.lane.b32.xlu0 %v330, 64
  %v887 = vpop.permute.xlu0 %886
  %888 = vrot.lane.b32.xlu0 %v331, 64
  %v889 = vpop.permute.xlu0 %888
  %890 = vrot.lane.b32.xlu0 %v332, 64
  %v891 = vpop.permute.xlu0 %890
  %892 = vrot.lane.b32.xlu0 %v333, 64
  %v893 = vpop.permute.xlu0 %892
  %894 = vrot.lane.b32.xlu0 %v334, 64
  %v895 = vpop.permute.xlu0 %894
  %896 = vrot.lane.b32.xlu0 %v335, 64
  %v897 = vpop.permute.xlu0 %896
  %898 = vrot.lane.b32.xlu0 %v336, 64
  %v899 = vpop.permute.xlu0 %898
  %900 = vrot.lane.b32.xlu0 %v337, 64
  %v901 = vpop.permute.xlu0 %900
  %v903 = vsel %vm97, %v165, 0
  %v905 = vsel %vm97, %v887, 0
  %v907 = vsel %vm97, %v889, 0
  %v909 = vsel %vm97, %v891, 0
  %v911 = vsel %vm97, %v893, 0
  %v913 = vsel %vm97, %v895, 0
  %v915 = vsel %vm97, %v897, 0
  %v917 = vsel %vm97, %v899, 0
  %v919 = vsel %vm97, %v901, 0
  %921 = vmatprep.subr.mxu0 0.0
  %922 = vmatpush1.xpose.msra.mxu0 %v905
  %923 = vmatprep.subr.mxu0 0.0
  %924 = vmatpush1.xpose.msra.mxu0 %v907
  %925 = vmatprep.subr.mxu0 0.0
  %926 = vmatpush1.xpose.msra.mxu0 %v909
  %927 = vmatprep.subr.mxu0 0.0
  %928 = vmatpush1.xpose.msra.mxu0 %v911
  %929 = vmatprep.subr.mxu0 0.0
  %930 = vmatpush1.xpose.msra.mxu0 %v913
  %931 = vmatprep.subr.mxu0 0.0
  %932 = vmatpush1.xpose.msra.mxu0 %v915
  %933 = vmatprep.subr.mxu0 0.0
  %934 = vmatpush1.xpose.msra.mxu0 %v917
  %935 = vmatprep.subr.mxu0 0.0
  %936 = vmatpush1.xpose.msra.mxu0 %v919
  %937 = vmatprep.subr.mxu0 0.0
  %938 = vmatpush1.xpose.msra.mxu0 0.0
  %939 = vmatprep.subr.mxu0 0.0
  %940 = vmatpush1.xpose.msra.mxu0 0.0
  %941 = vmatprep.subr.mxu0 0.0
  %942 = vmatpush1.xpose.msra.mxu0 0.0
  %943 = vmatprep.subr.mxu0 0.0
  %944 = vmatpush1.xpose.msra.mxu0 0.0
  %945 = vmatprep.subr.mxu0 0.0
  %946 = vmatpush1.xpose.msra.mxu0 0.0
  %947 = vmatprep.subr.mxu0 0.0
  %948 = vmatpush1.xpose.msra.mxu0 0.0
  %949 = vmatprep.subr.mxu0 0.0
  %950 = vmatpush1.xpose.msra.mxu0 0.0
  %951 = vmatprep.subr.mxu0 0.0
  %952 = vmatpush1.xpose.msra.mxu0 0.0
  %953 = vmatprep.subr.mxu0 0.0
  %954 = vmatpush1.xpose.msra.mxu0 0.0
  %955 = vmatprep.subr.mxu0 0.0
  %956 = vmatpush1.xpose.msra.mxu0 0.0
  %957 = vmatprep.subr.mxu0 0.0
  %958 = vmatpush1.xpose.msra.mxu0 0.0
  %959 = vmatprep.subr.mxu0 0.0
  %960 = vmatpush1.xpose.msra.mxu0 0.0
  %961 = vmatprep.subr.mxu0 0.0
  %962 = vmatpush1.xpose.msra.mxu0 0.0
  %963 = vmatprep.subr.mxu0 0.0
  %964 = vmatpush1.xpose.msra.mxu0 0.0
  %965 = vmatprep.subr.mxu0 0.0
  %966 = vmatpush1.xpose.msra.mxu0 0.0
  %967 = vmatprep.subr.mxu0 0.0
  %968 = vmatpush1.xpose.msra.mxu0 0.0
  %969 = vmatprep.subr.mxu0 0.0
  %970 = vmatpush1.xpose.msra.mxu0 0.0
  %971 = vmatprep.subr.mxu0 0.0
  %972 = vmatpush1.xpose.msra.mxu0 0.0
  %973 = vmatprep.subr.mxu0 0.0
  %974 = vmatpush1.xpose.msra.mxu0 0.0
  %975 = vmatprep.subr.mxu0 0.0
  %976 = vmatpush1.xpose.msra.mxu0 0.0
  %977 = vmatprep.subr.mxu0 0.0
  %978 = vmatpush1.xpose.msra.mxu0 0.0
  %979 = vmatprep.subr.mxu0 0.0
  %980 = vmatpush1.xpose.msra.mxu0 0.0
  %981 = vmatprep.subr.mxu0 0.0
  %982 = vmatpush1.xpose.msra.mxu0 0.0
  %983 = vmatprep.subr.mxu0 0.0
  %984 = vmatpush1.xpose.msra.mxu0 0.0
  %985 = vmatprep.mubr.f32.mxu0 0.0
  %986 = vmatmul.mubr.f32.gmra.mrb[0].mxu0 %v903
  %v987 = vpop.f32.mrb[0].mxu0
  %v988 = vadd.f32 0.0, %v987
  %v989 = vpop.f32.mrb[0].mxu0
  %990 = vdwg.mxu0
  %999 = vrot.lane.b32.xlu0 %v338, 64
  %v1000 = vpop.permute.xlu0 %999
  %1001 = vrot.lane.b32.xlu0 %v339, 64
  %v1002 = vpop.permute.xlu0 %1001
  %1003 = vrot.lane.b32.xlu0 %v340, 64
  %v1004 = vpop.permute.xlu0 %1003
  %1005 = vrot.lane.b32.xlu0 %v341, 64
  %v1006 = vpop.permute.xlu0 %1005
  %1007 = vrot.lane.b32.xlu0 %v342, 64
  %v1008 = vpop.permute.xlu0 %1007
  %1009 = vrot.lane.b32.xlu0 %v343, 64
  %v1010 = vpop.permute.xlu0 %1009
  %1011 = vrot.lane.b32.xlu0 %v344, 64
  %v1012 = vpop.permute.xlu0 %1011
  %1013 = vrot.lane.b32.xlu0 %v345, 64
  %v1014 = vpop.permute.xlu0 %1013
  %v1016 = vsel %vm97, %v169, 0
  %v1018 = vsel %vm97, %v1000, 0
  %v1020 = vsel %vm97, %v1002, 0
  %v1022 = vsel %vm97, %v1004, 0
  %v1024 = vsel %vm97, %v1006, 0
  %v1026 = vsel %vm97, %v1008, 0
  %v1028 = vsel %vm97, %v1010, 0
  %v1030 = vsel %vm97, %v1012, 0
  %v1032 = vsel %vm97, %v1014, 0
  %1034 = vmatprep.subr.mxu0 0.0
  %1035 = vmatpush1.xpose.msra.mxu0 %v1018
  %1036 = vmatprep.subr.mxu0 0.0
  %1037 = vmatpush1.xpose.msra.mxu0 %v1020
  %1038 = vmatprep.subr.mxu0 0.0
  %1039 = vmatpush1.xpose.msra.mxu0 %v1022
  %1040 = vmatprep.subr.mxu0 0.0
  %1041 = vmatpush1.xpose.msra.mxu0 %v1024
  %1042 = vmatprep.subr.mxu0 0.0
  %1043 = vmatpush1.xpose.msra.mxu0 %v1026
  %1044 = vmatprep.subr.mxu0 0.0
  %1045 = vmatpush1.xpose.msra.mxu0 %v1028
  %1046 = vmatprep.subr.mxu0 0.0
  %1047 = vmatpush1.xpose.msra.mxu0 %v1030
  %1048 = vmatprep.subr.mxu0 0.0
  %1049 = vmatpush1.xpose.msra.mxu0 %v1032
  %1050 = vmatprep.subr.mxu0 0.0
  %1051 = vmatpush1.xpose.msra.mxu0 0.0
  %1052 = vmatprep.subr.mxu0 0.0
  %1053 = vmatpush1.xpose.msra.mxu0 0.0
  %1054 = vmatprep.subr.mxu0 0.0
  %1055 = vmatpush1.xpose.msra.mxu0 0.0
  %1056 = vmatprep.subr.mxu0 0.0
  %1057 = vmatpush1.xpose.msra.mxu0 0.0
  %1058 = vmatprep.subr.mxu0 0.0
  %1059 = vmatpush1.xpose.msra.mxu0 0.0
  %1060 = vmatprep.subr.mxu0 0.0
  %1061 = vmatpush1.xpose.msra.mxu0 0.0
  %1062 = vmatprep.subr.mxu0 0.0
  %1063 = vmatpush1.xpose.msra.mxu0 0.0
  %1064 = vmatprep.subr.mxu0 0.0
  %1065 = vmatpush1.xpose.msra.mxu0 0.0
  %1066 = vmatprep.subr.mxu0 0.0
  %1067 = vmatpush1.xpose.msra.mxu0 0.0
  %1068 = vmatprep.subr.mxu0 0.0
  %1069 = vmatpush1.xpose.msra.mxu0 0.0
  %1070 = vmatprep.subr.mxu0 0.0
  %1071 = vmatpush1.xpose.msra.mxu0 0.0
  %1072 = vmatprep.subr.mxu0 0.0
  %1073 = vmatpush1.xpose.msra.mxu0 0.0
  %1074 = vmatprep.subr.mxu0 0.0
  %1075 = vmatpush1.xpose.msra.mxu0 0.0
  %1076 = vmatprep.subr.mxu0 0.0
  %1077 = vmatpush1.xpose.msra.mxu0 0.0
  %1078 = vmatprep.subr.mxu0 0.0
  %1079 = vmatpush1.xpose.msra.mxu0 0.0
  %1080 = vmatprep.subr.mxu0 0.0
  %1081 = vmatpush1.xpose.msra.mxu0 0.0
  %1082 = vmatprep.subr.mxu0 0.0
  %1083 = vmatpush1.xpose.msra.mxu0 0.0
  %1084 = vmatprep.subr.mxu0 0.0
  %1085 = vmatpush1.xpose.msra.mxu0 0.0
  %1086 = vmatprep.subr.mxu0 0.0
  %1087 = vmatpush1.xpose.msra.mxu0 0.0
  %1088 = vmatprep.subr.mxu0 0.0
  %1089 = vmatpush1.xpose.msra.mxu0 0.0
  %1090 = vmatprep.subr.mxu0 0.0
  %1091 = vmatpush1.xpose.msra.mxu0 0.0
  %1092 = vmatprep.subr.mxu0 0.0
  %1093 = vmatpush1.xpose.msra.mxu0 0.0
  %1094 = vmatprep.subr.mxu0 0.0
  %1095 = vmatpush1.xpose.msra.mxu0 0.0
  %1096 = vmatprep.subr.mxu0 0.0
  %1097 = vmatpush1.xpose.msra.mxu0 0.0
  %1098 = vmatprep.mubr.f32.mxu0 0.0
  %1099 = vmatmul.mubr.f32.gmra.mrb[0].mxu0 %v1016
  %v1100 = vpop.f32.mrb[0].mxu0
  %v1101 = vadd.f32 0.0, %v1100
  %v1102 = vpop.f32.mrb[0].mxu0
  %1103 = vdwg.mxu0
  %1112 = vrot.lane.b32.xlu0 %v346, 64
  %v1113 = vpop.permute.xlu0 %1112
  %1114 = vrot.lane.b32.xlu0 %v347, 64
  %v1115 = vpop.permute.xlu0 %1114
  %1116 = vrot.lane.b32.xlu0 %v348, 64
  %v1117 = vpop.permute.xlu0 %1116
  %1118 = vrot.lane.b32.xlu0 %v349, 64
  %v1119 = vpop.permute.xlu0 %1118
  %1120 = vrot.lane.b32.xlu0 %v350, 64
  %v1121 = vpop.permute.xlu0 %1120
  %1122 = vrot.lane.b32.xlu0 %v351, 64
  %v1123 = vpop.permute.xlu0 %1122
  %1124 = vrot.lane.b32.xlu0 %v352, 64
  %v1125 = vpop.permute.xlu0 %1124
  %1126 = vrot.lane.b32.xlu0 %v353, 64
  %v1127 = vpop.permute.xlu0 %1126
  %v1129 = vsel %vm97, %v175, 0
  %v1131 = vsel %vm97, %v1113, 0
  %v1133 = vsel %vm97, %v1115, 0
  %v1135 = vsel %vm97, %v1117, 0
  %v1137 = vsel %vm97, %v1119, 0
  %v1139 = vsel %vm97, %v1121, 0
  %v1141 = vsel %vm97, %v1123, 0
  %v1143 = vsel %vm97, %v1125, 0
  %v1145 = vsel %vm97, %v1127, 0
  %1147 = vmatprep.subr.mxu0 0.0
  %1148 = vmatpush1.xpose.msra.mxu0 %v1131
  %1149 = vmatprep.subr.mxu0 0.0
  %1150 = vmatpush1.xpose.msra.mxu0 %v1133
  %1151 = vmatprep.subr.mxu0 0.0
  %1152 = vmatpush1.xpose.msra.mxu0 %v1135
  %1153 = vmatprep.subr.mxu0 0.0
  %1154 = vmatpush1.xpose.msra.mxu0 %v1137
  %1155 = vmatprep.subr.mxu0 0.0
  %1156 = vmatpush1.xpose.msra.mxu0 %v1139
  %1157 = vmatprep.subr.mxu0 0.0
  %1158 = vmatpush1.xpose.msra.mxu0 %v1141
  %1159 = vmatprep.subr.mxu0 0.0
  %1160 = vmatpush1.xpose.msra.mxu0 %v1143
  %1161 = vmatprep.subr.mxu0 0.0
  %1162 = vmatpush1.xpose.msra.mxu0 %v1145
  %1163 = vmatprep.subr.mxu0 0.0
  %1164 = vmatpush1.xpose.msra.mxu0 0.0
  %1165 = vmatprep.subr.mxu0 0.0
  %1166 = vmatpush1.xpose.msra.mxu0 0.0
  %1167 = vmatprep.subr.mxu0 0.0
  %1168 = vmatpush1.xpose.msra.mxu0 0.0
  %1169 = vmatprep.subr.mxu0 0.0
  %1170 = vmatpush1.xpose.msra.mxu0 0.0
  %1171 = vmatprep.subr.mxu0 0.0
  %1172 = vmatpush1.xpose.msra.mxu0 0.0
  %1173 = vmatprep.subr.mxu0 0.0
  %1174 = vmatpush1.xpose.msra.mxu0 0.0
  %1175 = vmatprep.subr.mxu0 0.0
  %1176 = vmatpush1.xpose.msra.mxu0 0.0
  %1177 = vmatprep.subr.mxu0 0.0
  %1178 = vmatpush1.xpose.msra.mxu0 0.0
  %1179 = vmatprep.subr.mxu0 0.0
  %1180 = vmatpush1.xpose.msra.mxu0 0.0
  %1181 = vmatprep.subr.mxu0 0.0
  %1182 = vmatpush1.xpose.msra.mxu0 0.0
  %1183 = vmatprep.subr.mxu0 0.0
  %1184 = vmatpush1.xpose.msra.mxu0 0.0
  %1185 = vmatprep.subr.mxu0 0.0
  %1186 = vmatpush1.xpose.msra.mxu0 0.0
  %1187 = vmatprep.subr.mxu0 0.0
  %1188 = vmatpush1.xpose.msra.mxu0 0.0
  %1189 = vmatprep.subr.mxu0 0.0
  %1190 = vmatpush1.xpose.msra.mxu0 0.0
  %1191 = vmatprep.subr.mxu0 0.0
  %1192 = vmatpush1.xpose.msra.mxu0 0.0
  %1193 = vmatprep.subr.mxu0 0.0
  %1194 = vmatpush1.xpose.msra.mxu0 0.0
  %1195 = vmatprep.subr.mxu0 0.0
  %1196 = vmatpush1.xpose.msra.mxu0 0.0
  %1197 = vmatprep.subr.mxu0 0.0
  %1198 = vmatpush1.xpose.msra.mxu0 0.0
  %1199 = vmatprep.subr.mxu0 0.0
  %1200 = vmatpush1.xpose.msra.mxu0 0.0
  %1201 = vmatprep.subr.mxu0 0.0
  %1202 = vmatpush1.xpose.msra.mxu0 0.0
  %1203 = vmatprep.subr.mxu0 0.0
  %1204 = vmatpush1.xpose.msra.mxu0 0.0
  %1205 = vmatprep.subr.mxu0 0.0
  %1206 = vmatpush1.xpose.msra.mxu0 0.0
  %1207 = vmatprep.subr.mxu0 0.0
  %1208 = vmatpush1.xpose.msra.mxu0 0.0
  %1209 = vmatprep.subr.mxu0 0.0
  %1210 = vmatpush1.xpose.msra.mxu0 0.0
  %1211 = vmatprep.mubr.f32.mxu0 0.0
  %1212 = vmatmul.mubr.f32.gmra.mrb[0].mxu0 %v1129
  %v1213 = vpop.f32.mrb[0].mxu0
  %v1214 = vadd.f32 0.0, %v1213
  %v1215 = vpop.f32.mrb[0].mxu0
  %1216 = vdwg.mxu0
  %1225 = vrot.lane.b32.xlu0 %v354, 64
  %v1226 = vpop.permute.xlu0 %1225
  %1227 = vrot.lane.b32.xlu0 %v355, 64
  %v1228 = vpop.permute.xlu0 %1227
  %1229 = vrot.lane.b32.xlu0 %v356, 64
  %v1230 = vpop.permute.xlu0 %1229
  %1231 = vrot.lane.b32.xlu0 %v357, 64
  %v1232 = vpop.permute.xlu0 %1231
  %1233 = vrot.lane.b32.xlu0 %v358, 64
  %v1234 = vpop.permute.xlu0 %1233
  %1235 = vrot.lane.b32.xlu0 %v359, 64
  %v1236 = vpop.permute.xlu0 %1235
  %1237 = vrot.lane.b32.xlu0 %v360, 64
  %v1238 = vpop.permute.xlu0 %1237
  %1239 = vrot.lane.b32.xlu0 %v361, 64
  %v1240 = vpop.permute.xlu0 %1239
  %v1242 = vsel %vm97, %v179, 0
  %v1244 = vsel %vm97, %v1226, 0
  %v1246 = vsel %vm97, %v1228, 0
  %v1248 = vsel %vm97, %v1230, 0
  %v1250 = vsel %vm97, %v1232, 0
  %v1252 = vsel %vm97, %v1234, 0
  %v1254 = vsel %vm97, %v1236, 0
  %v1256 = vsel %vm97, %v1238, 0
  %v1258 = vsel %vm97, %v1240, 0
  %1260 = vmatprep.subr.mxu0 0.0
  %1261 = vmatpush1.xpose.msra.mxu0 %v1244
  %1262 = vmatprep.subr.mxu0 0.0
  %1263 = vmatpush1.xpose.msra.mxu0 %v1246
  %1264 = vmatprep.subr.mxu0 0.0
  %1265 = vmatpush1.xpose.msra.mxu0 %v1248
  %1266 = vmatprep.subr.mxu0 0.0
  %1267 = vmatpush1.xpose.msra.mxu0 %v1250
  %1268 = vmatprep.subr.mxu0 0.0
  %1269 = vmatpush1.xpose.msra.mxu0 %v1252
  %1270 = vmatprep.subr.mxu0 0.0
  %1271 = vmatpush1.xpose.msra.mxu0 %v1254
  %1272 = vmatprep.subr.mxu0 0.0
  %1273 = vmatpush1.xpose.msra.mxu0 %v1256
  %1274 = vmatprep.subr.mxu0 0.0
  %1275 = vmatpush1.xpose.msra.mxu0 %v1258
  %1276 = vmatprep.subr.mxu0 0.0
  %1277 = vmatpush1.xpose.msra.mxu0 0.0
  %1278 = vmatprep.subr.mxu0 0.0
  %1279 = vmatpush1.xpose.msra.mxu0 0.0
  %1280 = vmatprep.subr.mxu0 0.0
  %1281 = vmatpush1.xpose.msra.mxu0 0.0
  %1282 = vmatprep.subr.mxu0 0.0
  %1283 = vmatpush1.xpose.msra.mxu0 0.0
  %1284 = vmatprep.subr.mxu0 0.0
  %1285 = vmatpush1.xpose.msra.mxu0 0.0
  %1286 = vmatprep.subr.mxu0 0.0
  %1287 = vmatpush1.xpose.msra.mxu0 0.0
  %1288 = vmatprep.subr.mxu0 0.0
  %1289 = vmatpush1.xpose.msra.mxu0 0.0
  %1290 = vmatprep.subr.mxu0 0.0
  %1291 = vmatpush1.xpose.msra.mxu0 0.0
  %1292 = vmatprep.subr.mxu0 0.0
  %1293 = vmatpush1.xpose.msra.mxu0 0.0
  %1294 = vmatprep.subr.mxu0 0.0
  %1295 = vmatpush1.xpose.msra.mxu0 0.0
  %1296 = vmatprep.subr.mxu0 0.0
  %1297 = vmatpush1.xpose.msra.mxu0 0.0
  %1298 = vmatprep.subr.mxu0 0.0
  %1299 = vmatpush1.xpose.msra.mxu0 0.0
  %1300 = vmatprep.subr.mxu0 0.0
  %1301 = vmatpush1.xpose.msra.mxu0 0.0
  %1302 = vmatprep.subr.mxu0 0.0
  %1303 = vmatpush1.xpose.msra.mxu0 0.0
  %1304 = vmatprep.subr.mxu0 0.0
  %1305 = vmatpush1.xpose.msra.mxu0 0.0
  %1306 = vmatprep.subr.mxu0 0.0
  %1307 = vmatpush1.xpose.msra.mxu0 0.0
  %1308 = vmatprep.subr.mxu0 0.0
  %1309 = vmatpush1.xpose.msra.mxu0 0.0
  %1310 = vmatprep.subr.mxu0 0.0
  %1311 = vmatpush1.xpose.msra.mxu0 0.0
  %1312 = vmatprep.subr.mxu0 0.0
  %1313 = vmatpush1.xpose.msra.mxu0 0.0
  %1314 = vmatprep.subr.mxu0 0.0
  %1315 = vmatpush1.xpose.msra.mxu0 0.0
  %1316 = vmatprep.subr.mxu0 0.0
  %1317 = vmatpush1.xpose.msra.mxu0 0.0
  %1318 = vmatprep.subr.mxu0 0.0
  %1319 = vmatpush1.xpose.msra.mxu0 0.0
  %1320 = vmatprep.subr.mxu0 0.0
  %1321 = vmatpush1.xpose.msra.mxu0 0.0
  %1322 = vmatprep.subr.mxu0 0.0
  %1323 = vmatpush1.xpose.msra.mxu0 0.0
  %1324 = vmatprep.mubr.f32.mxu0 0.0
  %1325 = vmatmul.mubr.f32.gmra.mrb[0].mxu0 %v1242
  %v1326 = vpop.f32.mrb[0].mxu0
  %v1327 = vadd.f32 0.0, %v1326
  %v1328 = vpop.f32.mrb[0].mxu0
  %1329 = vdwg.mxu0
  %v1330 = vmul.f32 %v536, 0.35355338
  %v1331 = vmul.f32 %v649, 0.35355338
  %v1332 = vmul.f32 %v762, 0.35355338
  %v1333 = vmul.f32 %v875, 0.35355338
  %v1334 = vmul.f32 %v988, 0.35355338
  %v1335 = vmul.f32 %v1101, 0.35355338
  %v1336 = vmul.f32 %v1214, 0.35355338
  %v1337 = vmul.f32 %v1327, 0.35355338
  %1346 = vrot.lane.b32.xlu0 %v1330, 120
  %v1347 = vpop.permute.xlu0 %1346
  %1348 = vrot.lane.b32.xlu0 %v1331, 120
  %v1349 = vpop.permute.xlu0 %1348
  %1350 = vrot.lane.b32.xlu0 %v1332, 120
  %v1351 = vpop.permute.xlu0 %1350
  %1352 = vrot.lane.b32.xlu0 %v1333, 120
  %v1353 = vpop.permute.xlu0 %1352
  %1354 = vrot.lane.b32.xlu0 %v1334, 120
  %v1355 = vpop.permute.xlu0 %1354
  %1356 = vrot.lane.b32.xlu0 %v1335, 120
  %v1357 = vpop.permute.xlu0 %1356
  %1358 = vrot.lane.b32.xlu0 %v1336, 120
  %v1359 = vpop.permute.xlu0 %1358
  %1360 = vrot.lane.b32.xlu0 %v1337, 120
  %v1361 = vpop.permute.xlu0 %1360
  %1370 = vrot.lane.b32.xlu0 %v1330, 112
  %v1371 = vpop.permute.xlu0 %1370
  %1372 = vrot.lane.b32.xlu0 %v1331, 112
  %v1373 = vpop.permute.xlu0 %1372
  %1374 = vrot.lane.b32.xlu0 %v1332, 112
  %v1375 = vpop.permute.xlu0 %1374
  %1376 = vrot.lane.b32.xlu0 %v1333, 112
  %v1377 = vpop.permute.xlu0 %1376
  %1378 = vrot.lane.b32.xlu0 %v1334, 112
  %v1379 = vpop.permute.xlu0 %1378
  %1380 = vrot.lane.b32.xlu0 %v1335, 112
  %v1381 = vpop.permute.xlu0 %1380
  %1382 = vrot.lane.b32.xlu0 %v1336, 112
  %v1383 = vpop.permute.xlu0 %1382
  %1384 = vrot.lane.b32.xlu0 %v1337, 112
  %v1385 = vpop.permute.xlu0 %1384
  %1394 = vrot.lane.b32.xlu0 %v1330, 104
  %v1395 = vpop.permute.xlu0 %1394
  %1396 = vrot.lane.b32.xlu0 %v1331, 104
  %v1397 = vpop.permute.xlu0 %1396
  %1398 = vrot.lane.b32.xlu0 %v1332, 104
  %v1399 = vpop.permute.xlu0 %1398
  %1400 = vrot.lane.b32.xlu0 %v1333, 104
  %v1401 = vpop.permute.xlu0 %1400
  %1402 = vrot.lane.b32.xlu0 %v1334, 104
  %v1403 = vpop.permute.xlu0 %1402
  %1404 = vrot.lane.b32.xlu0 %v1335, 104
  %v1405 = vpop.permute.xlu0 %1404
  %1406 = vrot.lane.b32.xlu0 %v1336, 104
  %v1407 = vpop.permute.xlu0 %1406
  %1408 = vrot.lane.b32.xlu0 %v1337, 104
  %v1409 = vpop.permute.xlu0 %1408
  %1418 = vrot.lane.b32.xlu0 %v1330, 96
  %v1419 = vpop.permute.xlu0 %1418
  %1420 = vrot.lane.b32.xlu0 %v1331, 96
  %v1421 = vpop.permute.xlu0 %1420
  %1422 = vrot.lane.b32.xlu0 %v1332, 96
  %v1423 = vpop.permute.xlu0 %1422
  %1424 = vrot.lane.b32.xlu0 %v1333, 96
  %v1425 = vpop.permute.xlu0 %1424
  %1426 = vrot.lane.b32.xlu0 %v1334, 96
  %v1427 = vpop.permute.xlu0 %1426
  %1428 = vrot.lane.b32.xlu0 %v1335, 96
  %v1429 = vpop.permute.xlu0 %1428
  %1430 = vrot.lane.b32.xlu0 %v1336, 96
  %v1431 = vpop.permute.xlu0 %1430
  %1432 = vrot.lane.b32.xlu0 %v1337, 96
  %v1433 = vpop.permute.xlu0 %1432
  %1442 = vrot.lane.b32.xlu0 %v1330, 88
  %v1443 = vpop.permute.xlu0 %1442
  %1444 = vrot.lane.b32.xlu0 %v1331, 88
  %v1445 = vpop.permute.xlu0 %1444
  %1446 = vrot.lane.b32.xlu0 %v1332, 88
  %v1447 = vpop.permute.xlu0 %1446
  %1448 = vrot.lane.b32.xlu0 %v1333, 88
  %v1449 = vpop.permute.xlu0 %1448
  %1450 = vrot.lane.b32.xlu0 %v1334, 88
  %v1451 = vpop.permute.xlu0 %1450
  %1452 = vrot.lane.b32.xlu0 %v1335, 88
  %v1453 = vpop.permute.xlu0 %1452
  %1454 = vrot.lane.b32.xlu0 %v1336, 88
  %v1455 = vpop.permute.xlu0 %1454
  %1456 = vrot.lane.b32.xlu0 %v1337, 88
  %v1457 = vpop.permute.xlu0 %1456
  %1466 = vrot.lane.b32.xlu0 %v1330, 80
  %v1467 = vpop.permute.xlu0 %1466
  %1468 = vrot.lane.b32.xlu0 %v1331, 80
  %v1469 = vpop.permute.xlu0 %1468
  %1470 = vrot.lane.b32.xlu0 %v1332, 80
  %v1471 = vpop.permute.xlu0 %1470
  %1472 = vrot.lane.b32.xlu0 %v1333, 80
  %v1473 = vpop.permute.xlu0 %1472
  %1474 = vrot.lane.b32.xlu0 %v1334, 80
  %v1475 = vpop.permute.xlu0 %1474
  %1476 = vrot.lane.b32.xlu0 %v1335, 80
  %v1477 = vpop.permute.xlu0 %1476
  %1478 = vrot.lane.b32.xlu0 %v1336, 80
  %v1479 = vpop.permute.xlu0 %1478
  %1480 = vrot.lane.b32.xlu0 %v1337, 80
  %v1481 = vpop.permute.xlu0 %1480
  %1490 = vrot.lane.b32.xlu0 %v1330, 72
  %v1491 = vpop.permute.xlu0 %1490
  %1492 = vrot.lane.b32.xlu0 %v1331, 72
  %v1493 = vpop.permute.xlu0 %1492
  %1494 = vrot.lane.b32.xlu0 %v1332, 72
  %v1495 = vpop.permute.xlu0 %1494
  %1496 = vrot.lane.b32.xlu0 %v1333, 72
  %v1497 = vpop.permute.xlu0 %1496
  %1498 = vrot.lane.b32.xlu0 %v1334, 72
  %v1499 = vpop.permute.xlu0 %1498
  %1500 = vrot.lane.b32.xlu0 %v1335, 72
  %v1501 = vpop.permute.xlu0 %1500
  %1502 = vrot.lane.b32.xlu0 %v1336, 72
  %v1503 = vpop.permute.xlu0 %1502
  %1504 = vrot.lane.b32.xlu0 %v1337, 72
  %v1505 = vpop.permute.xlu0 %1504
  %v1514 = vcombine.low %v1330, %v1371
  %v1515 = vcombine.high %v1330, %v1371
  %v1517 = vunpack.c.l.s4 1983009808
  %v1518 = vunpack.c.0.s8 %v1517
  %v1519 = vlaneseq
  %v1520 = vshrl.u32 %v1519, 7
  %v1521 = vsub.s32 %v1518, %v1520
  %v1522 = vrot.slane %v1514, %v1521
  %v1524 = vunpack.c.l.s4 1983009808
  %v1525 = vunpack.c.0.s8 %v1524
  %v1526 = vlaneseq
  %v1527 = vshrl.u32 %v1526, 7
  %v1528 = vsub.s32 %v1525, %v1527
  %v1529 = vrot.slane %v1515, %v1528
  %v1530 = vcombine.low %v1347, %v1395
  %v1531 = vcombine.high %v1347, %v1395
  %v1533 = vunpack.c.l.s4 1983009808
  %v1534 = vunpack.c.0.s8 %v1533
  %v1535 = vlaneseq
  %v1536 = vshrl.u32 %v1535, 7
  %v1537 = vsub.s32 %v1534, %v1536
  %v1538 = vrot.slane %v1530, %v1537
  %v1540 = vunpack.c.l.s4 1983009808
  %v1541 = vunpack.c.0.s8 %v1540
  %v1542 = vlaneseq
  %v1543 = vshrl.u32 %v1542, 7
  %v1544 = vsub.s32 %v1541, %v1543
  %v1545 = vrot.slane %v1531, %v1544
  %v1546 = vcombine.low %v1419, %v1467
  %v1547 = vcombine.high %v1419, %v1467
  %v1549 = vunpack.c.l.s4 1983009808
  %v1550 = vunpack.c.0.s8 %v1549
  %v1551 = vlaneseq
  %v1552 = vshrl.u32 %v1551, 7
  %v1553 = vsub.s32 %v1550, %v1552
  %v1554 = vrot.slane %v1546, %v1553
  %v1556 = vunpack.c.l.s4 1983009808
  %v1557 = vunpack.c.0.s8 %v1556
  %v1558 = vlaneseq
  %v1559 = vshrl.u32 %v1558, 7
  %v1560 = vsub.s32 %v1557, %v1559
  %v1561 = vrot.slane %v1547, %v1560
  %v1562 = vcombine.low %v1443, %v1491
  %v1563 = vcombine.high %v1443, %v1491
  %v1565 = vunpack.c.l.s4 1983009808
  %v1566 = vunpack.c.0.s8 %v1565
  %v1567 = vlaneseq
  %v1568 = vshrl.u32 %v1567, 7
  %v1569 = vsub.s32 %v1566, %v1568
  %v1570 = vrot.slane %v1562, %v1569
  %v1572 = vunpack.c.l.s4 1983009808
  %v1573 = vunpack.c.0.s8 %v1572
  %v1574 = vlaneseq
  %v1575 = vshrl.u32 %v1574, 7
  %v1576 = vsub.s32 %v1573, %v1575
  %v1577 = vrot.slane %v1563, %v1576
  %v1578 = vcombine.low %v1522, %v1538
  %v1579 = vcombine.high %v1522, %v1538
  %v1581 = vunpack.c.l.s4 1934713408
  %v1582 = vunpack.c.0.s8 %v1581
  %v1583 = vlaneseq
  %v1584 = vshrl.u32 %v1583, 7
  %v1585 = vsub.s32 %v1582, %v1584
  %v1586 = vrot.slane %v1578, %v1585
  %v1588 = vunpack.c.l.s4 1934713408
  %v1589 = vunpack.c.0.s8 %v1588
  %v1590 = vlaneseq
  %v1591 = vshrl.u32 %v1590, 7
  %v1592 = vsub.s32 %v1589, %v1591
  %v1593 = vrot.slane %v1579, %v1592
  %v1594 = vcombine.low %v1529, %v1545
  %v1595 = vcombine.high %v1529, %v1545
  %v1597 = vunpack.c.l.s4 1934713408
  %v1598 = vunpack.c.0.s8 %v1597
  %v1599 = vlaneseq
  %v1600 = vshrl.u32 %v1599, 7
  %v1601 = vsub.s32 %v1598, %v1600
  %v1602 = vrot.slane %v1594, %v1601
  %v1604 = vunpack.c.l.s4 1934713408
  %v1605 = vunpack.c.0.s8 %v1604
  %v1606 = vlaneseq
  %v1607 = vshrl.u32 %v1606, 7
  %v1608 = vsub.s32 %v1605, %v1607
  %v1609 = vrot.slane %v1595, %v1608
  %v1610 = vcombine.low %v1554, %v1570
  %v1611 = vcombine.high %v1554, %v1570
  %v1613 = vunpack.c.l.s4 1934713408
  %v1614 = vunpack.c.0.s8 %v1613
  %v1615 = vlaneseq
  %v1616 = vshrl.u32 %v1615, 7
  %v1617 = vsub.s32 %v1614, %v1616
  %v1618 = vrot.slane %v1610, %v1617
  %v1620 = vunpack.c.l.s4 1934713408
  %v1621 = vunpack.c.0.s8 %v1620
  %v1622 = vlaneseq
  %v1623 = vshrl.u32 %v1622, 7
  %v1624 = vsub.s32 %v1621, %v1623
  %v1625 = vrot.slane %v1611, %v1624
  %v1626 = vcombine.low %v1561, %v1577
  %v1627 = vcombine.high %v1561, %v1577
  %v1629 = vunpack.c.l.s4 1934713408
  %v1630 = vunpack.c.0.s8 %v1629
  %v1631 = vlaneseq
  %v1632 = vshrl.u32 %v1631, 7
  %v1633 = vsub.s32 %v1630, %v1632
  %v1634 = vrot.slane %v1626, %v1633
  %v1636 = vunpack.c.l.s4 1934713408
  %v1637 = vunpack.c.0.s8 %v1636
  %v1638 = vlaneseq
  %v1639 = vshrl.u32 %v1638, 7
  %v1640 = vsub.s32 %v1637, %v1639
  %v1641 = vrot.slane %v1627, %v1640
  %v1642 = vcombine.low %v1586, %v1618
  %v1643 = vcombine.high %v1586, %v1618
  %v1644 = vcombine.low %v1593, %v1625
  %v1645 = vcombine.high %v1593, %v1625
  %v1646 = vcombine.low %v1602, %v1634
  %v1647 = vcombine.high %v1602, %v1634
  %v1648 = vcombine.low %v1609, %v1641
  %v1649 = vcombine.high %v1609, %v1641
  %v1650 = vcombine.low %v1331, %v1373
  %v1651 = vcombine.high %v1331, %v1373
  %v1653 = vunpack.c.l.s4 1983009808
  %v1654 = vunpack.c.0.s8 %v1653
  %v1655 = vlaneseq
  %v1656 = vshrl.u32 %v1655, 7
  %v1657 = vsub.s32 %v1654, %v1656
  %v1658 = vrot.slane %v1650, %v1657
  %v1660 = vunpack.c.l.s4 1983009808
  %v1661 = vunpack.c.0.s8 %v1660
  %v1662 = vlaneseq
  %v1663 = vshrl.u32 %v1662, 7
  %v1664 = vsub.s32 %v1661, %v1663
  %v1665 = vrot.slane %v1651, %v1664
  %v1666 = vcombine.low %v1349, %v1397
  %v1667 = vcombine.high %v1349, %v1397
  %v1669 = vunpack.c.l.s4 1983009808
  %v1670 = vunpack.c.0.s8 %v1669
  %v1671 = vlaneseq
  %v1672 = vshrl.u32 %v1671, 7
  %v1673 = vsub.s32 %v1670, %v1672
  %v1674 = vrot.slane %v1666, %v1673
  %v1676 = vunpack.c.l.s4 1983009808
  %v1677 = vunpack.c.0.s8 %v1676
  %v1678 = vlaneseq
  %v1679 = vshrl.u32 %v1678, 7
  %v1680 = vsub.s32 %v1677, %v1679
  %v1681 = vrot.slane %v1667, %v1680
  %v1682 = vcombine.low %v1421, %v1469
  %v1683 = vcombine.high %v1421, %v1469
  %v1685 = vunpack.c.l.s4 1983009808
  %v1686 = vunpack.c.0.s8 %v1685
  %v1687 = vlaneseq
  %v1688 = vshrl.u32 %v1687, 7
  %v1689 = vsub.s32 %v1686, %v1688
  %v1690 = vrot.slane %v1682, %v1689
  %v1692 = vunpack.c.l.s4 1983009808
  %v1693 = vunpack.c.0.s8 %v1692
  %v1694 = vlaneseq
  %v1695 = vshrl.u32 %v1694, 7
  %v1696 = vsub.s32 %v1693, %v1695
  %v1697 = vrot.slane %v1683, %v1696
  %v1698 = vcombine.low %v1445, %v1493
  %v1699 = vcombine.high %v1445, %v1493
  %v1701 = vunpack.c.l.s4 1983009808
  %v1702 = vunpack.c.0.s8 %v1701
  %v1703 = vlaneseq
  %v1704 = vshrl.u32 %v1703, 7
  %v1705 = vsub.s32 %v1702, %v1704
  %v1706 = vrot.slane %v1698, %v1705
  %v1708 = vunpack.c.l.s4 1983009808
  %v1709 = vunpack.c.0.s8 %v1708
  %v1710 = vlaneseq
  %v1711 = vshrl.u32 %v1710, 7
  %v1712 = vsub.s32 %v1709, %v1711
  %v1713 = vrot.slane %v1699, %v1712
  %v1714 = vcombine.low %v1658, %v1674
  %v1715 = vcombine.high %v1658, %v1674
  %v1717 = vunpack.c.l.s4 1934713408
  %v1718 = vunpack.c.0.s8 %v1717
  %v1719 = vlaneseq
  %v1720 = vshrl.u32 %v1719, 7
  %v1721 = vsub.s32 %v1718, %v1720
  %v1722 = vrot.slane %v1714, %v1721
  %v1724 = vunpack.c.l.s4 1934713408
  %v1725 = vunpack.c.0.s8 %v1724
  %v1726 = vlaneseq
  %v1727 = vshrl.u32 %v1726, 7
  %v1728 = vsub.s32 %v1725, %v1727
  %v1729 = vrot.slane %v1715, %v1728
  %v1730 = vcombine.low %v1665, %v1681
  %v1731 = vcombine.high %v1665, %v1681
  %v1733 = vunpack.c.l.s4 1934713408
  %v1734 = vunpack.c.0.s8 %v1733
  %v1735 = vlaneseq
  %v1736 = vshrl.u32 %v1735, 7
  %v1737 = vsub.s32 %v1734, %v1736
  %v1738 = vrot.slane %v1730, %v1737
  %v1740 = vunpack.c.l.s4 1934713408
  %v1741 = vunpack.c.0.s8 %v1740
  %v1742 = vlaneseq
  %v1743 = vshrl.u32 %v1742, 7
  %v1744 = vsub.s32 %v1741, %v1743
  %v1745 = vrot.slane %v1731, %v1744
  %v1746 = vcombine.low %v1690, %v1706
  %v1747 = vcombine.high %v1690, %v1706
  %v1749 = vunpack.c.l.s4 1934713408
  %v1750 = vunpack.c.0.s8 %v1749
  %v1751 = vlaneseq
  %v1752 = vshrl.u32 %v1751, 7
  %v1753 = vsub.s32 %v1750, %v1752
  %v1754 = vrot.slane %v1746, %v1753
  %v1756 = vunpack.c.l.s4 1934713408
  %v1757 = vunpack.c.0.s8 %v1756
  %v1758 = vlaneseq
  %v1759 = vshrl.u32 %v1758, 7
  %v1760 = vsub.s32 %v1757, %v1759
  %v1761 = vrot.slane %v1747, %v1760
  %v1762 = vcombine.low %v1697, %v1713
  %v1763 = vcombine.high %v1697, %v1713
  %v1765 = vunpack.c.l.s4 1934713408
  %v1766 = vunpack.c.0.s8 %v1765
  %v1767 = vlaneseq
  %v1768 = vshrl.u32 %v1767, 7
  %v1769 = vsub.s32 %v1766, %v1768
  %v1770 = vrot.slane %v1762, %v1769
  %v1772 = vunpack.c.l.s4 1934713408
  %v1773 = vunpack.c.0.s8 %v1772
  %v1774 = vlaneseq
  %v1775 = vshrl.u32 %v1774, 7
  %v1776 = vsub.s32 %v1773, %v1775
  %v1777 = vrot.slane %v1763, %v1776
  %v1778 = vcombine.low %v1722, %v1754
  %v1779 = vcombine.high %v1722, %v1754
  %v1780 = vcombine.low %v1729, %v1761
  %v1781 = vcombine.high %v1729, %v1761
  %v1782 = vcombine.low %v1738, %v1770
  %v1783 = vcombine.high %v1738, %v1770
  %v1784 = vcombine.low %v1745, %v1777
  %v1785 = vcombine.high %v1745, %v1777
  %v1786 = vcombine.low %v1332, %v1375
  %v1787 = vcombine.high %v1332, %v1375
  %v1789 = vunpack.c.l.s4 1983009808
  %v1790 = vunpack.c.0.s8 %v1789
  %v1791 = vlaneseq
  %v1792 = vshrl.u32 %v1791, 7
  %v1793 = vsub.s32 %v1790, %v1792
  %v1794 = vrot.slane %v1786, %v1793
  %v1796 = vunpack.c.l.s4 1983009808
  %v1797 = vunpack.c.0.s8 %v1796
  %v1798 = vlaneseq
  %v1799 = vshrl.u32 %v1798, 7
  %v1800 = vsub.s32 %v1797, %v1799
  %v1801 = vrot.slane %v1787, %v1800
  %v1802 = vcombine.low %v1351, %v1399
  %v1803 = vcombine.high %v1351, %v1399
  %v1805 = vunpack.c.l.s4 1983009808
  %v1806 = vunpack.c.0.s8 %v1805
  %v1807 = vlaneseq
  %v1808 = vshrl.u32 %v1807, 7
  %v1809 = vsub.s32 %v1806, %v1808
  %v1810 = vrot.slane %v1802, %v1809
  %v1812 = vunpack.c.l.s4 1983009808
  %v1813 = vunpack.c.0.s8 %v1812
  %v1814 = vlaneseq
  %v1815 = vshrl.u32 %v1814, 7
  %v1816 = vsub.s32 %v1813, %v1815
  %v1817 = vrot.slane %v1803, %v1816
  %v1818 = vcombine.low %v1423, %v1471
  %v1819 = vcombine.high %v1423, %v1471
  %v1821 = vunpack.c.l.s4 1983009808
  %v1822 = vunpack.c.0.s8 %v1821
  %v1823 = vlaneseq
  %v1824 = vshrl.u32 %v1823, 7
  %v1825 = vsub.s32 %v1822, %v1824
  %v1826 = vrot.slane %v1818, %v1825
  %v1828 = vunpack.c.l.s4 1983009808
  %v1829 = vunpack.c.0.s8 %v1828
  %v1830 = vlaneseq
  %v1831 = vshrl.u32 %v1830, 7
  %v1832 = vsub.s32 %v1829, %v1831
  %v1833 = vrot.slane %v1819, %v1832
  %v1834 = vcombine.low %v1447, %v1495
  %v1835 = vcombine.high %v1447, %v1495
  %v1837 = vunpack.c.l.s4 1983009808
  %v1838 = vunpack.c.0.s8 %v1837
  %v1839 = vlaneseq
  %v1840 = vshrl.u32 %v1839, 7
  %v1841 = vsub.s32 %v1838, %v1840
  %v1842 = vrot.slane %v1834, %v1841
  %v1844 = vunpack.c.l.s4 1983009808
  %v1845 = vunpack.c.0.s8 %v1844
  %v1846 = vlaneseq
  %v1847 = vshrl.u32 %v1846, 7
  %v1848 = vsub.s32 %v1845, %v1847
  %v1849 = vrot.slane %v1835, %v1848
  %v1850 = vcombine.low %v1794, %v1810
  %v1851 = vcombine.high %v1794, %v1810
  %v1853 = vunpack.c.l.s4 1934713408
  %v1854 = vunpack.c.0.s8 %v1853
  %v1855 = vlaneseq
  %v1856 = vshrl.u32 %v1855, 7
  %v1857 = vsub.s32 %v1854, %v1856
  %v1858 = vrot.slane %v1850, %v1857
  %v1860 = vunpack.c.l.s4 1934713408
  %v1861 = vunpack.c.0.s8 %v1860
  %v1862 = vlaneseq
  %v1863 = vshrl.u32 %v1862, 7
  %v1864 = vsub.s32 %v1861, %v1863
  %v1865 = vrot.slane %v1851, %v1864
  %v1866 = vcombine.low %v1801, %v1817
  %v1867 = vcombine.high %v1801, %v1817
  %v1869 = vunpack.c.l.s4 1934713408
  %v1870 = vunpack.c.0.s8 %v1869
  %v1871 = vlaneseq
  %v1872 = vshrl.u32 %v1871, 7
  %v1873 = vsub.s32 %v1870, %v1872
  %v1874 = vrot.slane %v1866, %v1873
  %v1876 = vunpack.c.l.s4 1934713408
  %v1877 = vunpack.c.0.s8 %v1876
  %v1878 = vlaneseq
  %v1879 = vshrl.u32 %v1878, 7
  %v1880 = vsub.s32 %v1877, %v1879
  %v1881 = vrot.slane %v1867, %v1880
  %v1882 = vcombine.low %v1826, %v1842
  %v1883 = vcombine.high %v1826, %v1842
  %v1885 = vunpack.c.l.s4 1934713408
  %v1886 = vunpack.c.0.s8 %v1885
  %v1887 = vlaneseq
  %v1888 = vshrl.u32 %v1887, 7
  %v1889 = vsub.s32 %v1886, %v1888
  %v1890 = vrot.slane %v1882, %v1889
  %v1892 = vunpack.c.l.s4 1934713408
  %v1893 = vunpack.c.0.s8 %v1892
  %v1894 = vlaneseq
  %v1895 = vshrl.u32 %v1894, 7
  %v1896 = vsub.s32 %v1893, %v1895
  %v1897 = vrot.slane %v1883, %v1896
  %v1898 = vcombine.low %v1833, %v1849
  %v1899 = vcombine.high %v1833, %v1849
  %v1901 = vunpack.c.l.s4 1934713408
  %v1902 = vunpack.c.0.s8 %v1901
  %v1903 = vlaneseq
  %v1904 = vshrl.u32 %v1903, 7
  %v1905 = vsub.s32 %v1902, %v1904
  %v1906 = vrot.slane %v1898, %v1905
  %v1908 = vunpack.c.l.s4 1934713408
  %v1909 = vunpack.c.0.s8 %v1908
  %v1910 = vlaneseq
  %v1911 = vshrl.u32 %v1910, 7
  %v1912 = vsub.s32 %v1909, %v1911
  %v1913 = vrot.slane %v1899, %v1912
  %v1914 = vcombine.low %v1858, %v1890
  %v1915 = vcombine.high %v1858, %v1890
  %v1916 = vcombine.low %v1865, %v1897
  %v1917 = vcombine.high %v1865, %v1897
  %v1918 = vcombine.low %v1874, %v1906
  %v1919 = vcombine.high %v1874, %v1906
  %v1920 = vcombine.low %v1881, %v1913
  %v1921 = vcombine.high %v1881, %v1913
  %v1922 = vcombine.low %v1333, %v1377
  %v1923 = vcombine.high %v1333, %v1377
  %v1925 = vunpack.c.l.s4 1983009808
  %v1926 = vunpack.c.0.s8 %v1925
  %v1927 = vlaneseq
  %v1928 = vshrl.u32 %v1927, 7
  %v1929 = vsub.s32 %v1926, %v1928
  %v1930 = vrot.slane %v1922, %v1929
  %v1932 = vunpack.c.l.s4 1983009808
  %v1933 = vunpack.c.0.s8 %v1932
  %v1934 = vlaneseq
  %v1935 = vshrl.u32 %v1934, 7
  %v1936 = vsub.s32 %v1933, %v1935
  %v1937 = vrot.slane %v1923, %v1936
  %v1938 = vcombine.low %v1353, %v1401
  %v1939 = vcombine.high %v1353, %v1401
  %v1941 = vunpack.c.l.s4 1983009808
  %v1942 = vunpack.c.0.s8 %v1941
  %v1943 = vlaneseq
  %v1944 = vshrl.u32 %v1943, 7
  %v1945 = vsub.s32 %v1942, %v1944
  %v1946 = vrot.slane %v1938, %v1945
  %v1948 = vunpack.c.l.s4 1983009808
  %v1949 = vunpack.c.0.s8 %v1948
  %v1950 = vlaneseq
  %v1951 = vshrl.u32 %v1950, 7
  %v1952 = vsub.s32 %v1949, %v1951
  %v1953 = vrot.slane %v1939, %v1952
  %v1954 = vcombine.low %v1425, %v1473
  %v1955 = vcombine.high %v1425, %v1473
  %v1957 = vunpack.c.l.s4 1983009808
  %v1958 = vunpack.c.0.s8 %v1957
  %v1959 = vlaneseq
  %v1960 = vshrl.u32 %v1959, 7
  %v1961 = vsub.s32 %v1958, %v1960
  %v1962 = vrot.slane %v1954, %v1961
  %v1964 = vunpack.c.l.s4 1983009808
  %v1965 = vunpack.c.0.s8 %v1964
  %v1966 = vlaneseq
  %v1967 = vshrl.u32 %v1966, 7
  %v1968 = vsub.s32 %v1965, %v1967
  %v1969 = vrot.slane %v1955, %v1968
  %v1970 = vcombine.low %v1449, %v1497
  %v1971 = vcombine.high %v1449, %v1497
  %v1973 = vunpack.c.l.s4 1983009808
  %v1974 = vunpack.c.0.s8 %v1973
  %v1975 = vlaneseq
  %v1976 = vshrl.u32 %v1975, 7
  %v1977 = vsub.s32 %v1974, %v1976
  %v1978 = vrot.slane %v1970, %v1977
  %v1980 = vunpack.c.l.s4 1983009808
  %v1981 = vunpack.c.0.s8 %v1980
  %v1982 = vlaneseq
  %v1983 = vshrl.u32 %v1982, 7
  %v1984 = vsub.s32 %v1981, %v1983
  %v1985 = vrot.slane %v1971, %v1984
  %v1986 = vcombine.low %v1930, %v1946
  %v1987 = vcombine.high %v1930, %v1946
  %v1989 = vunpack.c.l.s4 1934713408
  %v1990 = vunpack.c.0.s8 %v1989
  %v1991 = vlaneseq
  %v1992 = vshrl.u32 %v1991, 7
  %v1993 = vsub.s32 %v1990, %v1992
  %v1994 = vrot.slane %v1986, %v1993
  %v1996 = vunpack.c.l.s4 1934713408
  %v1997 = vunpack.c.0.s8 %v1996
  %v1998 = vlaneseq
  %v1999 = vshrl.u32 %v1998, 7
  %v2000 = vsub.s32 %v1997, %v1999
  %v2001 = vrot.slane %v1987, %v2000
  %v2002 = vcombine.low %v1937, %v1953
  %v2003 = vcombine.high %v1937, %v1953
  %v2005 = vunpack.c.l.s4 1934713408
  %v2006 = vunpack.c.0.s8 %v2005
  %v2007 = vlaneseq
  %v2008 = vshrl.u32 %v2007, 7
  %v2009 = vsub.s32 %v2006, %v2008
  %v2010 = vrot.slane %v2002, %v2009
  %v2012 = vunpack.c.l.s4 1934713408
  %v2013 = vunpack.c.0.s8 %v2012
  %v2014 = vlaneseq
  %v2015 = vshrl.u32 %v2014, 7
  %v2016 = vsub.s32 %v2013, %v2015
  %v2017 = vrot.slane %v2003, %v2016
  %v2018 = vcombine.low %v1962, %v1978
  %v2019 = vcombine.high %v1962, %v1978
  %v2021 = vunpack.c.l.s4 1934713408
  %v2022 = vunpack.c.0.s8 %v2021
  %v2023 = vlaneseq
  %v2024 = vshrl.u32 %v2023, 7
  %v2025 = vsub.s32 %v2022, %v2024
  %v2026 = vrot.slane %v2018, %v2025
  %v2028 = vunpack.c.l.s4 1934713408
  %v2029 = vunpack.c.0.s8 %v2028
  %v2030 = vlaneseq
  %v2031 = vshrl.u32 %v2030, 7
  %v2032 = vsub.s32 %v2029, %v2031
  %v2033 = vrot.slane %v2019, %v2032
  %v2034 = vcombine.low %v1969, %v1985
  %v2035 = vcombine.high %v1969, %v1985
  %v2037 = vunpack.c.l.s4 1934713408
  %v2038 = vunpack.c.0.s8 %v2037
  %v2039 = vlaneseq
  %v2040 = vshrl.u32 %v2039, 7
  %v2041 = vsub.s32 %v2038, %v2040
  %v2042 = vrot.slane %v2034, %v2041
  %v2044 = vunpack.c.l.s4 1934713408
  %v2045 = vunpack.c.0.s8 %v2044
  %v2046 = vlaneseq
  %v2047 = vshrl.u32 %v2046, 7
  %v2048 = vsub.s32 %v2045, %v2047
  %v2049 = vrot.slane %v2035, %v2048
  %v2050 = vcombine.low %v1994, %v2026
  %v2051 = vcombine.high %v1994, %v2026
  %v2052 = vcombine.low %v2001, %v2033
  %v2053 = vcombine.high %v2001, %v2033
  %v2054 = vcombine.low %v2010, %v2042
  %v2055 = vcombine.high %v2010, %v2042
  %v2056 = vcombine.low %v2017, %v2049
  %v2057 = vcombine.high %v2017, %v2049
  %v2058 = vcombine.low %v1334, %v1379
  %v2059 = vcombine.high %v1334, %v1379
  %v2061 = vunpack.c.l.s4 1983009808
  %v2062 = vunpack.c.0.s8 %v2061
  %v2063 = vlaneseq
  %v2064 = vshrl.u32 %v2063, 7
  %v2065 = vsub.s32 %v2062, %v2064
  %v2066 = vrot.slane %v2058, %v2065
  %v2068 = vunpack.c.l.s4 1983009808
  %v2069 = vunpack.c.0.s8 %v2068
  %v2070 = vlaneseq
  %v2071 = vshrl.u32 %v2070, 7
  %v2072 = vsub.s32 %v2069, %v2071
  %v2073 = vrot.slane %v2059, %v2072
  %v2074 = vcombine.low %v1355, %v1403
  %v2075 = vcombine.high %v1355, %v1403
  %v2077 = vunpack.c.l.s4 1983009808
  %v2078 = vunpack.c.0.s8 %v2077
  %v2079 = vlaneseq
  %v2080 = vshrl.u32 %v2079, 7
  %v2081 = vsub.s32 %v2078, %v2080
  %v2082 = vrot.slane %v2074, %v2081
  %v2084 = vunpack.c.l.s4 1983009808
  %v2085 = vunpack.c.0.s8 %v2084
  %v2086 = vlaneseq
  %v2087 = vshrl.u32 %v2086, 7
  %v2088 = vsub.s32 %v2085, %v2087
  %v2089 = vrot.slane %v2075, %v2088
  %v2090 = vcombine.low %v1427, %v1475
  %v2091 = vcombine.high %v1427, %v1475
  %v2093 = vunpack.c.l.s4 1983009808
  %v2094 = vunpack.c.0.s8 %v2093
  %v2095 = vlaneseq
  %v2096 = vshrl.u32 %v2095, 7
  %v2097 = vsub.s32 %v2094, %v2096
  %v2098 = vrot.slane %v2090, %v2097
  %v2100 = vunpack.c.l.s4 1983009808
  %v2101 = vunpack.c.0.s8 %v2100
  %v2102 = vlaneseq
  %v2103 = vshrl.u32 %v2102, 7
  %v2104 = vsub.s32 %v2101, %v2103
  %v2105 = vrot.slane %v2091, %v2104
  %v2106 = vcombine.low %v1451, %v1499
  %v2107 = vcombine.high %v1451, %v1499
  %v2109 = vunpack.c.l.s4 1983009808
  %v2110 = vunpack.c.0.s8 %v2109
  %v2111 = vlaneseq
  %v2112 = vshrl.u32 %v2111, 7
  %v2113 = vsub.s32 %v2110, %v2112
  %v2114 = vrot.slane %v2106, %v2113
  %v2116 = vunpack.c.l.s4 1983009808
  %v2117 = vunpack.c.0.s8 %v2116
  %v2118 = vlaneseq
  %v2119 = vshrl.u32 %v2118, 7
  %v2120 = vsub.s32 %v2117, %v2119
  %v2121 = vrot.slane %v2107, %v2120
  %v2122 = vcombine.low %v2066, %v2082
  %v2123 = vcombine.high %v2066, %v2082
  %v2125 = vunpack.c.l.s4 1934713408
  %v2126 = vunpack.c.0.s8 %v2125
  %v2127 = vlaneseq
  %v2128 = vshrl.u32 %v2127, 7
  %v2129 = vsub.s32 %v2126, %v2128
  %v2130 = vrot.slane %v2122, %v2129
  %v2132 = vunpack.c.l.s4 1934713408
  %v2133 = vunpack.c.0.s8 %v2132
  %v2134 = vlaneseq
  %v2135 = vshrl.u32 %v2134, 7
  %v2136 = vsub.s32 %v2133, %v2135
  %v2137 = vrot.slane %v2123, %v2136
  %v2138 = vcombine.low %v2073, %v2089
  %v2139 = vcombine.high %v2073, %v2089
  %v2141 = vunpack.c.l.s4 1934713408
  %v2142 = vunpack.c.0.s8 %v2141
  %v2143 = vlaneseq
  %v2144 = vshrl.u32 %v2143, 7
  %v2145 = vsub.s32 %v2142, %v2144
  %v2146 = vrot.slane %v2138, %v2145
  %v2148 = vunpack.c.l.s4 1934713408
  %v2149 = vunpack.c.0.s8 %v2148
  %v2150 = vlaneseq
  %v2151 = vshrl.u32 %v2150, 7
  %v2152 = vsub.s32 %v2149, %v2151
  %v2153 = vrot.slane %v2139, %v2152
  %v2154 = vcombine.low %v2098, %v2114
  %v2155 = vcombine.high %v2098, %v2114
  %v2157 = vunpack.c.l.s4 1934713408
  %v2158 = vunpack.c.0.s8 %v2157
  %v2159 = vlaneseq
  %v2160 = vshrl.u32 %v2159, 7
  %v2161 = vsub.s32 %v2158, %v2160
  %v2162 = vrot.slane %v2154, %v2161
  %v2164 = vunpack.c.l.s4 1934713408
  %v2165 = vunpack.c.0.s8 %v2164
  %v2166 = vlaneseq
  %v2167 = vshrl.u32 %v2166, 7
  %v2168 = vsub.s32 %v2165, %v2167
  %v2169 = vrot.slane %v2155, %v2168
  %v2170 = vcombine.low %v2105, %v2121
  %v2171 = vcombine.high %v2105, %v2121
  %v2173 = vunpack.c.l.s4 1934713408
  %v2174 = vunpack.c.0.s8 %v2173
  %v2175 = vlaneseq
  %v2176 = vshrl.u32 %v2175, 7
  %v2177 = vsub.s32 %v2174, %v2176
  %v2178 = vrot.slane %v2170, %v2177
  %v2180 = vunpack.c.l.s4 1934713408
  %v2181 = vunpack.c.0.s8 %v2180
  %v2182 = vlaneseq
  %v2183 = vshrl.u32 %v2182, 7
  %v2184 = vsub.s32 %v2181, %v2183
  %v2185 = vrot.slane %v2171, %v2184
  %v2186 = vcombine.low %v2130, %v2162
  %v2187 = vcombine.high %v2130, %v2162
  %v2188 = vcombine.low %v2137, %v2169
  %v2189 = vcombine.high %v2137, %v2169
  %v2190 = vcombine.low %v2146, %v2178
  %v2191 = vcombine.high %v2146, %v2178
  %v2192 = vcombine.low %v2153, %v2185
  %v2193 = vcombine.high %v2153, %v2185
  %v2194 = vcombine.low %v1335, %v1381
  %v2195 = vcombine.high %v1335, %v1381
  %v2197 = vunpack.c.l.s4 1983009808
  %v2198 = vunpack.c.0.s8 %v2197
  %v2199 = vlaneseq
  %v2200 = vshrl.u32 %v2199, 7
  %v2201 = vsub.s32 %v2198, %v2200
  %v2202 = vrot.slane %v2194, %v2201
  %v2204 = vunpack.c.l.s4 1983009808
  %v2205 = vunpack.c.0.s8 %v2204
  %v2206 = vlaneseq
  %v2207 = vshrl.u32 %v2206, 7
  %v2208 = vsub.s32 %v2205, %v2207
  %v2209 = vrot.slane %v2195, %v2208
  %v2210 = vcombine.low %v1357, %v1405
  %v2211 = vcombine.high %v1357, %v1405
  %v2213 = vunpack.c.l.s4 1983009808
  %v2214 = vunpack.c.0.s8 %v2213
  %v2215 = vlaneseq
  %v2216 = vshrl.u32 %v2215, 7
  %v2217 = vsub.s32 %v2214, %v2216
  %v2218 = vrot.slane %v2210, %v2217
  %v2220 = vunpack.c.l.s4 1983009808
  %v2221 = vunpack.c.0.s8 %v2220
  %v2222 = vlaneseq
  %v2223 = vshrl.u32 %v2222, 7
  %v2224 = vsub.s32 %v2221, %v2223
  %v2225 = vrot.slane %v2211, %v2224
  %v2226 = vcombine.low %v1429, %v1477
  %v2227 = vcombine.high %v1429, %v1477
  %v2229 = vunpack.c.l.s4 1983009808
  %v2230 = vunpack.c.0.s8 %v2229
  %v2231 = vlaneseq
  %v2232 = vshrl.u32 %v2231, 7
  %v2233 = vsub.s32 %v2230, %v2232
  %v2234 = vrot.slane %v2226, %v2233
  %v2236 = vunpack.c.l.s4 1983009808
  %v2237 = vunpack.c.0.s8 %v2236
  %v2238 = vlaneseq
  %v2239 = vshrl.u32 %v2238, 7
  %v2240 = vsub.s32 %v2237, %v2239
  %v2241 = vrot.slane %v2227, %v2240
  %v2242 = vcombine.low %v1453, %v1501
  %v2243 = vcombine.high %v1453, %v1501
  %v2245 = vunpack.c.l.s4 1983009808
  %v2246 = vunpack.c.0.s8 %v2245
  %v2247 = vlaneseq
  %v2248 = vshrl.u32 %v2247, 7
  %v2249 = vsub.s32 %v2246, %v2248
  %v2250 = vrot.slane %v2242, %v2249
  %v2252 = vunpack.c.l.s4 1983009808
  %v2253 = vunpack.c.0.s8 %v2252
  %v2254 = vlaneseq
  %v2255 = vshrl.u32 %v2254, 7
  %v2256 = vsub.s32 %v2253, %v2255
  %v2257 = vrot.slane %v2243, %v2256
  %v2258 = vcombine.low %v2202, %v2218
  %v2259 = vcombine.high %v2202, %v2218
  %v2261 = vunpack.c.l.s4 1934713408
  %v2262 = vunpack.c.0.s8 %v2261
  %v2263 = vlaneseq
  %v2264 = vshrl.u32 %v2263, 7
  %v2265 = vsub.s32 %v2262, %v2264
  %v2266 = vrot.slane %v2258, %v2265
  %v2268 = vunpack.c.l.s4 1934713408
  %v2269 = vunpack.c.0.s8 %v2268
  %v2270 = vlaneseq
  %v2271 = vshrl.u32 %v2270, 7
  %v2272 = vsub.s32 %v2269, %v2271
  %v2273 = vrot.slane %v2259, %v2272
  %v2274 = vcombine.low %v2209, %v2225
  %v2275 = vcombine.high %v2209, %v2225
  %v2277 = vunpack.c.l.s4 1934713408
  %v2278 = vunpack.c.0.s8 %v2277
  %v2279 = vlaneseq
  %v2280 = vshrl.u32 %v2279, 7
  %v2281 = vsub.s32 %v2278, %v2280
  %v2282 = vrot.slane %v2274, %v2281
  %v2284 = vunpack.c.l.s4 1934713408
  %v2285 = vunpack.c.0.s8 %v2284
  %v2286 = vlaneseq
  %v2287 = vshrl.u32 %v2286, 7
  %v2288 = vsub.s32 %v2285, %v2287
  %v2289 = vrot.slane %v2275, %v2288
  %v2290 = vcombine.low %v2234, %v2250
  %v2291 = vcombine.high %v2234, %v2250
  %v2293 = vunpack.c.l.s4 1934713408
  %v2294 = vunpack.c.0.s8 %v2293
  %v2295 = vlaneseq
  %v2296 = vshrl.u32 %v2295, 7
  %v2297 = vsub.s32 %v2294, %v2296
  %v2298 = vrot.slane %v2290, %v2297
  %v2300 = vunpack.c.l.s4 1934713408
  %v2301 = vunpack.c.0.s8 %v2300
  %v2302 = vlaneseq
  %v2303 = vshrl.u32 %v2302, 7
  %v2304 = vsub.s32 %v2301, %v2303
  %v2305 = vrot.slane %v2291, %v2304
  %v2306 = vcombine.low %v2241, %v2257
  %v2307 = vcombine.high %v2241, %v2257
  %v2309 = vunpack.c.l.s4 1934713408
  %v2310 = vunpack.c.0.s8 %v2309
  %v2311 = vlaneseq
  %v2312 = vshrl.u32 %v2311, 7
  %v2313 = vsub.s32 %v2310, %v2312
  %v2314 = vrot.slane %v2306, %v2313
  %v2316 = vunpack.c.l.s4 1934713408
  %v2317 = vunpack.c.0.s8 %v2316
  %v2318 = vlaneseq
  %v2319 = vshrl.u32 %v2318, 7
  %v2320 = vsub.s32 %v2317, %v2319
  %v2321 = vrot.slane %v2307, %v2320
  %v2322 = vcombine.low %v2266, %v2298
  %v2323 = vcombine.high %v2266, %v2298
  %v2324 = vcombine.low %v2273, %v2305
  %v2325 = vcombine.high %v2273, %v2305
  %v2326 = vcombine.low %v2282, %v2314
  %v2327 = vcombine.high %v2282, %v2314
  %v2328 = vcombine.low %v2289, %v2321
  %v2329 = vcombine.high %v2289, %v2321
  %v2330 = vcombine.low %v1336, %v1383
  %v2331 = vcombine.high %v1336, %v1383
  %v2333 = vunpack.c.l.s4 1983009808
  %v2334 = vunpack.c.0.s8 %v2333
  %v2335 = vlaneseq
  %v2336 = vshrl.u32 %v2335, 7
  %v2337 = vsub.s32 %v2334, %v2336
  %v2338 = vrot.slane %v2330, %v2337
  %v2340 = vunpack.c.l.s4 1983009808
  %v2341 = vunpack.c.0.s8 %v2340
  %v2342 = vlaneseq
  %v2343 = vshrl.u32 %v2342, 7
  %v2344 = vsub.s32 %v2341, %v2343
  %v2345 = vrot.slane %v2331, %v2344
  %v2346 = vcombine.low %v1359, %v1407
  %v2347 = vcombine.high %v1359, %v1407
  %v2349 = vunpack.c.l.s4 1983009808
  %v2350 = vunpack.c.0.s8 %v2349
  %v2351 = vlaneseq
  %v2352 = vshrl.u32 %v2351, 7
  %v2353 = vsub.s32 %v2350, %v2352
  %v2354 = vrot.slane %v2346, %v2353
  %v2356 = vunpack.c.l.s4 1983009808
  %v2357 = vunpack.c.0.s8 %v2356
  %v2358 = vlaneseq
  %v2359 = vshrl.u32 %v2358, 7
  %v2360 = vsub.s32 %v2357, %v2359
  %v2361 = vrot.slane %v2347, %v2360
  %v2362 = vcombine.low %v1431, %v1479
  %v2363 = vcombine.high %v1431, %v1479
  %v2365 = vunpack.c.l.s4 1983009808
  %v2366 = vunpack.c.0.s8 %v2365
  %v2367 = vlaneseq
  %v2368 = vshrl.u32 %v2367, 7
  %v2369 = vsub.s32 %v2366, %v2368
  %v2370 = vrot.slane %v2362, %v2369
  %v2372 = vunpack.c.l.s4 1983009808
  %v2373 = vunpack.c.0.s8 %v2372
  %v2374 = vlaneseq
  %v2375 = vshrl.u32 %v2374, 7
  %v2376 = vsub.s32 %v2373, %v2375
  %v2377 = vrot.slane %v2363, %v2376
  %v2378 = vcombine.low %v1455, %v1503
  %v2379 = vcombine.high %v1455, %v1503
  %v2381 = vunpack.c.l.s4 1983009808
  %v2382 = vunpack.c.0.s8 %v2381
  %v2383 = vlaneseq
  %v2384 = vshrl.u32 %v2383, 7
  %v2385 = vsub.s32 %v2382, %v2384
  %v2386 = vrot.slane %v2378, %v2385
  %v2388 = vunpack.c.l.s4 1983009808
  %v2389 = vunpack.c.0.s8 %v2388
  %v2390 = vlaneseq
  %v2391 = vshrl.u32 %v2390, 7
  %v2392 = vsub.s32 %v2389, %v2391
  %v2393 = vrot.slane %v2379, %v2392
  %v2394 = vcombine.low %v2338, %v2354
  %v2395 = vcombine.high %v2338, %v2354
  %v2397 = vunpack.c.l.s4 1934713408
  %v2398 = vunpack.c.0.s8 %v2397
  %v2399 = vlaneseq
  %v2400 = vshrl.u32 %v2399, 7
  %v2401 = vsub.s32 %v2398, %v2400
  %v2402 = vrot.slane %v2394, %v2401
  %v2404 = vunpack.c.l.s4 1934713408
  %v2405 = vunpack.c.0.s8 %v2404
  %v2406 = vlaneseq
  %v2407 = vshrl.u32 %v2406, 7
  %v2408 = vsub.s32 %v2405, %v2407
  %v2409 = vrot.slane %v2395, %v2408
  %v2410 = vcombine.low %v2345, %v2361
  %v2411 = vcombine.high %v2345, %v2361
  %v2413 = vunpack.c.l.s4 1934713408
  %v2414 = vunpack.c.0.s8 %v2413
  %v2415 = vlaneseq
  %v2416 = vshrl.u32 %v2415, 7
  %v2417 = vsub.s32 %v2414, %v2416
  %v2418 = vrot.slane %v2410, %v2417
  %v2420 = vunpack.c.l.s4 1934713408
  %v2421 = vunpack.c.0.s8 %v2420
  %v2422 = vlaneseq
  %v2423 = vshrl.u32 %v2422, 7
  %v2424 = vsub.s32 %v2421, %v2423
  %v2425 = vrot.slane %v2411, %v2424
  %v2426 = vcombine.low %v2370, %v2386
  %v2427 = vcombine.high %v2370, %v2386
  %v2429 = vunpack.c.l.s4 1934713408
  %v2430 = vunpack.c.0.s8 %v2429
  %v2431 = vlaneseq
  %v2432 = vshrl.u32 %v2431, 7
  %v2433 = vsub.s32 %v2430, %v2432
  %v2434 = vrot.slane %v2426, %v2433
  %v2436 = vunpack.c.l.s4 1934713408
  %v2437 = vunpack.c.0.s8 %v2436
  %v2438 = vlaneseq
  %v2439 = vshrl.u32 %v2438, 7
  %v2440 = vsub.s32 %v2437, %v2439
  %v2441 = vrot.slane %v2427, %v2440
  %v2442 = vcombine.low %v2377, %v2393
  %v2443 = vcombine.high %v2377, %v2393
  %v2445 = vunpack.c.l.s4 1934713408
  %v2446 = vunpack.c.0.s8 %v2445
  %v2447 = vlaneseq
  %v2448 = vshrl.u32 %v2447, 7
  %v2449 = vsub.s32 %v2446, %v2448
  %v2450 = vrot.slane %v2442, %v2449
  %v2452 = vunpack.c.l.s4 1934713408
  %v2453 = vunpack.c.0.s8 %v2452
  %v2454 = vlaneseq
  %v2455 = vshrl.u32 %v2454, 7
  %v2456 = vsub.s32 %v2453, %v2455
  %v2457 = vrot.slane %v2443, %v2456
  %v2458 = vcombine.low %v2402, %v2434
  %v2459 = vcombine.high %v2402, %v2434
  %v2460 = vcombine.low %v2409, %v2441
  %v2461 = vcombine.high %v2409, %v2441
  %v2462 = vcombine.low %v2418, %v2450
  %v2463 = vcombine.high %v2418, %v2450
  %v2464 = vcombine.low %v2425, %v2457
  %v2465 = vcombine.high %v2425, %v2457
  %v2466 = vcombine.low %v1337, %v1385
  %v2467 = vcombine.high %v1337, %v1385
  %v2469 = vunpack.c.l.s4 1983009808
  %v2470 = vunpack.c.0.s8 %v2469
  %v2471 = vlaneseq
  %v2472 = vshrl.u32 %v2471, 7
  %v2473 = vsub.s32 %v2470, %v2472
  %v2474 = vrot.slane %v2466, %v2473
  %v2476 = vunpack.c.l.s4 1983009808
  %v2477 = vunpack.c.0.s8 %v2476
  %v2478 = vlaneseq
  %v2479 = vshrl.u32 %v2478, 7
  %v2480 = vsub.s32 %v2477, %v2479
  %v2481 = vrot.slane %v2467, %v2480
  %v2482 = vcombine.low %v1361, %v1409
  %v2483 = vcombine.high %v1361, %v1409
  %v2485 = vunpack.c.l.s4 1983009808
  %v2486 = vunpack.c.0.s8 %v2485
  %v2487 = vlaneseq
  %v2488 = vshrl.u32 %v2487, 7
  %v2489 = vsub.s32 %v2486, %v2488
  %v2490 = vrot.slane %v2482, %v2489
  %v2492 = vunpack.c.l.s4 1983009808
  %v2493 = vunpack.c.0.s8 %v2492
  %v2494 = vlaneseq
  %v2495 = vshrl.u32 %v2494, 7
  %v2496 = vsub.s32 %v2493, %v2495
  %v2497 = vrot.slane %v2483, %v2496
  %v2498 = vcombine.low %v1433, %v1481
  %v2499 = vcombine.high %v1433, %v1481
  %v2501 = vunpack.c.l.s4 1983009808
  %v2502 = vunpack.c.0.s8 %v2501
  %v2503 = vlaneseq
  %v2504 = vshrl.u32 %v2503, 7
  %v2505 = vsub.s32 %v2502, %v2504
  %v2506 = vrot.slane %v2498, %v2505
  %v2508 = vunpack.c.l.s4 1983009808
  %v2509 = vunpack.c.0.s8 %v2508
  %v2510 = vlaneseq
  %v2511 = vshrl.u32 %v2510, 7
  %v2512 = vsub.s32 %v2509, %v2511
  %v2513 = vrot.slane %v2499, %v2512
  %v2514 = vcombine.low %v1457, %v1505
  %v2515 = vcombine.high %v1457, %v1505
  %v2517 = vunpack.c.l.s4 1983009808
  %v2518 = vunpack.c.0.s8 %v2517
  %v2519 = vlaneseq
  %v2520 = vshrl.u32 %v2519, 7
  %v2521 = vsub.s32 %v2518, %v2520
  %v2522 = vrot.slane %v2514, %v2521
  %v2524 = vunpack.c.l.s4 1983009808
  %v2525 = vunpack.c.0.s8 %v2524
  %v2526 = vlaneseq
  %v2527 = vshrl.u32 %v2526, 7
  %v2528 = vsub.s32 %v2525, %v2527
  %v2529 = vrot.slane %v2515, %v2528
  %v2530 = vcombine.low %v2474, %v2490
  %v2531 = vcombine.high %v2474, %v2490
  %v2533 = vunpack.c.l.s4 1934713408
  %v2534 = vunpack.c.0.s8 %v2533
  %v2535 = vlaneseq
  %v2536 = vshrl.u32 %v2535, 7
  %v2537 = vsub.s32 %v2534, %v2536
  %v2538 = vrot.slane %v2530, %v2537
  %v2540 = vunpack.c.l.s4 1934713408
  %v2541 = vunpack.c.0.s8 %v2540
  %v2542 = vlaneseq
  %v2543 = vshrl.u32 %v2542, 7
  %v2544 = vsub.s32 %v2541, %v2543
  %v2545 = vrot.slane %v2531, %v2544
  %v2546 = vcombine.low %v2481, %v2497
  %v2547 = vcombine.high %v2481, %v2497
  %v2549 = vunpack.c.l.s4 1934713408
  %v2550 = vunpack.c.0.s8 %v2549
  %v2551 = vlaneseq
  %v2552 = vshrl.u32 %v2551, 7
  %v2553 = vsub.s32 %v2550, %v2552
  %v2554 = vrot.slane %v2546, %v2553
  %v2556 = vunpack.c.l.s4 1934713408
  %v2557 = vunpack.c.0.s8 %v2556
  %v2558 = vlaneseq
  %v2559 = vshrl.u32 %v2558, 7
  %v2560 = vsub.s32 %v2557, %v2559
  %v2561 = vrot.slane %v2547, %v2560
  %v2562 = vcombine.low %v2506, %v2522
  %v2563 = vcombine.high %v2506, %v2522
  %v2565 = vunpack.c.l.s4 1934713408
  %v2566 = vunpack.c.0.s8 %v2565
  %v2567 = vlaneseq
  %v2568 = vshrl.u32 %v2567, 7
  %v2569 = vsub.s32 %v2566, %v2568
  %v2570 = vrot.slane %v2562, %v2569
  %v2572 = vunpack.c.l.s4 1934713408
  %v2573 = vunpack.c.0.s8 %v2572
  %v2574 = vlaneseq
  %v2575 = vshrl.u32 %v2574, 7
  %v2576 = vsub.s32 %v2573, %v2575
  %v2577 = vrot.slane %v2563, %v2576
  %v2578 = vcombine.low %v2513, %v2529
  %v2579 = vcombine.high %v2513, %v2529
  %v2581 = vunpack.c.l.s4 1934713408
  %v2582 = vunpack.c.0.s8 %v2581
  %v2583 = vlaneseq
  %v2584 = vshrl.u32 %v2583, 7
  %v2585 = vsub.s32 %v2582, %v2584
  %v2586 = vrot.slane %v2578, %v2585
  %v2588 = vunpack.c.l.s4 1934713408
  %v2589 = vunpack.c.0.s8 %v2588
  %v2590 = vlaneseq
  %v2591 = vshrl.u32 %v2590, 7
  %v2592 = vsub.s32 %v2589, %v2591
  %v2593 = vrot.slane %v2579, %v2592
  %v2594 = vcombine.low %v2538, %v2570
  %v2595 = vcombine.high %v2538, %v2570
  %v2596 = vcombine.low %v2545, %v2577
  %v2597 = vcombine.high %v2545, %v2577
  %v2598 = vcombine.low %v2554, %v2586
  %v2599 = vcombine.high %v2554, %v2586
  %v2600 = vcombine.low %v2561, %v2593
  %v2601 = vcombine.high %v2561, %v2593
  %vm2602 = vcmask 64512
  %v2603 = vsel %vm2602, %v1642, -inf
  %2604 = vmax.xlane.f32.xlu0 %v2603
  %v2605 = vpop.xlane.xlu0 %2604
  %v2606 = vsel %vm2602, %v1643, -inf
  %2607 = vmax.xlane.f32.xlu0 %v2606
  %v2608 = vpop.xlane.xlu0 %2607
  %v2609 = vsel %vm2602, %v1644, -inf
  %2610 = vmax.xlane.f32.xlu0 %v2609
  %v2611 = vpop.xlane.xlu0 %2610
  %v2612 = vsel %vm2602, %v1645, -inf
  %2613 = vmax.xlane.f32.xlu0 %v2612
  %v2614 = vpop.xlane.xlu0 %2613
  %v2615 = vsel %vm2602, %v1646, -inf
  %2616 = vmax.xlane.f32.xlu0 %v2615
  %v2617 = vpop.xlane.xlu0 %2616
  %v2618 = vsel %vm2602, %v1647, -inf
  %2619 = vmax.xlane.f32.xlu0 %v2618
  %v2620 = vpop.xlane.xlu0 %2619
  %v2621 = vsel %vm2602, %v1648, -inf
  %2622 = vmax.xlane.f32.xlu0 %v2621
  %v2623 = vpop.xlane.xlu0 %2622
  %v2624 = vsel %vm2602, %v1649, -inf
  %2625 = vmax.xlane.f32.xlu0 %v2624
  %v2626 = vpop.xlane.xlu0 %2625
  %v2627 = vsel %vm2602, %v1778, -inf
  %2628 = vmax.xlane.f32.xlu0 %v2627
  %v2629 = vpop.xlane.xlu0 %2628
  %v2630 = vsel %vm2602, %v1779, -inf
  %2631 = vmax.xlane.f32.xlu0 %v2630
  %v2632 = vpop.xlane.xlu0 %2631
  %v2633 = vsel %vm2602, %v1780, -inf
  %2634 = vmax.xlane.f32.xlu0 %v2633
  %v2635 = vpop.xlane.xlu0 %2634
  %v2636 = vsel %vm2602, %v1781, -inf
  %2637 = vmax.xlane.f32.xlu0 %v2636
  %v2638 = vpop.xlane.xlu0 %2637
  %v2639 = vsel %vm2602, %v1782, -inf
  %2640 = vmax.xlane.f32.xlu0 %v2639
  %v2641 = vpop.xlane.xlu0 %2640
  %v2642 = vsel %vm2602, %v1783, -inf
  %2643 = vmax.xlane.f32.xlu0 %v2642
  %v2644 = vpop.xlane.xlu0 %2643
  %v2645 = vsel %vm2602, %v1784, -inf
  %2646 = vmax.xlane.f32.xlu0 %v2645
  %v2647 = vpop.xlane.xlu0 %2646
  %v2648 = vsel %vm2602, %v1785, -inf
  %2649 = vmax.xlane.f32.xlu0 %v2648
  %v2650 = vpop.xlane.xlu0 %2649
  %v2651 = vsel %vm2602, %v1914, -inf
  %2652 = vmax.xlane.f32.xlu0 %v2651
  %v2653 = vpop.xlane.xlu0 %2652
  %v2654 = vsel %vm2602, %v1915, -inf
  %2655 = vmax.xlane.f32.xlu0 %v2654
  %v2656 = vpop.xlane.xlu0 %2655
  %v2657 = vsel %vm2602, %v1916, -inf
  %2658 = vmax.xlane.f32.xlu0 %v2657
  %v2659 = vpop.xlane.xlu0 %2658
  %v2660 = vsel %vm2602, %v1917, -inf
  %2661 = vmax.xlane.f32.xlu0 %v2660
  %v2662 = vpop.xlane.xlu0 %2661
  %v2663 = vsel %vm2602, %v1918, -inf
  %2664 = vmax.xlane.f32.xlu0 %v2663
  %v2665 = vpop.xlane.xlu0 %2664
  %v2666 = vsel %vm2602, %v1919, -inf
  %2667 = vmax.xlane.f32.xlu0 %v2666
  %v2668 = vpop.xlane.xlu0 %2667
  %v2669 = vsel %vm2602, %v1920, -inf
  %2670 = vmax.xlane.f32.xlu0 %v2669
  %v2671 = vpop.xlane.xlu0 %2670
  %v2672 = vsel %vm2602, %v1921, -inf
  %2673 = vmax.xlane.f32.xlu0 %v2672
  %v2674 = vpop.xlane.xlu0 %2673
  %v2675 = vsel %vm2602, %v2050, -inf
  %2676 = vmax.xlane.f32.xlu0 %v2675
  %v2677 = vpop.xlane.xlu0 %2676
  %v2678 = vsel %vm2602, %v2051, -inf
  %2679 = vmax.xlane.f32.xlu0 %v2678
  %v2680 = vpop.xlane.xlu0 %2679
  %v2681 = vsel %vm2602, %v2052, -inf
  %2682 = vmax.xlane.f32.xlu0 %v2681
  %v2683 = vpop.xlane.xlu0 %2682
  %v2684 = vsel %vm2602, %v2053, -inf
  %2685 = vmax.xlane.f32.xlu0 %v2684
  %v2686 = vpop.xlane.xlu0 %2685
  %v2687 = vsel %vm2602, %v2054, -inf
  %2688 = vmax.xlane.f32.xlu0 %v2687
  %v2689 = vpop.xlane.xlu0 %2688
  %v2690 = vsel %vm2602, %v2055, -inf
  %2691 = vmax.xlane.f32.xlu0 %v2690
  %v2692 = vpop.xlane.xlu0 %2691
  %v2693 = vsel %vm2602, %v2056, -inf
  %2694 = vmax.xlane.f32.xlu0 %v2693
  %v2695 = vpop.xlane.xlu0 %2694
  %v2696 = vsel %vm2602, %v2057, -inf
  %2697 = vmax.xlane.f32.xlu0 %v2696
  %v2698 = vpop.xlane.xlu0 %2697
  %v2699 = vsel %vm2602, %v2186, -inf
  %2700 = vmax.xlane.f32.xlu0 %v2699
  %v2701 = vpop.xlane.xlu0 %2700
  %v2702 = vsel %vm2602, %v2187, -inf
  %2703 = vmax.xlane.f32.xlu0 %v2702
  %v2704 = vpop.xlane.xlu0 %2703
  %v2705 = vsel %vm2602, %v2188, -inf
  %2706 = vmax.xlane.f32.xlu0 %v2705
  %v2707 = vpop.xlane.xlu0 %2706
  %v2708 = vsel %vm2602, %v2189, -inf
  %2709 = vmax.xlane.f32.xlu0 %v2708
  %v2710 = vpop.xlane.xlu0 %2709
  %v2711 = vsel %vm2602, %v2190, -inf
  %2712 = vmax.xlane.f32.xlu0 %v2711
  %v2713 = vpop.xlane.xlu0 %2712
  %v2714 = vsel %vm2602, %v2191, -inf
  %2715 = vmax.xlane.f32.xlu0 %v2714
  %v2716 = vpop.xlane.xlu0 %2715
  %v2717 = vsel %vm2602, %v2192, -inf
  %2718 = vmax.xlane.f32.xlu0 %v2717
  %v2719 = vpop.xlane.xlu0 %2718
  %v2720 = vsel %vm2602, %v2193, -inf
  %2721 = vmax.xlane.f32.xlu0 %v2720
  %v2722 = vpop.xlane.xlu0 %2721
  %v2723 = vsel %vm2602, %v2322, -inf
  %2724 = vmax.xlane.f32.xlu0 %v2723
  %v2725 = vpop.xlane.xlu0 %2724
  %v2726 = vsel %vm2602, %v2323, -inf
  %2727 = vmax.xlane.f32.xlu0 %v2726
  %v2728 = vpop.xlane.xlu0 %2727
  %v2729 = vsel %vm2602, %v2324, -inf
  %2730 = vmax.xlane.f32.xlu0 %v2729
  %v2731 = vpop.xlane.xlu0 %2730
  %v2732 = vsel %vm2602, %v2325, -inf
  %2733 = vmax.xlane.f32.xlu0 %v2732
  %v2734 = vpop.xlane.xlu0 %2733
  %v2735 = vsel %vm2602, %v2326, -inf
  %2736 = vmax.xlane.f32.xlu0 %v2735
  %v2737 = vpop.xlane.xlu0 %2736
  %v2738 = vsel %vm2602, %v2327, -inf
  %2739 = vmax.xlane.f32.xlu0 %v2738
  %v2740 = vpop.xlane.xlu0 %2739
  %v2741 = vsel %vm2602, %v2328, -inf
  %2742 = vmax.xlane.f32.xlu0 %v2741
  %v2743 = vpop.xlane.xlu0 %2742
  %v2744 = vsel %vm2602, %v2329, -inf
  %2745 = vmax.xlane.f32.xlu0 %v2744
  %v2746 = vpop.xlane.xlu0 %2745
  %v2747 = vsel %vm2602, %v2458, -inf
  %2748 = vmax.xlane.f32.xlu0 %v2747
  %v2749 = vpop.xlane.xlu0 %2748
  %v2750 = vsel %vm2602, %v2459, -inf
  %2751 = vmax.xlane.f32.xlu0 %v2750
  %v2752 = vpop.xlane.xlu0 %2751
  %v2753 = vsel %vm2602, %v2460, -inf
  %2754 = vmax.xlane.f32.xlu0 %v2753
  %v2755 = vpop.xlane.xlu0 %2754
  %v2756 = vsel %vm2602, %v2461, -inf
  %2757 = vmax.xlane.f32.xlu0 %v2756
  %v2758 = vpop.xlane.xlu0 %2757
  %v2759 = vsel %vm2602, %v2462, -inf
  %2760 = vmax.xlane.f32.xlu0 %v2759
  %v2761 = vpop.xlane.xlu0 %2760
  %v2762 = vsel %vm2602, %v2463, -inf
  %2763 = vmax.xlane.f32.xlu0 %v2762
  %v2764 = vpop.xlane.xlu0 %2763
  %v2765 = vsel %vm2602, %v2464, -inf
  %2766 = vmax.xlane.f32.xlu0 %v2765
  %v2767 = vpop.xlane.xlu0 %2766
  %v2768 = vsel %vm2602, %v2465, -inf
  %2769 = vmax.xlane.f32.xlu0 %v2768
  %v2770 = vpop.xlane.xlu0 %2769
  %v2771 = vsel %vm2602, %v2594, -inf
  %2772 = vmax.xlane.f32.xlu0 %v2771
  %v2773 = vpop.xlane.xlu0 %2772
  %v2774 = vsel %vm2602, %v2595, -inf
  %2775 = vmax.xlane.f32.xlu0 %v2774
  %v2776 = vpop.xlane.xlu0 %2775
  %v2777 = vsel %vm2602, %v2596, -inf
  %2778 = vmax.xlane.f32.xlu0 %v2777
  %v2779 = vpop.xlane.xlu0 %2778
  %v2780 = vsel %vm2602, %v2597, -inf
  %2781 = vmax.xlane.f32.xlu0 %v2780
  %v2782 = vpop.xlane.xlu0 %2781
  %v2783 = vsel %vm2602, %v2598, -inf
  %2784 = vmax.xlane.f32.xlu0 %v2783
  %v2785 = vpop.xlane.xlu0 %2784
  %v2786 = vsel %vm2602, %v2599, -inf
  %2787 = vmax.xlane.f32.xlu0 %v2786
  %v2788 = vpop.xlane.xlu0 %2787
  %v2789 = vsel %vm2602, %v2600, -inf
  %2790 = vmax.xlane.f32.xlu0 %v2789
  %v2791 = vpop.xlane.xlu0 %2790
  %v2792 = vsel %vm2602, %v2601, -inf
  %2793 = vmax.xlane.f32.xlu0 %v2792
  %v2794 = vpop.xlane.xlu0 %2793
  %v2795 = vsub.f32 %v1642, %v2605
  %v2796 = vsub.f32 %v1643, %v2608
  %v2797 = vsub.f32 %v1644, %v2611
  %v2798 = vsub.f32 %v1645, %v2614
  %v2799 = vsub.f32 %v1646, %v2617
  %v2800 = vsub.f32 %v1647, %v2620
  %v2801 = vsub.f32 %v1648, %v2623
  %v2802 = vsub.f32 %v1649, %v2626
  %v2803 = vsub.f32 %v1778, %v2629
  %v2804 = vsub.f32 %v1779, %v2632
  %v2805 = vsub.f32 %v1780, %v2635
  %v2806 = vsub.f32 %v1781, %v2638
  %v2807 = vsub.f32 %v1782, %v2641
  %v2808 = vsub.f32 %v1783, %v2644
  %v2809 = vsub.f32 %v1784, %v2647
  %v2810 = vsub.f32 %v1785, %v2650
  %v2811 = vsub.f32 %v1914, %v2653
  %v2812 = vsub.f32 %v1915, %v2656
  %v2813 = vsub.f32 %v1916, %v2659
  %v2814 = vsub.f32 %v1917, %v2662
  %v2815 = vsub.f32 %v1918, %v2665
  %v2816 = vsub.f32 %v1919, %v2668
  %v2817 = vsub.f32 %v1920, %v2671
  %v2818 = vsub.f32 %v1921, %v2674
  %v2819 = vsub.f32 %v2050, %v2677
  %v2820 = vsub.f32 %v2051, %v2680
  %v2821 = vsub.f32 %v2052, %v2683
  %v2822 = vsub.f32 %v2053, %v2686
  %v2823 = vsub.f32 %v2054, %v2689
  %v2824 = vsub.f32 %v2055, %v2692
  %v2825 = vsub.f32 %v2056, %v2695
  %v2826 = vsub.f32 %v2057, %v2698
  %v2827 = vsub.f32 %v2186, %v2701
  %v2828 = vsub.f32 %v2187, %v2704
  %v2829 = vsub.f32 %v2188, %v2707
  %v2830 = vsub.f32 %v2189, %v2710
  %v2831 = vsub.f32 %v2190, %v2713
  %v2832 = vsub.f32 %v2191, %v2716
  %v2833 = vsub.f32 %v2192, %v2719
  %v2834 = vsub.f32 %v2193, %v2722
  %v2835 = vsub.f32 %v2322, %v2725
  %v2836 = vsub.f32 %v2323, %v2728
  %v2837 = vsub.f32 %v2324, %v2731
  %v2838 = vsub.f32 %v2325, %v2734
  %v2839 = vsub.f32 %v2326, %v2737
  %v2840 = vsub.f32 %v2327, %v2740
  %v2841 = vsub.f32 %v2328, %v2743
  %v2842 = vsub.f32 %v2329, %v2746
  %v2843 = vsub.f32 %v2458, %v2749
  %v2844 = vsub.f32 %v2459, %v2752
  %v2845 = vsub.f32 %v2460, %v2755
  %v2846 = vsub.f32 %v2461, %v2758
  %v2847 = vsub.f32 %v2462, %v2761
  %v2848 = vsub.f32 %v2463, %v2764
  %v2849 = vsub.f32 %v2464, %v2767
  %v2850 = vsub.f32 %v2465, %v2770
  %v2851 = vsub.f32 %v2594, %v2773
  %v2852 = vsub.f32 %v2595, %v2776
  %v2853 = vsub.f32 %v2596, %v2779
  %v2854 = vsub.f32 %v2597, %v2782
  %v2855 = vsub.f32 %v2598, %v2785
  %v2856 = vsub.f32 %v2599, %v2788
  %v2857 = vsub.f32 %v2600, %v2791
  %v2858 = vsub.f32 %v2601, %v2794
  %v2859 = vmul.f32 %v2795, 1.442695
  %v2860 = vpow.pop %v2859
  %v2861 = vmul.f32 %v2796, 1.442695
  %v2862 = vpow.pop %v2861
  %v2863 = vmul.f32 %v2797, 1.442695
  %v2864 = vpow.pop %v2863
  %v2865 = vmul.f32 %v2798, 1.442695
  %v2866 = vpow.pop %v2865
  %v2867 = vmul.f32 %v2799, 1.442695
  %v2868 = vpow.pop %v2867
  %v2869 = vmul.f32 %v2800, 1.442695
  %v2870 = vpow.pop %v2869
  %v2871 = vmul.f32 %v2801, 1.442695
  %v2872 = vpow.pop %v2871
  %v2873 = vmul.f32 %v2802, 1.442695
  %v2874 = vpow.pop %v2873
  %v2875 = vmul.f32 %v2803, 1.442695
  %v2876 = vpow.pop %v2875
  %v2877 = vmul.f32 %v2804, 1.442695
  %v2878 = vpow.pop %v2877
  %v2879 = vmul.f32 %v2805, 1.442695
  %v2880 = vpow.pop %v2879
  %v2881 = vmul.f32 %v2806, 1.442695
  %v2882 = vpow.pop %v2881
  %v2883 = vmul.f32 %v2807, 1.442695
  %v2884 = vpow.pop %v2883
  %v2885 = vmul.f32 %v2808, 1.442695
  %v2886 = vpow.pop %v2885
  %v2887 = vmul.f32 %v2809, 1.442695
  %v2888 = vpow.pop %v2887
  %v2889 = vmul.f32 %v2810, 1.442695
  %v2890 = vpow.pop %v2889
  %v2891 = vmul.f32 %v2811, 1.442695
  %v2892 = vpow.pop %v2891
  %v2893 = vmul.f32 %v2812, 1.442695
  %v2894 = vpow.pop %v2893
  %v2895 = vmul.f32 %v2813, 1.442695
  %v2896 = vpow.pop %v2895
  %v2897 = vmul.f32 %v2814, 1.442695
  %v2898 = vpow.pop %v2897
  %v2899 = vmul.f32 %v2815, 1.442695
  %v2900 = vpow.pop %v2899
  %v2901 = vmul.f32 %v2816, 1.442695
  %v2902 = vpow.pop %v2901
  %v2903 = vmul.f32 %v2817, 1.442695
  %v2904 = vpow.pop %v2903
  %v2905 = vmul.f32 %v2818, 1.442695
  %v2906 = vpow.pop %v2905
  %v2907 = vmul.f32 %v2819, 1.442695
  %v2908 = vpow.pop %v2907
  %v2909 = vmul.f32 %v2820, 1.442695
  %v2910 = vpow.pop %v2909
  %v2911 = vmul.f32 %v2821, 1.442695
  %v2912 = vpow.pop %v2911
  %v2913 = vmul.f32 %v2822, 1.442695
  %v2914 = vpow.pop %v2913
  %v2915 = vmul.f32 %v2823, 1.442695
  %v2916 = vpow.pop %v2915
  %v2917 = vmul.f32 %v2824, 1.442695
  %v2918 = vpow.pop %v2917
  %v2919 = vmul.f32 %v2825, 1.442695
  %v2920 = vpow.pop %v2919
  %v2921 = vmul.f32 %v2826, 1.442695
  %v2922 = vpow.pop %v2921
  %v2923 = vmul.f32 %v2827, 1.442695
  %v2924 = vpow.pop %v2923
  %v2925 = vmul.f32 %v2828, 1.442695
  %v2926 = vpow.pop %v2925
  %v2927 = vmul.f32 %v2829, 1.442695
  %v2928 = vpow.pop %v2927
  %v2929 = vmul.f32 %v2830, 1.442695
  %v2930 = vpow.pop %v2929
  %v2931 = vmul.f32 %v2831, 1.442695
  %v2932 = vpow.pop %v2931
  %v2933 = vmul.f32 %v2832, 1.442695
  %v2934 = vpow.pop %v2933
  %v2935 = vmul.f32 %v2833, 1.442695
  %v2936 = vpow.pop %v2935
  %v2937 = vmul.f32 %v2834, 1.442695
  %v2938 = vpow.pop %v2937
  %v2939 = vmul.f32 %v2835, 1.442695
  %v2940 = vpow.pop %v2939
  %v2941 = vmul.f32 %v2836, 1.442695
  %v2942 = vpow.pop %v2941
  %v2943 = vmul.f32 %v2837, 1.442695
  %v2944 = vpow.pop %v2943
  %v2945 = vmul.f32 %v2838, 1.442695
  %v2946 = vpow.pop %v2945
  %v2947 = vmul.f32 %v2839, 1.442695
  %v2948 = vpow.pop %v2947
  %v2949 = vmul.f32 %v2840, 1.442695
  %v2950 = vpow.pop %v2949
  %v2951 = vmul.f32 %v2841, 1.442695
  %v2952 = vpow.pop %v2951
  %v2953 = vmul.f32 %v2842, 1.442695
  %v2954 = vpow.pop %v2953
  %v2955 = vmul.f32 %v2843, 1.442695
  %v2956 = vpow.pop %v2955
  %v2957 = vmul.f32 %v2844, 1.442695
  %v2958 = vpow.pop %v2957
  %v2959 = vmul.f32 %v2845, 1.442695
  %v2960 = vpow.pop %v2959
  %v2961 = vmul.f32 %v2846, 1.442695
  %v2962 = vpow.pop %v2961
  %v2963 = vmul.f32 %v2847, 1.442695
  %v2964 = vpow.pop %v2963
  %v2965 = vmul.f32 %v2848, 1.442695
  %v2966 = vpow.pop %v2965
  %v2967 = vmul.f32 %v2849, 1.442695
  %v2968 = vpow.pop %v2967
  %v2969 = vmul.f32 %v2850, 1.442695
  %v2970 = vpow.pop %v2969
  %v2971 = vmul.f32 %v2851, 1.442695
  %v2972 = vpow.pop %v2971
  %v2973 = vmul.f32 %v2852, 1.442695
  %v2974 = vpow.pop %v2973
  %v2975 = vmul.f32 %v2853, 1.442695
  %v2976 = vpow.pop %v2975
  %v2977 = vmul.f32 %v2854, 1.442695
  %v2978 = vpow.pop %v2977
  %v2979 = vmul.f32 %v2855, 1.442695
  %v2980 = vpow.pop %v2979
  %v2981 = vmul.f32 %v2856, 1.442695
  %v2982 = vpow.pop %v2981
  %v2983 = vmul.f32 %v2857, 1.442695
  %v2984 = vpow.pop %v2983
  %v2985 = vmul.f32 %v2858, 1.442695
  %v2986 = vpow.pop %v2985
  %v2987 = vsel %vm2602, %v2860, 0.0
  %2988 = vadd.xlane.f32.xlu0 %v2987
  %v2989 = vpop.xlane.xlu0 %2988
  %v2990 = vsel %vm2602, %v2862, 0.0
  %2991 = vadd.xlane.f32.xlu0 %v2990
  %v2992 = vpop.xlane.xlu0 %2991
  %v2993 = vsel %vm2602, %v2864, 0.0
  %2994 = vadd.xlane.f32.xlu0 %v2993
  %v2995 = vpop.xlane.xlu0 %2994
  %v2996 = vsel %vm2602, %v2866, 0.0
  %2997 = vadd.xlane.f32.xlu0 %v2996
  %v2998 = vpop.xlane.xlu0 %2997
  %v2999 = vsel %vm2602, %v2868, 0.0
  %3000 = vadd.xlane.f32.xlu0 %v2999
  %v3001 = vpop.xlane.xlu0 %3000
  %v3002 = vsel %vm2602, %v2870, 0.0
  %3003 = vadd.xlane.f32.xlu0 %v3002
  %v3004 = vpop.xlane.xlu0 %3003
  %v3005 = vsel %vm2602, %v2872, 0.0
  %3006 = vadd.xlane.f32.xlu0 %v3005
  %v3007 = vpop.xlane.xlu0 %3006
  %v3008 = vsel %vm2602, %v2874, 0.0
  %3009 = vadd.xlane.f32.xlu0 %v3008
  %v3010 = vpop.xlane.xlu0 %3009
  %v3011 = vsel %vm2602, %v2876, 0.0
  %3012 = vadd.xlane.f32.xlu0 %v3011
  %v3013 = vpop.xlane.xlu0 %3012
  %v3014 = vsel %vm2602, %v2878, 0.0
  %3015 = vadd.xlane.f32.xlu0 %v3014
  %v3016 = vpop.xlane.xlu0 %3015
  %v3017 = vsel %vm2602, %v2880, 0.0
  %3018 = vadd.xlane.f32.xlu0 %v3017
  %v3019 = vpop.xlane.xlu0 %3018
  %v3020 = vsel %vm2602, %v2882, 0.0
  %3021 = vadd.xlane.f32.xlu0 %v3020
  %v3022 = vpop.xlane.xlu0 %3021
  %v3023 = vsel %vm2602, %v2884, 0.0
  %3024 = vadd.xlane.f32.xlu0 %v3023
  %v3025 = vpop.xlane.xlu0 %3024
  %v3026 = vsel %vm2602, %v2886, 0.0
  %3027 = vadd.xlane.f32.xlu0 %v3026
  %v3028 = vpop.xlane.xlu0 %3027
  %v3029 = vsel %vm2602, %v2888, 0.0
  %3030 = vadd.xlane.f32.xlu0 %v3029
  %v3031 = vpop.xlane.xlu0 %3030
  %v3032 = vsel %vm2602, %v2890, 0.0
  %3033 = vadd.xlane.f32.xlu0 %v3032
  %v3034 = vpop.xlane.xlu0 %3033
  %v3035 = vsel %vm2602, %v2892, 0.0
  %3036 = vadd.xlane.f32.xlu0 %v3035
  %v3037 = vpop.xlane.xlu0 %3036
  %v3038 = vsel %vm2602, %v2894, 0.0
  %3039 = vadd.xlane.f32.xlu0 %v3038
  %v3040 = vpop.xlane.xlu0 %3039
  %v3041 = vsel %vm2602, %v2896, 0.0
  %3042 = vadd.xlane.f32.xlu0 %v3041
  %v3043 = vpop.xlane.xlu0 %3042
  %v3044 = vsel %vm2602, %v2898, 0.0
  %3045 = vadd.xlane.f32.xlu0 %v3044
  %v3046 = vpop.xlane.xlu0 %3045
  %v3047 = vsel %vm2602, %v2900, 0.0
  %3048 = vadd.xlane.f32.xlu0 %v3047
  %v3049 = vpop.xlane.xlu0 %3048
  %v3050 = vsel %vm2602, %v2902, 0.0
  %3051 = vadd.xlane.f32.xlu0 %v3050
  %v3052 = vpop.xlane.xlu0 %3051
  %v3053 = vsel %vm2602, %v2904, 0.0
  %3054 = vadd.xlane.f32.xlu0 %v3053
  %v3055 = vpop.xlane.xlu0 %3054
  %v3056 = vsel %vm2602, %v2906, 0.0
  %3057 = vadd.xlane.f32.xlu0 %v3056
  %v3058 = vpop.xlane.xlu0 %3057
  %v3059 = vsel %vm2602, %v2908, 0.0
  %3060 = vadd.xlane.f32.xlu0 %v3059
  %v3061 = vpop.xlane.xlu0 %3060
  %v3062 = vsel %vm2602, %v2910, 0.0
  %3063 = vadd.xlane.f32.xlu0 %v3062
  %v3064 = vpop.xlane.xlu0 %3063
  %v3065 = vsel %vm2602, %v2912, 0.0
  %3066 = vadd.xlane.f32.xlu0 %v3065
  %v3067 = vpop.xlane.xlu0 %3066
  %v3068 = vsel %vm2602, %v2914, 0.0
  %3069 = vadd.xlane.f32.xlu0 %v3068
  %v3070 = vpop.xlane.xlu0 %3069
  %v3071 = vsel %vm2602, %v2916, 0.0
  %3072 = vadd.xlane.f32.xlu0 %v3071
  %v3073 = vpop.xlane.xlu0 %3072
  %v3074 = vsel %vm2602, %v2918, 0.0
  %3075 = vadd.xlane.f32.xlu0 %v3074
  %v3076 = vpop.xlane.xlu0 %3075
  %v3077 = vsel %vm2602, %v2920, 0.0
  %3078 = vadd.xlane.f32.xlu0 %v3077
  %v3079 = vpop.xlane.xlu0 %3078
  %v3080 = vsel %vm2602, %v2922, 0.0
  %3081 = vadd.xlane.f32.xlu0 %v3080
  %v3082 = vpop.xlane.xlu0 %3081
  %v3083 = vsel %vm2602, %v2924, 0.0
  %3084 = vadd.xlane.f32.xlu0 %v3083
  %v3085 = vpop.xlane.xlu0 %3084
  %v3086 = vsel %vm2602, %v2926, 0.0
  %3087 = vadd.xlane.f32.xlu0 %v3086
  %v3088 = vpop.xlane.xlu0 %3087
  %v3089 = vsel %vm2602, %v2928, 0.0
  %3090 = vadd.xlane.f32.xlu0 %v3089
  %v3091 = vpop.xlane.xlu0 %3090
  %v3092 = vsel %vm2602, %v2930, 0.0
  %3093 = vadd.xlane.f32.xlu0 %v3092
  %v3094 = vpop.xlane.xlu0 %3093
  %v3095 = vsel %vm2602, %v2932, 0.0
  %3096 = vadd.xlane.f32.xlu0 %v3095
  %v3097 = vpop.xlane.xlu0 %3096
  %v3098 = vsel %vm2602, %v2934, 0.0
  %3099 = vadd.xlane.f32.xlu0 %v3098
  %v3100 = vpop.xlane.xlu0 %3099
  %v3101 = vsel %vm2602, %v2936, 0.0
  %3102 = vadd.xlane.f32.xlu0 %v3101
  %v3103 = vpop.xlane.xlu0 %3102
  %v3104 = vsel %vm2602, %v2938, 0.0
  %3105 = vadd.xlane.f32.xlu0 %v3104
  %v3106 = vpop.xlane.xlu0 %3105
  %v3107 = vsel %vm2602, %v2940, 0.0
  %3108 = vadd.xlane.f32.xlu0 %v3107
  %v3109 = vpop.xlane.xlu0 %3108
  %v3110 = vsel %vm2602, %v2942, 0.0
  %3111 = vadd.xlane.f32.xlu0 %v3110
  %v3112 = vpop.xlane.xlu0 %3111
  %v3113 = vsel %vm2602, %v2944, 0.0
  %3114 = vadd.xlane.f32.xlu0 %v3113
  %v3115 = vpop.xlane.xlu0 %3114
  %v3116 = vsel %vm2602, %v2946, 0.0
  %3117 = vadd.xlane.f32.xlu0 %v3116
  %v3118 = vpop.xlane.xlu0 %3117
  %v3119 = vsel %vm2602, %v2948, 0.0
  %3120 = vadd.xlane.f32.xlu0 %v3119
  %v3121 = vpop.xlane.xlu0 %3120
  %v3122 = vsel %vm2602, %v2950, 0.0
  %3123 = vadd.xlane.f32.xlu0 %v3122
  %v3124 = vpop.xlane.xlu0 %3123
  %v3125 = vsel %vm2602, %v2952, 0.0
  %3126 = vadd.xlane.f32.xlu0 %v3125
  %v3127 = vpop.xlane.xlu0 %3126
  %v3128 = vsel %vm2602, %v2954, 0.0
  %3129 = vadd.xlane.f32.xlu0 %v3128
  %v3130 = vpop.xlane.xlu0 %3129
  %v3131 = vsel %vm2602, %v2956, 0.0
  %3132 = vadd.xlane.f32.xlu0 %v3131
  %v3133 = vpop.xlane.xlu0 %3132
  %v3134 = vsel %vm2602, %v2958, 0.0
  %3135 = vadd.xlane.f32.xlu0 %v3134
  %v3136 = vpop.xlane.xlu0 %3135
  %v3137 = vsel %vm2602, %v2960, 0.0
  %3138 = vadd.xlane.f32.xlu0 %v3137
  %v3139 = vpop.xlane.xlu0 %3138
  %v3140 = vsel %vm2602, %v2962, 0.0
  %3141 = vadd.xlane.f32.xlu0 %v3140
  %v3142 = vpop.xlane.xlu0 %3141
  %v3143 = vsel %vm2602, %v2964, 0.0
  %3144 = vadd.xlane.f32.xlu0 %v3143
  %v3145 = vpop.xlane.xlu0 %3144
  %v3146 = vsel %vm2602, %v2966, 0.0
  %3147 = vadd.xlane.f32.xlu0 %v3146
  %v3148 = vpop.xlane.xlu0 %3147
  %v3149 = vsel %vm2602, %v2968, 0.0
  %3150 = vadd.xlane.f32.xlu0 %v3149
  %v3151 = vpop.xlane.xlu0 %3150
  %v3152 = vsel %vm2602, %v2970, 0.0
  %3153 = vadd.xlane.f32.xlu0 %v3152
  %v3154 = vpop.xlane.xlu0 %3153
  %v3155 = vsel %vm2602, %v2972, 0.0
  %3156 = vadd.xlane.f32.xlu0 %v3155
  %v3157 = vpop.xlane.xlu0 %3156
  %v3158 = vsel %vm2602, %v2974, 0.0
  %3159 = vadd.xlane.f32.xlu0 %v3158
  %v3160 = vpop.xlane.xlu0 %3159
  %v3161 = vsel %vm2602, %v2976, 0.0
  %3162 = vadd.xlane.f32.xlu0 %v3161
  %v3163 = vpop.xlane.xlu0 %3162
  %v3164 = vsel %vm2602, %v2978, 0.0
  %3165 = vadd.xlane.f32.xlu0 %v3164
  %v3166 = vpop.xlane.xlu0 %3165
  %v3167 = vsel %vm2602, %v2980, 0.0
  %3168 = vadd.xlane.f32.xlu0 %v3167
  %v3169 = vpop.xlane.xlu0 %3168
  %v3170 = vsel %vm2602, %v2982, 0.0
  %3171 = vadd.xlane.f32.xlu0 %v3170
  %v3172 = vpop.xlane.xlu0 %3171
  %v3173 = vsel %vm2602, %v2984, 0.0
  %3174 = vadd.xlane.f32.xlu0 %v3173
  %v3175 = vpop.xlane.xlu0 %3174
  %v3176 = vsel %vm2602, %v2986, 0.0
  %3177 = vadd.xlane.f32.xlu0 %v3176
  %v3178 = vpop.xlane.xlu0 %3177
  %v3179 = vrcp.pop %v2989
  %v3180 = vrcp.pop %v2992
  %v3181 = vrcp.pop %v2995
  %v3182 = vrcp.pop %v2998
  %v3183 = vrcp.pop %v3001
  %v3184 = vrcp.pop %v3004
  %v3185 = vrcp.pop %v3007
  %v3186 = vrcp.pop %v3010
  %v3187 = vrcp.pop %v3013
  %v3188 = vrcp.pop %v3016
  %v3189 = vrcp.pop %v3019
  %v3190 = vrcp.pop %v3022
  %v3191 = vrcp.pop %v3025
  %v3192 = vrcp.pop %v3028
  %v3193 = vrcp.pop %v3031
  %v3194 = vrcp.pop %v3034
  %v3195 = vrcp.pop %v3037
  %v3196 = vrcp.pop %v3040
  %v3197 = vrcp.pop %v3043
  %v3198 = vrcp.pop %v3046
  %v3199 = vrcp.pop %v3049
  %v3200 = vrcp.pop %v3052
  %v3201 = vrcp.pop %v3055
  %v3202 = vrcp.pop %v3058
  %v3203 = vrcp.pop %v3061
  %v3204 = vrcp.pop %v3064
  %v3205 = vrcp.pop %v3067
  %v3206 = vrcp.pop %v3070
  %v3207 = vrcp.pop %v3073
  %v3208 = vrcp.pop %v3076
  %v3209 = vrcp.pop %v3079
  %v3210 = vrcp.pop %v3082
  %v3211 = vrcp.pop %v3085
  %v3212 = vrcp.pop %v3088
  %v3213 = vrcp.pop %v3091
  %v3214 = vrcp.pop %v3094
  %v3215 = vrcp.pop %v3097
  %v3216 = vrcp.pop %v3100
  %v3217 = vrcp.pop %v3103
  %v3218 = vrcp.pop %v3106
  %v3219 = vrcp.pop %v3109
  %v3220 = vrcp.pop %v3112
  %v3221 = vrcp.pop %v3115
  %v3222 = vrcp.pop %v3118
  %v3223 = vrcp.pop %v3121
  %v3224 = vrcp.pop %v3124
  %v3225 = vrcp.pop %v3127
  %v3226 = vrcp.pop %v3130
  %v3227 = vrcp.pop %v3133
  %v3228 = vrcp.pop %v3136
  %v3229 = vrcp.pop %v3139
  %v3230 = vrcp.pop %v3142
  %v3231 = vrcp.pop %v3145
  %v3232 = vrcp.pop %v3148
  %v3233 = vrcp.pop %v3151
  %v3234 = vrcp.pop %v3154
  %v3235 = vrcp.pop %v3157
  %v3236 = vrcp.pop %v3160
  %v3237 = vrcp.pop %v3163
  %v3238 = vrcp.pop %v3166
  %v3239 = vrcp.pop %v3169
  %v3240 = vrcp.pop %v3172
  %v3241 = vrcp.pop %v3175
  %v3242 = vrcp.pop %v3178
  %v3243 = vmul.f32 %v2860, %v3179
  %v3244 = vmul.f32 %v2862, %v3180
  %v3245 = vmul.f32 %v2864, %v3181
  %v3246 = vmul.f32 %v2866, %v3182
  %v3247 = vmul.f32 %v2868, %v3183
  %v3248 = vmul.f32 %v2870, %v3184
  %v3249 = vmul.f32 %v2872, %v3185
  %v3250 = vmul.f32 %v2874, %v3186
  %v3251 = vmul.f32 %v2876, %v3187
  %v3252 = vmul.f32 %v2878, %v3188
  %v3253 = vmul.f32 %v2880, %v3189
  %v3254 = vmul.f32 %v2882, %v3190
  %v3255 = vmul.f32 %v2884, %v3191
  %v3256 = vmul.f32 %v2886, %v3192
  %v3257 = vmul.f32 %v2888, %v3193
  %v3258 = vmul.f32 %v2890, %v3194
  %v3259 = vmul.f32 %v2892, %v3195
  %v3260 = vmul.f32 %v2894, %v3196
  %v3261 = vmul.f32 %v2896, %v3197
  %v3262 = vmul.f32 %v2898, %v3198
  %v3263 = vmul.f32 %v2900, %v3199
  %v3264 = vmul.f32 %v2902, %v3200
  %v3265 = vmul.f32 %v2904, %v3201
  %v3266 = vmul.f32 %v2906, %v3202
  %v3267 = vmul.f32 %v2908, %v3203
  %v3268 = vmul.f32 %v2910, %v3204
  %v3269 = vmul.f32 %v2912, %v3205
  %v3270 = vmul.f32 %v2914, %v3206
  %v3271 = vmul.f32 %v2916, %v3207
  %v3272 = vmul.f32 %v2918, %v3208
  %v3273 = vmul.f32 %v2920, %v3209
  %v3274 = vmul.f32 %v2922, %v3210
  %v3275 = vmul.f32 %v2924, %v3211
  %v3276 = vmul.f32 %v2926, %v3212
  %v3277 = vmul.f32 %v2928, %v3213
  %v3278 = vmul.f32 %v2930, %v3214
  %v3279 = vmul.f32 %v2932, %v3215
  %v3280 = vmul.f32 %v2934, %v3216
  %v3281 = vmul.f32 %v2936, %v3217
  %v3282 = vmul.f32 %v2938, %v3218
  %v3283 = vmul.f32 %v2940, %v3219
  %v3284 = vmul.f32 %v2942, %v3220
  %v3285 = vmul.f32 %v2944, %v3221
  %v3286 = vmul.f32 %v2946, %v3222
  %v3287 = vmul.f32 %v2948, %v3223
  %v3288 = vmul.f32 %v2950, %v3224
  %v3289 = vmul.f32 %v2952, %v3225
  %v3290 = vmul.f32 %v2954, %v3226
  %v3291 = vmul.f32 %v2956, %v3227
  %v3292 = vmul.f32 %v2958, %v3228
  %v3293 = vmul.f32 %v2960, %v3229
  %v3294 = vmul.f32 %v2962, %v3230
  %v3295 = vmul.f32 %v2964, %v3231
  %v3296 = vmul.f32 %v2966, %v3232
  %v3297 = vmul.f32 %v2968, %v3233
  %v3298 = vmul.f32 %v2970, %v3234
  %v3299 = vmul.f32 %v2972, %v3235
  %v3300 = vmul.f32 %v2974, %v3236
  %v3301 = vmul.f32 %v2976, %v3237
  %v3302 = vmul.f32 %v2978, %v3238
  %v3303 = vmul.f32 %v2980, %v3239
  %v3304 = vmul.f32 %v2982, %v3240
  %v3305 = vmul.f32 %v2984, %v3241
  %v3306 = vmul.f32 %v2986, %v3242
  %v3307 = vcombine.low %v3243, %v3245
  %v3308 = vcombine.high %v3243, %v3245
  %v3310 = vunpack.c.l.s4 1983009808
  %v3311 = vunpack.c.0.s8 %v3310
  %v3312 = vlaneseq
  %v3313 = vshrl.u32 %v3312, 7
  %v3314 = vsub.s32 %v3311, %v3313
  %v3315 = vrot.slane %v3307, %v3314
  %v3317 = vunpack.c.l.s4 1983009808
  %v3318 = vunpack.c.0.s8 %v3317
  %v3319 = vlaneseq
  %v3320 = vshrl.u32 %v3319, 7
  %v3321 = vsub.s32 %v3318, %v3320
  %v3322 = vrot.slane %v3308, %v3321
  %v3323 = vcombine.low %v3244, %v3246
  %v3324 = vcombine.high %v3244, %v3246
  %v3326 = vunpack.c.l.s4 1983009808
  %v3327 = vunpack.c.0.s8 %v3326
  %v3328 = vlaneseq
  %v3329 = vshrl.u32 %v3328, 7
  %v3330 = vsub.s32 %v3327, %v3329
  %v3331 = vrot.slane %v3323, %v3330
  %v3333 = vunpack.c.l.s4 1983009808
  %v3334 = vunpack.c.0.s8 %v3333
  %v3335 = vlaneseq
  %v3336 = vshrl.u32 %v3335, 7
  %v3337 = vsub.s32 %v3334, %v3336
  %v3338 = vrot.slane %v3324, %v3337
  %v3339 = vcombine.low %v3247, %v3249
  %v3340 = vcombine.high %v3247, %v3249
  %v3342 = vunpack.c.l.s4 1983009808
  %v3343 = vunpack.c.0.s8 %v3342
  %v3344 = vlaneseq
  %v3345 = vshrl.u32 %v3344, 7
  %v3346 = vsub.s32 %v3343, %v3345
  %v3347 = vrot.slane %v3339, %v3346
  %v3349 = vunpack.c.l.s4 1983009808
  %v3350 = vunpack.c.0.s8 %v3349
  %v3351 = vlaneseq
  %v3352 = vshrl.u32 %v3351, 7
  %v3353 = vsub.s32 %v3350, %v3352
  %v3354 = vrot.slane %v3340, %v3353
  %v3355 = vcombine.low %v3248, %v3250
  %v3356 = vcombine.high %v3248, %v3250
  %v3358 = vunpack.c.l.s4 1983009808
  %v3359 = vunpack.c.0.s8 %v3358
  %v3360 = vlaneseq
  %v3361 = vshrl.u32 %v3360, 7
  %v3362 = vsub.s32 %v3359, %v3361
  %v3363 = vrot.slane %v3355, %v3362
  %v3365 = vunpack.c.l.s4 1983009808
  %v3366 = vunpack.c.0.s8 %v3365
  %v3367 = vlaneseq
  %v3368 = vshrl.u32 %v3367, 7
  %v3369 = vsub.s32 %v3366, %v3368
  %v3370 = vrot.slane %v3356, %v3369
  %v3371 = vcombine.low %v3315, %v3331
  %v3372 = vcombine.high %v3315, %v3331
  %v3374 = vunpack.c.l.s4 1934713408
  %v3375 = vunpack.c.0.s8 %v3374
  %v3376 = vlaneseq
  %v3377 = vshrl.u32 %v3376, 7
  %v3378 = vsub.s32 %v3375, %v3377
  %v3379 = vrot.slane %v3371, %v3378
  %v3381 = vunpack.c.l.s4 1934713408
  %v3382 = vunpack.c.0.s8 %v3381
  %v3383 = vlaneseq
  %v3384 = vshrl.u32 %v3383, 7
  %v3385 = vsub.s32 %v3382, %v3384
  %v3386 = vrot.slane %v3372, %v3385
  %v3387 = vcombine.low %v3322, %v3338
  %v3388 = vcombine.high %v3322, %v3338
  %v3390 = vunpack.c.l.s4 1934713408
  %v3391 = vunpack.c.0.s8 %v3390
  %v3392 = vlaneseq
  %v3393 = vshrl.u32 %v3392, 7
  %v3394 = vsub.s32 %v3391, %v3393
  %v3395 = vrot.slane %v3387, %v3394
  %v3397 = vunpack.c.l.s4 1934713408
  %v3398 = vunpack.c.0.s8 %v3397
  %v3399 = vlaneseq
  %v3400 = vshrl.u32 %v3399, 7
  %v3401 = vsub.s32 %v3398, %v3400
  %v3402 = vrot.slane %v3388, %v3401
  %v3403 = vcombine.low %v3347, %v3363
  %v3404 = vcombine.high %v3347, %v3363
  %v3406 = vunpack.c.l.s4 1934713408
  %v3407 = vunpack.c.0.s8 %v3406
  %v3408 = vlaneseq
  %v3409 = vshrl.u32 %v3408, 7
  %v3410 = vsub.s32 %v3407, %v3409
  %v3411 = vrot.slane %v3403, %v3410
  %v3413 = vunpack.c.l.s4 1934713408
  %v3414 = vunpack.c.0.s8 %v3413
  %v3415 = vlaneseq
  %v3416 = vshrl.u32 %v3415, 7
  %v3417 = vsub.s32 %v3414, %v3416
  %v3418 = vrot.slane %v3404, %v3417
  %v3419 = vcombine.low %v3354, %v3370
  %v3420 = vcombine.high %v3354, %v3370
  %v3422 = vunpack.c.l.s4 1934713408
  %v3423 = vunpack.c.0.s8 %v3422
  %v3424 = vlaneseq
  %v3425 = vshrl.u32 %v3424, 7
  %v3426 = vsub.s32 %v3423, %v3425
  %v3427 = vrot.slane %v3419, %v3426
  %v3429 = vunpack.c.l.s4 1934713408
  %v3430 = vunpack.c.0.s8 %v3429
  %v3431 = vlaneseq
  %v3432 = vshrl.u32 %v3431, 7
  %v3433 = vsub.s32 %v3430, %v3432
  %v3434 = vrot.slane %v3420, %v3433
  %v3435 = vcombine.low %v3379, %v3411
  %v3436 = vcombine.high %v3379, %v3411
  %v3437 = vcombine.low %v3386, %v3418
  %v3438 = vcombine.high %v3386, %v3418
  %v3439 = vcombine.low %v3395, %v3427
  %v3440 = vcombine.high %v3395, %v3427
  %v3441 = vcombine.low %v3402, %v3434
  %v3442 = vcombine.high %v3402, %v3434
  %v3443 = vcombine.low %v3251, %v3253
  %v3444 = vcombine.high %v3251, %v3253
  %v3446 = vunpack.c.l.s4 1983009808
  %v3447 = vunpack.c.0.s8 %v3446
  %v3448 = vlaneseq
  %v3449 = vshrl.u32 %v3448, 7
  %v3450 = vsub.s32 %v3447, %v3449
  %v3451 = vrot.slane %v3443, %v3450
  %v3453 = vunpack.c.l.s4 1983009808
  %v3454 = vunpack.c.0.s8 %v3453
  %v3455 = vlaneseq
  %v3456 = vshrl.u32 %v3455, 7
  %v3457 = vsub.s32 %v3454, %v3456
  %v3458 = vrot.slane %v3444, %v3457
  %v3459 = vcombine.low %v3252, %v3254
  %v3460 = vcombine.high %v3252, %v3254
  %v3462 = vunpack.c.l.s4 1983009808
  %v3463 = vunpack.c.0.s8 %v3462
  %v3464 = vlaneseq
  %v3465 = vshrl.u32 %v3464, 7
  %v3466 = vsub.s32 %v3463, %v3465
  %v3467 = vrot.slane %v3459, %v3466
  %v3469 = vunpack.c.l.s4 1983009808
  %v3470 = vunpack.c.0.s8 %v3469
  %v3471 = vlaneseq
  %v3472 = vshrl.u32 %v3471, 7
  %v3473 = vsub.s32 %v3470, %v3472
  %v3474 = vrot.slane %v3460, %v3473
  %v3475 = vcombine.low %v3255, %v3257
  %v3476 = vcombine.high %v3255, %v3257
  %v3478 = vunpack.c.l.s4 1983009808
  %v3479 = vunpack.c.0.s8 %v3478
  %v3480 = vlaneseq
  %v3481 = vshrl.u32 %v3480, 7
  %v3482 = vsub.s32 %v3479, %v3481
  %v3483 = vrot.slane %v3475, %v3482
  %v3485 = vunpack.c.l.s4 1983009808
  %v3486 = vunpack.c.0.s8 %v3485
  %v3487 = vlaneseq
  %v3488 = vshrl.u32 %v3487, 7
  %v3489 = vsub.s32 %v3486, %v3488
  %v3490 = vrot.slane %v3476, %v3489
  %v3491 = vcombine.low %v3256, %v3258
  %v3492 = vcombine.high %v3256, %v3258
  %v3494 = vunpack.c.l.s4 1983009808
  %v3495 = vunpack.c.0.s8 %v3494
  %v3496 = vlaneseq
  %v3497 = vshrl.u32 %v3496, 7
  %v3498 = vsub.s32 %v3495, %v3497
  %v3499 = vrot.slane %v3491, %v3498
  %v3501 = vunpack.c.l.s4 1983009808
  %v3502 = vunpack.c.0.s8 %v3501
  %v3503 = vlaneseq
  %v3504 = vshrl.u32 %v3503, 7
  %v3505 = vsub.s32 %v3502, %v3504
  %v3506 = vrot.slane %v3492, %v3505
  %v3507 = vcombine.low %v3451, %v3467
  %v3508 = vcombine.high %v3451, %v3467
  %v3510 = vunpack.c.l.s4 1934713408
  %v3511 = vunpack.c.0.s8 %v3510
  %v3512 = vlaneseq
  %v3513 = vshrl.u32 %v3512, 7
  %v3514 = vsub.s32 %v3511, %v3513
  %v3515 = vrot.slane %v3507, %v3514
  %v3517 = vunpack.c.l.s4 1934713408
  %v3518 = vunpack.c.0.s8 %v3517
  %v3519 = vlaneseq
  %v3520 = vshrl.u32 %v3519, 7
  %v3521 = vsub.s32 %v3518, %v3520
  %v3522 = vrot.slane %v3508, %v3521
  %v3523 = vcombine.low %v3458, %v3474
  %v3524 = vcombine.high %v3458, %v3474
  %v3526 = vunpack.c.l.s4 1934713408
  %v3527 = vunpack.c.0.s8 %v3526
  %v3528 = vlaneseq
  %v3529 = vshrl.u32 %v3528, 7
  %v3530 = vsub.s32 %v3527, %v3529
  %v3531 = vrot.slane %v3523, %v3530
  %v3533 = vunpack.c.l.s4 1934713408
  %v3534 = vunpack.c.0.s8 %v3533
  %v3535 = vlaneseq
  %v3536 = vshrl.u32 %v3535, 7
  %v3537 = vsub.s32 %v3534, %v3536
  %v3538 = vrot.slane %v3524, %v3537
  %v3539 = vcombine.low %v3483, %v3499
  %v3540 = vcombine.high %v3483, %v3499
  %v3542 = vunpack.c.l.s4 1934713408
  %v3543 = vunpack.c.0.s8 %v3542
  %v3544 = vlaneseq
  %v3545 = vshrl.u32 %v3544, 7
  %v3546 = vsub.s32 %v3543, %v3545
  %v3547 = vrot.slane %v3539, %v3546
  %v3549 = vunpack.c.l.s4 1934713408
  %v3550 = vunpack.c.0.s8 %v3549
  %v3551 = vlaneseq
  %v3552 = vshrl.u32 %v3551, 7
  %v3553 = vsub.s32 %v3550, %v3552
  %v3554 = vrot.slane %v3540, %v3553
  %v3555 = vcombine.low %v3490, %v3506
  %v3556 = vcombine.high %v3490, %v3506
  %v3558 = vunpack.c.l.s4 1934713408
  %v3559 = vunpack.c.0.s8 %v3558
  %v3560 = vlaneseq
  %v3561 = vshrl.u32 %v3560, 7
  %v3562 = vsub.s32 %v3559, %v3561
  %v3563 = vrot.slane %v3555, %v3562
  %v3565 = vunpack.c.l.s4 1934713408
  %v3566 = vunpack.c.0.s8 %v3565
  %v3567 = vlaneseq
  %v3568 = vshrl.u32 %v3567, 7
  %v3569 = vsub.s32 %v3566, %v3568
  %v3570 = vrot.slane %v3556, %v3569
  %v3571 = vcombine.low %v3515, %v3547
  %v3572 = vcombine.high %v3515, %v3547
  %v3573 = vcombine.low %v3522, %v3554
  %v3574 = vcombine.high %v3522, %v3554
  %v3575 = vcombine.low %v3531, %v3563
  %v3576 = vcombine.high %v3531, %v3563
  %v3577 = vcombine.low %v3538, %v3570
  %v3578 = vcombine.high %v3538, %v3570
  %v3579 = vcombine.low %v3259, %v3261
  %v3580 = vcombine.high %v3259, %v3261
  %v3582 = vunpack.c.l.s4 1983009808
  %v3583 = vunpack.c.0.s8 %v3582
  %v3584 = vlaneseq
  %v3585 = vshrl.u32 %v3584, 7
  %v3586 = vsub.s32 %v3583, %v3585
  %v3587 = vrot.slane %v3579, %v3586
  %v3589 = vunpack.c.l.s4 1983009808
  %v3590 = vunpack.c.0.s8 %v3589
  %v3591 = vlaneseq
  %v3592 = vshrl.u32 %v3591, 7
  %v3593 = vsub.s32 %v3590, %v3592
  %v3594 = vrot.slane %v3580, %v3593
  %v3595 = vcombine.low %v3260, %v3262
  %v3596 = vcombine.high %v3260, %v3262
  %v3598 = vunpack.c.l.s4 1983009808
  %v3599 = vunpack.c.0.s8 %v3598
  %v3600 = vlaneseq
  %v3601 = vshrl.u32 %v3600, 7
  %v3602 = vsub.s32 %v3599, %v3601
  %v3603 = vrot.slane %v3595, %v3602
  %v3605 = vunpack.c.l.s4 1983009808
  %v3606 = vunpack.c.0.s8 %v3605
  %v3607 = vlaneseq
  %v3608 = vshrl.u32 %v3607, 7
  %v3609 = vsub.s32 %v3606, %v3608
  %v3610 = vrot.slane %v3596, %v3609
  %v3611 = vcombine.low %v3263, %v3265
  %v3612 = vcombine.high %v3263, %v3265
  %v3614 = vunpack.c.l.s4 1983009808
  %v3615 = vunpack.c.0.s8 %v3614
  %v3616 = vlaneseq
  %v3617 = vshrl.u32 %v3616, 7
  %v3618 = vsub.s32 %v3615, %v3617
  %v3619 = vrot.slane %v3611, %v3618
  %v3621 = vunpack.c.l.s4 1983009808
  %v3622 = vunpack.c.0.s8 %v3621
  %v3623 = vlaneseq
  %v3624 = vshrl.u32 %v3623, 7
  %v3625 = vsub.s32 %v3622, %v3624
  %v3626 = vrot.slane %v3612, %v3625
  %v3627 = vcombine.low %v3264, %v3266
  %v3628 = vcombine.high %v3264, %v3266
  %v3630 = vunpack.c.l.s4 1983009808
  %v3631 = vunpack.c.0.s8 %v3630
  %v3632 = vlaneseq
  %v3633 = vshrl.u32 %v3632, 7
  %v3634 = vsub.s32 %v3631, %v3633
  %v3635 = vrot.slane %v3627, %v3634
  %v3637 = vunpack.c.l.s4 1983009808
  %v3638 = vunpack.c.0.s8 %v3637
  %v3639 = vlaneseq
  %v3640 = vshrl.u32 %v3639, 7
  %v3641 = vsub.s32 %v3638, %v3640
  %v3642 = vrot.slane %v3628, %v3641
  %v3643 = vcombine.low %v3587, %v3603
  %v3644 = vcombine.high %v3587, %v3603
  %v3646 = vunpack.c.l.s4 1934713408
  %v3647 = vunpack.c.0.s8 %v3646
  %v3648 = vlaneseq
  %v3649 = vshrl.u32 %v3648, 7
  %v3650 = vsub.s32 %v3647, %v3649
  %v3651 = vrot.slane %v3643, %v3650
  %v3653 = vunpack.c.l.s4 1934713408
  %v3654 = vunpack.c.0.s8 %v3653
  %v3655 = vlaneseq
  %v3656 = vshrl.u32 %v3655, 7
  %v3657 = vsub.s32 %v3654, %v3656
  %v3658 = vrot.slane %v3644, %v3657
  %v3659 = vcombine.low %v3594, %v3610
  %v3660 = vcombine.high %v3594, %v3610
  %v3662 = vunpack.c.l.s4 1934713408
  %v3663 = vunpack.c.0.s8 %v3662
  %v3664 = vlaneseq
  %v3665 = vshrl.u32 %v3664, 7
  %v3666 = vsub.s32 %v3663, %v3665
  %v3667 = vrot.slane %v3659, %v3666
  %v3669 = vunpack.c.l.s4 1934713408
  %v3670 = vunpack.c.0.s8 %v3669
  %v3671 = vlaneseq
  %v3672 = vshrl.u32 %v3671, 7
  %v3673 = vsub.s32 %v3670, %v3672
  %v3674 = vrot.slane %v3660, %v3673
  %v3675 = vcombine.low %v3619, %v3635
  %v3676 = vcombine.high %v3619, %v3635
  %v3678 = vunpack.c.l.s4 1934713408
  %v3679 = vunpack.c.0.s8 %v3678
  %v3680 = vlaneseq
  %v3681 = vshrl.u32 %v3680, 7
  %v3682 = vsub.s32 %v3679, %v3681
  %v3683 = vrot.slane %v3675, %v3682
  %v3685 = vunpack.c.l.s4 1934713408
  %v3686 = vunpack.c.0.s8 %v3685
  %v3687 = vlaneseq
  %v3688 = vshrl.u32 %v3687, 7
  %v3689 = vsub.s32 %v3686, %v3688
  %v3690 = vrot.slane %v3676, %v3689
  %v3691 = vcombine.low %v3626, %v3642
  %v3692 = vcombine.high %v3626, %v3642
  %v3694 = vunpack.c.l.s4 1934713408
  %v3695 = vunpack.c.0.s8 %v3694
  %v3696 = vlaneseq
  %v3697 = vshrl.u32 %v3696, 7
  %v3698 = vsub.s32 %v3695, %v3697
  %v3699 = vrot.slane %v3691, %v3698
  %v3701 = vunpack.c.l.s4 1934713408
  %v3702 = vunpack.c.0.s8 %v3701
  %v3703 = vlaneseq
  %v3704 = vshrl.u32 %v3703, 7
  %v3705 = vsub.s32 %v3702, %v3704
  %v3706 = vrot.slane %v3692, %v3705
  %v3707 = vcombine.low %v3651, %v3683
  %v3708 = vcombine.high %v3651, %v3683
  %v3709 = vcombine.low %v3658, %v3690
  %v3710 = vcombine.high %v3658, %v3690
  %v3711 = vcombine.low %v3667, %v3699
  %v3712 = vcombine.high %v3667, %v3699
  %v3713 = vcombine.low %v3674, %v3706
  %v3714 = vcombine.high %v3674, %v3706
  %v3715 = vcombine.low %v3267, %v3269
  %v3716 = vcombine.high %v3267, %v3269
  %v3718 = vunpack.c.l.s4 1983009808
  %v3719 = vunpack.c.0.s8 %v3718
  %v3720 = vlaneseq
  %v3721 = vshrl.u32 %v3720, 7
  %v3722 = vsub.s32 %v3719, %v3721
  %v3723 = vrot.slane %v3715, %v3722
  %v3725 = vunpack.c.l.s4 1983009808
  %v3726 = vunpack.c.0.s8 %v3725
  %v3727 = vlaneseq
  %v3728 = vshrl.u32 %v3727, 7
  %v3729 = vsub.s32 %v3726, %v3728
  %v3730 = vrot.slane %v3716, %v3729
  %v3731 = vcombine.low %v3268, %v3270
  %v3732 = vcombine.high %v3268, %v3270
  %v3734 = vunpack.c.l.s4 1983009808
  %v3735 = vunpack.c.0.s8 %v3734
  %v3736 = vlaneseq
  %v3737 = vshrl.u32 %v3736, 7
  %v3738 = vsub.s32 %v3735, %v3737
  %v3739 = vrot.slane %v3731, %v3738
  %v3741 = vunpack.c.l.s4 1983009808
  %v3742 = vunpack.c.0.s8 %v3741
  %v3743 = vlaneseq
  %v3744 = vshrl.u32 %v3743, 7
  %v3745 = vsub.s32 %v3742, %v3744
  %v3746 = vrot.slane %v3732, %v3745
  %v3747 = vcombine.low %v3271, %v3273
  %v3748 = vcombine.high %v3271, %v3273
  %v3750 = vunpack.c.l.s4 1983009808
  %v3751 = vunpack.c.0.s8 %v3750
  %v3752 = vlaneseq
  %v3753 = vshrl.u32 %v3752, 7
  %v3754 = vsub.s32 %v3751, %v3753
  %v3755 = vrot.slane %v3747, %v3754
  %v3757 = vunpack.c.l.s4 1983009808
  %v3758 = vunpack.c.0.s8 %v3757
  %v3759 = vlaneseq
  %v3760 = vshrl.u32 %v3759, 7
  %v3761 = vsub.s32 %v3758, %v3760
  %v3762 = vrot.slane %v3748, %v3761
  %v3763 = vcombine.low %v3272, %v3274
  %v3764 = vcombine.high %v3272, %v3274
  %v3766 = vunpack.c.l.s4 1983009808
  %v3767 = vunpack.c.0.s8 %v3766
  %v3768 = vlaneseq
  %v3769 = vshrl.u32 %v3768, 7
  %v3770 = vsub.s32 %v3767, %v3769
  %v3771 = vrot.slane %v3763, %v3770
  %v3773 = vunpack.c.l.s4 1983009808
  %v3774 = vunpack.c.0.s8 %v3773
  %v3775 = vlaneseq
  %v3776 = vshrl.u32 %v3775, 7
  %v3777 = vsub.s32 %v3774, %v3776
  %v3778 = vrot.slane %v3764, %v3777
  %v3779 = vcombine.low %v3723, %v3739
  %v3780 = vcombine.high %v3723, %v3739
  %v3782 = vunpack.c.l.s4 1934713408
  %v3783 = vunpack.c.0.s8 %v3782
  %v3784 = vlaneseq
  %v3785 = vshrl.u32 %v3784, 7
  %v3786 = vsub.s32 %v3783, %v3785
  %v3787 = vrot.slane %v3779, %v3786
  %v3789 = vunpack.c.l.s4 1934713408
  %v3790 = vunpack.c.0.s8 %v3789
  %v3791 = vlaneseq
  %v3792 = vshrl.u32 %v3791, 7
  %v3793 = vsub.s32 %v3790, %v3792
  %v3794 = vrot.slane %v3780, %v3793
  %v3795 = vcombine.low %v3730, %v3746
  %v3796 = vcombine.high %v3730, %v3746
  %v3798 = vunpack.c.l.s4 1934713408
  %v3799 = vunpack.c.0.s8 %v3798
  %v3800 = vlaneseq
  %v3801 = vshrl.u32 %v3800, 7
  %v3802 = vsub.s32 %v3799, %v3801
  %v3803 = vrot.slane %v3795, %v3802
  %v3805 = vunpack.c.l.s4 1934713408
  %v3806 = vunpack.c.0.s8 %v3805
  %v3807 = vlaneseq
  %v3808 = vshrl.u32 %v3807, 7
  %v3809 = vsub.s32 %v3806, %v3808
  %v3810 = vrot.slane %v3796, %v3809
  %v3811 = vcombine.low %v3755, %v3771
  %v3812 = vcombine.high %v3755, %v3771
  %v3814 = vunpack.c.l.s4 1934713408
  %v3815 = vunpack.c.0.s8 %v3814
  %v3816 = vlaneseq
  %v3817 = vshrl.u32 %v3816, 7
  %v3818 = vsub.s32 %v3815, %v3817
  %v3819 = vrot.slane %v3811, %v3818
  %v3821 = vunpack.c.l.s4 1934713408
  %v3822 = vunpack.c.0.s8 %v3821
  %v3823 = vlaneseq
  %v3824 = vshrl.u32 %v3823, 7
  %v3825 = vsub.s32 %v3822, %v3824
  %v3826 = vrot.slane %v3812, %v3825
  %v3827 = vcombine.low %v3762, %v3778
  %v3828 = vcombine.high %v3762, %v3778
  %v3830 = vunpack.c.l.s4 1934713408
  %v3831 = vunpack.c.0.s8 %v3830
  %v3832 = vlaneseq
  %v3833 = vshrl.u32 %v3832, 7
  %v3834 = vsub.s32 %v3831, %v3833
  %v3835 = vrot.slane %v3827, %v3834
  %v3837 = vunpack.c.l.s4 1934713408
  %v3838 = vunpack.c.0.s8 %v3837
  %v3839 = vlaneseq
  %v3840 = vshrl.u32 %v3839, 7
  %v3841 = vsub.s32 %v3838, %v3840
  %v3842 = vrot.slane %v3828, %v3841
  %v3843 = vcombine.low %v3787, %v3819
  %v3844 = vcombine.high %v3787, %v3819
  %v3845 = vcombine.low %v3794, %v3826
  %v3846 = vcombine.high %v3794, %v3826
  %v3847 = vcombine.low %v3803, %v3835
  %v3848 = vcombine.high %v3803, %v3835
  %v3849 = vcombine.low %v3810, %v3842
  %v3850 = vcombine.high %v3810, %v3842
  %v3851 = vcombine.low %v3275, %v3277
  %v3852 = vcombine.high %v3275, %v3277
  %v3854 = vunpack.c.l.s4 1983009808
  %v3855 = vunpack.c.0.s8 %v3854
  %v3856 = vlaneseq
  %v3857 = vshrl.u32 %v3856, 7
  %v3858 = vsub.s32 %v3855, %v3857
  %v3859 = vrot.slane %v3851, %v3858
  %v3861 = vunpack.c.l.s4 1983009808
  %v3862 = vunpack.c.0.s8 %v3861
  %v3863 = vlaneseq
  %v3864 = vshrl.u32 %v3863, 7
  %v3865 = vsub.s32 %v3862, %v3864
  %v3866 = vrot.slane %v3852, %v3865
  %v3867 = vcombine.low %v3276, %v3278
  %v3868 = vcombine.high %v3276, %v3278
  %v3870 = vunpack.c.l.s4 1983009808
  %v3871 = vunpack.c.0.s8 %v3870
  %v3872 = vlaneseq
  %v3873 = vshrl.u32 %v3872, 7
  %v3874 = vsub.s32 %v3871, %v3873
  %v3875 = vrot.slane %v3867, %v3874
  %v3877 = vunpack.c.l.s4 1983009808
  %v3878 = vunpack.c.0.s8 %v3877
  %v3879 = vlaneseq
  %v3880 = vshrl.u32 %v3879, 7
  %v3881 = vsub.s32 %v3878, %v3880
  %v3882 = vrot.slane %v3868, %v3881
  %v3883 = vcombine.low %v3279, %v3281
  %v3884 = vcombine.high %v3279, %v3281
  %v3886 = vunpack.c.l.s4 1983009808
  %v3887 = vunpack.c.0.s8 %v3886
  %v3888 = vlaneseq
  %v3889 = vshrl.u32 %v3888, 7
  %v3890 = vsub.s32 %v3887, %v3889
  %v3891 = vrot.slane %v3883, %v3890
  %v3893 = vunpack.c.l.s4 1983009808
  %v3894 = vunpack.c.0.s8 %v3893
  %v3895 = vlaneseq
  %v3896 = vshrl.u32 %v3895, 7
  %v3897 = vsub.s32 %v3894, %v3896
  %v3898 = vrot.slane %v3884, %v3897
  %v3899 = vcombine.low %v3280, %v3282
  %v3900 = vcombine.high %v3280, %v3282
  %v3902 = vunpack.c.l.s4 1983009808
  %v3903 = vunpack.c.0.s8 %v3902
  %v3904 = vlaneseq
  %v3905 = vshrl.u32 %v3904, 7
  %v3906 = vsub.s32 %v3903, %v3905
  %v3907 = vrot.slane %v3899, %v3906
  %v3909 = vunpack.c.l.s4 1983009808
  %v3910 = vunpack.c.0.s8 %v3909
  %v3911 = vlaneseq
  %v3912 = vshrl.u32 %v3911, 7
  %v3913 = vsub.s32 %v3910, %v3912
  %v3914 = vrot.slane %v3900, %v3913
  %v3915 = vcombine.low %v3859, %v3875
  %v3916 = vcombine.high %v3859, %v3875
  %v3918 = vunpack.c.l.s4 1934713408
  %v3919 = vunpack.c.0.s8 %v3918
  %v3920 = vlaneseq
  %v3921 = vshrl.u32 %v3920, 7
  %v3922 = vsub.s32 %v3919, %v3921
  %v3923 = vrot.slane %v3915, %v3922
  %v3925 = vunpack.c.l.s4 1934713408
  %v3926 = vunpack.c.0.s8 %v3925
  %v3927 = vlaneseq
  %v3928 = vshrl.u32 %v3927, 7
  %v3929 = vsub.s32 %v3926, %v3928
  %v3930 = vrot.slane %v3916, %v3929
  %v3931 = vcombine.low %v3866, %v3882
  %v3932 = vcombine.high %v3866, %v3882
  %v3934 = vunpack.c.l.s4 1934713408
  %v3935 = vunpack.c.0.s8 %v3934
  %v3936 = vlaneseq
  %v3937 = vshrl.u32 %v3936, 7
  %v3938 = vsub.s32 %v3935, %v3937
  %v3939 = vrot.slane %v3931, %v3938
  %v3941 = vunpack.c.l.s4 1934713408
  %v3942 = vunpack.c.0.s8 %v3941
  %v3943 = vlaneseq
  %v3944 = vshrl.u32 %v3943, 7
  %v3945 = vsub.s32 %v3942, %v3944
  %v3946 = vrot.slane %v3932, %v3945
  %v3947 = vcombine.low %v3891, %v3907
  %v3948 = vcombine.high %v3891, %v3907
  %v3950 = vunpack.c.l.s4 1934713408
  %v3951 = vunpack.c.0.s8 %v3950
  %v3952 = vlaneseq
  %v3953 = vshrl.u32 %v3952, 7
  %v3954 = vsub.s32 %v3951, %v3953
  %v3955 = vrot.slane %v3947, %v3954
  %v3957 = vunpack.c.l.s4 1934713408
  %v3958 = vunpack.c.0.s8 %v3957
  %v3959 = vlaneseq
  %v3960 = vshrl.u32 %v3959, 7
  %v3961 = vsub.s32 %v3958, %v3960
  %v3962 = vrot.slane %v3948, %v3961
  %v3963 = vcombine.low %v3898, %v3914
  %v3964 = vcombine.high %v3898, %v3914
  %v3966 = vunpack.c.l.s4 1934713408
  %v3967 = vunpack.c.0.s8 %v3966
  %v3968 = vlaneseq
  %v3969 = vshrl.u32 %v3968, 7
  %v3970 = vsub.s32 %v3967, %v3969
  %v3971 = vrot.slane %v3963, %v3970
  %v3973 = vunpack.c.l.s4 1934713408
  %v3974 = vunpack.c.0.s8 %v3973
  %v3975 = vlaneseq
  %v3976 = vshrl.u32 %v3975, 7
  %v3977 = vsub.s32 %v3974, %v3976
  %v3978 = vrot.slane %v3964, %v3977
  %v3979 = vcombine.low %v3923, %v3955
  %v3980 = vcombine.high %v3923, %v3955
  %v3981 = vcombine.low %v3930, %v3962
  %v3982 = vcombine.high %v3930, %v3962
  %v3983 = vcombine.low %v3939, %v3971
  %v3984 = vcombine.high %v3939, %v3971
  %v3985 = vcombine.low %v3946, %v3978
  %v3986 = vcombine.high %v3946, %v3978
  %v3987 = vcombine.low %v3283, %v3285
  %v3988 = vcombine.high %v3283, %v3285
  %v3990 = vunpack.c.l.s4 1983009808
  %v3991 = vunpack.c.0.s8 %v3990
  %v3992 = vlaneseq
  %v3993 = vshrl.u32 %v3992, 7
  %v3994 = vsub.s32 %v3991, %v3993
  %v3995 = vrot.slane %v3987, %v3994
  %v3997 = vunpack.c.l.s4 1983009808
  %v3998 = vunpack.c.0.s8 %v3997
  %v3999 = vlaneseq
  %v4000 = vshrl.u32 %v3999, 7
  %v4001 = vsub.s32 %v3998, %v4000
  %v4002 = vrot.slane %v3988, %v4001
  %v4003 = vcombine.low %v3284, %v3286
  %v4004 = vcombine.high %v3284, %v3286
  %v4006 = vunpack.c.l.s4 1983009808
  %v4007 = vunpack.c.0.s8 %v4006
  %v4008 = vlaneseq
  %v4009 = vshrl.u32 %v4008, 7
  %v4010 = vsub.s32 %v4007, %v4009
  %v4011 = vrot.slane %v4003, %v4010
  %v4013 = vunpack.c.l.s4 1983009808
  %v4014 = vunpack.c.0.s8 %v4013
  %v4015 = vlaneseq
  %v4016 = vshrl.u32 %v4015, 7
  %v4017 = vsub.s32 %v4014, %v4016
  %v4018 = vrot.slane %v4004, %v4017
  %v4019 = vcombine.low %v3287, %v3289
  %v4020 = vcombine.high %v3287, %v3289
  %v4022 = vunpack.c.l.s4 1983009808
  %v4023 = vunpack.c.0.s8 %v4022
  %v4024 = vlaneseq
  %v4025 = vshrl.u32 %v4024, 7
  %v4026 = vsub.s32 %v4023, %v4025
  %v4027 = vrot.slane %v4019, %v4026
  %v4029 = vunpack.c.l.s4 1983009808
  %v4030 = vunpack.c.0.s8 %v4029
  %v4031 = vlaneseq
  %v4032 = vshrl.u32 %v4031, 7
  %v4033 = vsub.s32 %v4030, %v4032
  %v4034 = vrot.slane %v4020, %v4033
  %v4035 = vcombine.low %v3288, %v3290
  %v4036 = vcombine.high %v3288, %v3290
  %v4038 = vunpack.c.l.s4 1983009808
  %v4039 = vunpack.c.0.s8 %v4038
  %v4040 = vlaneseq
  %v4041 = vshrl.u32 %v4040, 7
  %v4042 = vsub.s32 %v4039, %v4041
  %v4043 = vrot.slane %v4035, %v4042
  %v4045 = vunpack.c.l.s4 1983009808
  %v4046 = vunpack.c.0.s8 %v4045
  %v4047 = vlaneseq
  %v4048 = vshrl.u32 %v4047, 7
  %v4049 = vsub.s32 %v4046, %v4048
  %v4050 = vrot.slane %v4036, %v4049
  %v4051 = vcombine.low %v3995, %v4011
  %v4052 = vcombine.high %v3995, %v4011
  %v4054 = vunpack.c.l.s4 1934713408
  %v4055 = vunpack.c.0.s8 %v4054
  %v4056 = vlaneseq
  %v4057 = vshrl.u32 %v4056, 7
  %v4058 = vsub.s32 %v4055, %v4057
  %v4059 = vrot.slane %v4051, %v4058
  %v4061 = vunpack.c.l.s4 1934713408
  %v4062 = vunpack.c.0.s8 %v4061
  %v4063 = vlaneseq
  %v4064 = vshrl.u32 %v4063, 7
  %v4065 = vsub.s32 %v4062, %v4064
  %v4066 = vrot.slane %v4052, %v4065
  %v4067 = vcombine.low %v4002, %v4018
  %v4068 = vcombine.high %v4002, %v4018
  %v4070 = vunpack.c.l.s4 1934713408
  %v4071 = vunpack.c.0.s8 %v4070
  %v4072 = vlaneseq
  %v4073 = vshrl.u32 %v4072, 7
  %v4074 = vsub.s32 %v4071, %v4073
  %v4075 = vrot.slane %v4067, %v4074
  %v4077 = vunpack.c.l.s4 1934713408
  %v4078 = vunpack.c.0.s8 %v4077
  %v4079 = vlaneseq
  %v4080 = vshrl.u32 %v4079, 7
  %v4081 = vsub.s32 %v4078, %v4080
  %v4082 = vrot.slane %v4068, %v4081
  %v4083 = vcombine.low %v4027, %v4043
  %v4084 = vcombine.high %v4027, %v4043
  %v4086 = vunpack.c.l.s4 1934713408
  %v4087 = vunpack.c.0.s8 %v4086
  %v4088 = vlaneseq
  %v4089 = vshrl.u32 %v4088, 7
  %v4090 = vsub.s32 %v4087, %v4089
  %v4091 = vrot.slane %v4083, %v4090
  %v4093 = vunpack.c.l.s4 1934713408
  %v4094 = vunpack.c.0.s8 %v4093
  %v4095 = vlaneseq
  %v4096 = vshrl.u32 %v4095, 7
  %v4097 = vsub.s32 %v4094, %v4096
  %v4098 = vrot.slane %v4084, %v4097
  %v4099 = vcombine.low %v4034, %v4050
  %v4100 = vcombine.high %v4034, %v4050
  %v4102 = vunpack.c.l.s4 1934713408
  %v4103 = vunpack.c.0.s8 %v4102
  %v4104 = vlaneseq
  %v4105 = vshrl.u32 %v4104, 7
  %v4106 = vsub.s32 %v4103, %v4105
  %v4107 = vrot.slane %v4099, %v4106
  %v4109 = vunpack.c.l.s4 1934713408
  %v4110 = vunpack.c.0.s8 %v4109
  %v4111 = vlaneseq
  %v4112 = vshrl.u32 %v4111, 7
  %v4113 = vsub.s32 %v4110, %v4112
  %v4114 = vrot.slane %v4100, %v4113
  %v4115 = vcombine.low %v4059, %v4091
  %v4116 = vcombine.high %v4059, %v4091
  %v4117 = vcombine.low %v4066, %v4098
  %v4118 = vcombine.high %v4066, %v4098
  %v4119 = vcombine.low %v4075, %v4107
  %v4120 = vcombine.high %v4075, %v4107
  %v4121 = vcombine.low %v4082, %v4114
  %v4122 = vcombine.high %v4082, %v4114
  %v4123 = vcombine.low %v3291, %v3293
  %v4124 = vcombine.high %v3291, %v3293
  %v4126 = vunpack.c.l.s4 1983009808
  %v4127 = vunpack.c.0.s8 %v4126
  %v4128 = vlaneseq
  %v4129 = vshrl.u32 %v4128, 7
  %v4130 = vsub.s32 %v4127, %v4129
  %v4131 = vrot.slane %v4123, %v4130
  %v4133 = vunpack.c.l.s4 1983009808
  %v4134 = vunpack.c.0.s8 %v4133
  %v4135 = vlaneseq
  %v4136 = vshrl.u32 %v4135, 7
  %v4137 = vsub.s32 %v4134, %v4136
  %v4138 = vrot.slane %v4124, %v4137
  %v4139 = vcombine.low %v3292, %v3294
  %v4140 = vcombine.high %v3292, %v3294
  %v4142 = vunpack.c.l.s4 1983009808
  %v4143 = vunpack.c.0.s8 %v4142
  %v4144 = vlaneseq
  %v4145 = vshrl.u32 %v4144, 7
  %v4146 = vsub.s32 %v4143, %v4145
  %v4147 = vrot.slane %v4139, %v4146
  %v4149 = vunpack.c.l.s4 1983009808
  %v4150 = vunpack.c.0.s8 %v4149
  %v4151 = vlaneseq
  %v4152 = vshrl.u32 %v4151, 7
  %v4153 = vsub.s32 %v4150, %v4152
  %v4154 = vrot.slane %v4140, %v4153
  %v4155 = vcombine.low %v3295, %v3297
  %v4156 = vcombine.high %v3295, %v3297
  %v4158 = vunpack.c.l.s4 1983009808
  %v4159 = vunpack.c.0.s8 %v4158
  %v4160 = vlaneseq
  %v4161 = vshrl.u32 %v4160, 7
  %v4162 = vsub.s32 %v4159, %v4161
  %v4163 = vrot.slane %v4155, %v4162
  %v4165 = vunpack.c.l.s4 1983009808
  %v4166 = vunpack.c.0.s8 %v4165
  %v4167 = vlaneseq
  %v4168 = vshrl.u32 %v4167, 7
  %v4169 = vsub.s32 %v4166, %v4168
  %v4170 = vrot.slane %v4156, %v4169
  %v4171 = vcombine.low %v3296, %v3298
  %v4172 = vcombine.high %v3296, %v3298
  %v4174 = vunpack.c.l.s4 1983009808
  %v4175 = vunpack.c.0.s8 %v4174
  %v4176 = vlaneseq
  %v4177 = vshrl.u32 %v4176, 7
  %v4178 = vsub.s32 %v4175, %v4177
  %v4179 = vrot.slane %v4171, %v4178
  %v4181 = vunpack.c.l.s4 1983009808
  %v4182 = vunpack.c.0.s8 %v4181
  %v4183 = vlaneseq
  %v4184 = vshrl.u32 %v4183, 7
  %v4185 = vsub.s32 %v4182, %v4184
  %v4186 = vrot.slane %v4172, %v4185
  %v4187 = vcombine.low %v4131, %v4147
  %v4188 = vcombine.high %v4131, %v4147
  %v4190 = vunpack.c.l.s4 1934713408
  %v4191 = vunpack.c.0.s8 %v4190
  %v4192 = vlaneseq
  %v4193 = vshrl.u32 %v4192, 7
  %v4194 = vsub.s32 %v4191, %v4193
  %v4195 = vrot.slane %v4187, %v4194
  %v4197 = vunpack.c.l.s4 1934713408
  %v4198 = vunpack.c.0.s8 %v4197
  %v4199 = vlaneseq
  %v4200 = vshrl.u32 %v4199, 7
  %v4201 = vsub.s32 %v4198, %v4200
  %v4202 = vrot.slane %v4188, %v4201
  %v4203 = vcombine.low %v4138, %v4154
  %v4204 = vcombine.high %v4138, %v4154
  %v4206 = vunpack.c.l.s4 1934713408
  %v4207 = vunpack.c.0.s8 %v4206
  %v4208 = vlaneseq
  %v4209 = vshrl.u32 %v4208, 7
  %v4210 = vsub.s32 %v4207, %v4209
  %v4211 = vrot.slane %v4203, %v4210
  %v4213 = vunpack.c.l.s4 1934713408
  %v4214 = vunpack.c.0.s8 %v4213
  %v4215 = vlaneseq
  %v4216 = vshrl.u32 %v4215, 7
  %v4217 = vsub.s32 %v4214, %v4216
  %v4218 = vrot.slane %v4204, %v4217
  %v4219 = vcombine.low %v4163, %v4179
  %v4220 = vcombine.high %v4163, %v4179
  %v4222 = vunpack.c.l.s4 1934713408
  %v4223 = vunpack.c.0.s8 %v4222
  %v4224 = vlaneseq
  %v4225 = vshrl.u32 %v4224, 7
  %v4226 = vsub.s32 %v4223, %v4225
  %v4227 = vrot.slane %v4219, %v4226
  %v4229 = vunpack.c.l.s4 1934713408
  %v4230 = vunpack.c.0.s8 %v4229
  %v4231 = vlaneseq
  %v4232 = vshrl.u32 %v4231, 7
  %v4233 = vsub.s32 %v4230, %v4232
  %v4234 = vrot.slane %v4220, %v4233
  %v4235 = vcombine.low %v4170, %v4186
  %v4236 = vcombine.high %v4170, %v4186
  %v4238 = vunpack.c.l.s4 1934713408
  %v4239 = vunpack.c.0.s8 %v4238
  %v4240 = vlaneseq
  %v4241 = vshrl.u32 %v4240, 7
  %v4242 = vsub.s32 %v4239, %v4241
  %v4243 = vrot.slane %v4235, %v4242
  %v4245 = vunpack.c.l.s4 1934713408
  %v4246 = vunpack.c.0.s8 %v4245
  %v4247 = vlaneseq
  %v4248 = vshrl.u32 %v4247, 7
  %v4249 = vsub.s32 %v4246, %v4248
  %v4250 = vrot.slane %v4236, %v4249
  %v4251 = vcombine.low %v4195, %v4227
  %v4252 = vcombine.high %v4195, %v4227
  %v4253 = vcombine.low %v4202, %v4234
  %v4254 = vcombine.high %v4202, %v4234
  %v4255 = vcombine.low %v4211, %v4243
  %v4256 = vcombine.high %v4211, %v4243
  %v4257 = vcombine.low %v4218, %v4250
  %v4258 = vcombine.high %v4218, %v4250
  %v4259 = vcombine.low %v3299, %v3301
  %v4260 = vcombine.high %v3299, %v3301
  %v4262 = vunpack.c.l.s4 1983009808
  %v4263 = vunpack.c.0.s8 %v4262
  %v4264 = vlaneseq
  %v4265 = vshrl.u32 %v4264, 7
  %v4266 = vsub.s32 %v4263, %v4265
  %v4267 = vrot.slane %v4259, %v4266
  %v4269 = vunpack.c.l.s4 1983009808
  %v4270 = vunpack.c.0.s8 %v4269
  %v4271 = vlaneseq
  %v4272 = vshrl.u32 %v4271, 7
  %v4273 = vsub.s32 %v4270, %v4272
  %v4274 = vrot.slane %v4260, %v4273
  %v4275 = vcombine.low %v3300, %v3302
  %v4276 = vcombine.high %v3300, %v3302
  %v4278 = vunpack.c.l.s4 1983009808
  %v4279 = vunpack.c.0.s8 %v4278
  %v4280 = vlaneseq
  %v4281 = vshrl.u32 %v4280, 7
  %v4282 = vsub.s32 %v4279, %v4281
  %v4283 = vrot.slane %v4275, %v4282
  %v4285 = vunpack.c.l.s4 1983009808
  %v4286 = vunpack.c.0.s8 %v4285
  %v4287 = vlaneseq
  %v4288 = vshrl.u32 %v4287, 7
  %v4289 = vsub.s32 %v4286, %v4288
  %v4290 = vrot.slane %v4276, %v4289
  %v4291 = vcombine.low %v3303, %v3305
  %v4292 = vcombine.high %v3303, %v3305
  %v4294 = vunpack.c.l.s4 1983009808
  %v4295 = vunpack.c.0.s8 %v4294
  %v4296 = vlaneseq
  %v4297 = vshrl.u32 %v4296, 7
  %v4298 = vsub.s32 %v4295, %v4297
  %v4299 = vrot.slane %v4291, %v4298
  %v4301 = vunpack.c.l.s4 1983009808
  %v4302 = vunpack.c.0.s8 %v4301
  %v4303 = vlaneseq
  %v4304 = vshrl.u32 %v4303, 7
  %v4305 = vsub.s32 %v4302, %v4304
  %v4306 = vrot.slane %v4292, %v4305
  %v4307 = vcombine.low %v3304, %v3306
  %v4308 = vcombine.high %v3304, %v3306
  %v4310 = vunpack.c.l.s4 1983009808
  %v4311 = vunpack.c.0.s8 %v4310
  %v4312 = vlaneseq
  %v4313 = vshrl.u32 %v4312, 7
  %v4314 = vsub.s32 %v4311, %v4313
  %v4315 = vrot.slane %v4307, %v4314
  %v4317 = vunpack.c.l.s4 1983009808
  %v4318 = vunpack.c.0.s8 %v4317
  %v4319 = vlaneseq
  %v4320 = vshrl.u32 %v4319, 7
  %v4321 = vsub.s32 %v4318, %v4320
  %v4322 = vrot.slane %v4308, %v4321
  %v4323 = vcombine.low %v4267, %v4283
  %v4324 = vcombine.high %v4267, %v4283
  %v4326 = vunpack.c.l.s4 1934713408
  %v4327 = vunpack.c.0.s8 %v4326
  %v4328 = vlaneseq
  %v4329 = vshrl.u32 %v4328, 7
  %v4330 = vsub.s32 %v4327, %v4329
  %v4331 = vrot.slane %v4323, %v4330
  %v4333 = vunpack.c.l.s4 1934713408
  %v4334 = vunpack.c.0.s8 %v4333
  %v4335 = vlaneseq
  %v4336 = vshrl.u32 %v4335, 7
  %v4337 = vsub.s32 %v4334, %v4336
  %v4338 = vrot.slane %v4324, %v4337
  %v4339 = vcombine.low %v4274, %v4290
  %v4340 = vcombine.high %v4274, %v4290
  %v4342 = vunpack.c.l.s4 1934713408
  %v4343 = vunpack.c.0.s8 %v4342
  %v4344 = vlaneseq
  %v4345 = vshrl.u32 %v4344, 7
  %v4346 = vsub.s32 %v4343, %v4345
  %v4347 = vrot.slane %v4339, %v4346
  %v4349 = vunpack.c.l.s4 1934713408
  %v4350 = vunpack.c.0.s8 %v4349
  %v4351 = vlaneseq
  %v4352 = vshrl.u32 %v4351, 7
  %v4353 = vsub.s32 %v4350, %v4352
  %v4354 = vrot.slane %v4340, %v4353
  %v4355 = vcombine.low %v4299, %v4315
  %v4356 = vcombine.high %v4299, %v4315
  %v4358 = vunpack.c.l.s4 1934713408
  %v4359 = vunpack.c.0.s8 %v4358
  %v4360 = vlaneseq
  %v4361 = vshrl.u32 %v4360, 7
  %v4362 = vsub.s32 %v4359, %v4361
  %v4363 = vrot.slane %v4355, %v4362
  %v4365 = vunpack.c.l.s4 1934713408
  %v4366 = vunpack.c.0.s8 %v4365
  %v4367 = vlaneseq
  %v4368 = vshrl.u32 %v4367, 7
  %v4369 = vsub.s32 %v4366, %v4368
  %v4370 = vrot.slane %v4356, %v4369
  %v4371 = vcombine.low %v4306, %v4322
  %v4372 = vcombine.high %v4306, %v4322
  %v4374 = vunpack.c.l.s4 1934713408
  %v4375 = vunpack.c.0.s8 %v4374
  %v4376 = vlaneseq
  %v4377 = vshrl.u32 %v4376, 7
  %v4378 = vsub.s32 %v4375, %v4377
  %v4379 = vrot.slane %v4371, %v4378
  %v4381 = vunpack.c.l.s4 1934713408
  %v4382 = vunpack.c.0.s8 %v4381
  %v4383 = vlaneseq
  %v4384 = vshrl.u32 %v4383, 7
  %v4385 = vsub.s32 %v4382, %v4384
  %v4386 = vrot.slane %v4372, %v4385
  %v4387 = vcombine.low %v4331, %v4363
  %v4388 = vcombine.high %v4331, %v4363
  %v4389 = vcombine.low %v4338, %v4370
  %v4390 = vcombine.high %v4338, %v4370
  %v4391 = vcombine.low %v4347, %v4379
  %v4392 = vcombine.high %v4347, %v4379
  %v4393 = vcombine.low %v4354, %v4386
  %v4394 = vcombine.high %v4354, %v4386
  %4403 = vrot.lane.b32.xlu0 %v3436, 8
  %v4404 = vpop.permute.xlu0 %4403
  %4405 = vrot.lane.b32.xlu0 %v3572, 8
  %v4406 = vpop.permute.xlu0 %4405
  %4407 = vrot.lane.b32.xlu0 %v3708, 8
  %v4408 = vpop.permute.xlu0 %4407
  %4409 = vrot.lane.b32.xlu0 %v3844, 8
  %v4410 = vpop.permute.xlu0 %4409
  %4411 = vrot.lane.b32.xlu0 %v3980, 8
  %v4412 = vpop.permute.xlu0 %4411
  %4413 = vrot.lane.b32.xlu0 %v4116, 8
  %v4414 = vpop.permute.xlu0 %4413
  %4415 = vrot.lane.b32.xlu0 %v4252, 8
  %v4416 = vpop.permute.xlu0 %4415
  %4417 = vrot.lane.b32.xlu0 %v4388, 8
  %v4418 = vpop.permute.xlu0 %4417
  %4435 = vrot.lane.b32.xlu0 %v3437, 16
  %v4436 = vpop.permute.xlu0 %4435
  %4437 = vrot.lane.b32.xlu0 %v3573, 16
  %v4438 = vpop.permute.xlu0 %4437
  %4439 = vrot.lane.b32.xlu0 %v3709, 16
  %v4440 = vpop.permute.xlu0 %4439
  %4441 = vrot.lane.b32.xlu0 %v3845, 16
  %v4442 = vpop.permute.xlu0 %4441
  %4443 = vrot.lane.b32.xlu0 %v3981, 16
  %v4444 = vpop.permute.xlu0 %4443
  %4445 = vrot.lane.b32.xlu0 %v4117, 16
  %v4446 = vpop.permute.xlu0 %4445
  %4447 = vrot.lane.b32.xlu0 %v4253, 16
  %v4448 = vpop.permute.xlu0 %4447
  %4449 = vrot.lane.b32.xlu0 %v4389, 16
  %v4450 = vpop.permute.xlu0 %4449
  %4467 = vrot.lane.b32.xlu0 %v3438, 24
  %v4468 = vpop.permute.xlu0 %4467
  %4469 = vrot.lane.b32.xlu0 %v3574, 24
  %v4470 = vpop.permute.xlu0 %4469
  %4471 = vrot.lane.b32.xlu0 %v3710, 24
  %v4472 = vpop.permute.xlu0 %4471
  %4473 = vrot.lane.b32.xlu0 %v3846, 24
  %v4474 = vpop.permute.xlu0 %4473
  %4475 = vrot.lane.b32.xlu0 %v3982, 24
  %v4476 = vpop.permute.xlu0 %4475
  %4477 = vrot.lane.b32.xlu0 %v4118, 24
  %v4478 = vpop.permute.xlu0 %4477
  %4479 = vrot.lane.b32.xlu0 %v4254, 24
  %v4480 = vpop.permute.xlu0 %4479
  %4481 = vrot.lane.b32.xlu0 %v4390, 24
  %v4482 = vpop.permute.xlu0 %4481
  %4499 = vrot.lane.b32.xlu0 %v3439, 32
  %v4500 = vpop.permute.xlu0 %4499
  %4501 = vrot.lane.b32.xlu0 %v3575, 32
  %v4502 = vpop.permute.xlu0 %4501
  %4503 = vrot.lane.b32.xlu0 %v3711, 32
  %v4504 = vpop.permute.xlu0 %4503
  %4505 = vrot.lane.b32.xlu0 %v3847, 32
  %v4506 = vpop.permute.xlu0 %4505
  %4507 = vrot.lane.b32.xlu0 %v3983, 32
  %v4508 = vpop.permute.xlu0 %4507
  %4509 = vrot.lane.b32.xlu0 %v4119, 32
  %v4510 = vpop.permute.xlu0 %4509
  %4511 = vrot.lane.b32.xlu0 %v4255, 32
  %v4512 = vpop.permute.xlu0 %4511
  %4513 = vrot.lane.b32.xlu0 %v4391, 32
  %v4514 = vpop.permute.xlu0 %4513
  %4531 = vrot.lane.b32.xlu0 %v3440, 40
  %v4532 = vpop.permute.xlu0 %4531
  %4533 = vrot.lane.b32.xlu0 %v3576, 40
  %v4534 = vpop.permute.xlu0 %4533
  %4535 = vrot.lane.b32.xlu0 %v3712, 40
  %v4536 = vpop.permute.xlu0 %4535
  %4537 = vrot.lane.b32.xlu0 %v3848, 40
  %v4538 = vpop.permute.xlu0 %4537
  %4539 = vrot.lane.b32.xlu0 %v3984, 40
  %v4540 = vpop.permute.xlu0 %4539
  %4541 = vrot.lane.b32.xlu0 %v4120, 40
  %v4542 = vpop.permute.xlu0 %4541
  %4543 = vrot.lane.b32.xlu0 %v4256, 40
  %v4544 = vpop.permute.xlu0 %4543
  %4545 = vrot.lane.b32.xlu0 %v4392, 40
  %v4546 = vpop.permute.xlu0 %4545
  %4563 = vrot.lane.b32.xlu0 %v3441, 48
  %v4564 = vpop.permute.xlu0 %4563
  %4565 = vrot.lane.b32.xlu0 %v3577, 48
  %v4566 = vpop.permute.xlu0 %4565
  %4567 = vrot.lane.b32.xlu0 %v3713, 48
  %v4568 = vpop.permute.xlu0 %4567
  %4569 = vrot.lane.b32.xlu0 %v3849, 48
  %v4570 = vpop.permute.xlu0 %4569
  %4571 = vrot.lane.b32.xlu0 %v3985, 48
  %v4572 = vpop.permute.xlu0 %4571
  %4573 = vrot.lane.b32.xlu0 %v4121, 48
  %v4574 = vpop.permute.xlu0 %4573
  %4575 = vrot.lane.b32.xlu0 %v4257, 48
  %v4576 = vpop.permute.xlu0 %4575
  %4577 = vrot.lane.b32.xlu0 %v4393, 48
  %v4578 = vpop.permute.xlu0 %4577
  %4595 = vrot.lane.b32.xlu0 %v3442, 56
  %v4596 = vpop.permute.xlu0 %4595
  %4597 = vrot.lane.b32.xlu0 %v3578, 56
  %v4598 = vpop.permute.xlu0 %4597
  %4599 = vrot.lane.b32.xlu0 %v3714, 56
  %v4600 = vpop.permute.xlu0 %4599
  %4601 = vrot.lane.b32.xlu0 %v3850, 56
  %v4602 = vpop.permute.xlu0 %4601
  %4603 = vrot.lane.b32.xlu0 %v3986, 56
  %v4604 = vpop.permute.xlu0 %4603
  %4605 = vrot.lane.b32.xlu0 %v4122, 56
  %v4606 = vpop.permute.xlu0 %4605
  %4607 = vrot.lane.b32.xlu0 %v4258, 56
  %v4608 = vpop.permute.xlu0 %4607
  %4609 = vrot.lane.b32.xlu0 %v4394, 56
  %v4610 = vpop.permute.xlu0 %4609
  %v4619 = vsel %vm2602, %v3435, %v4404
  %v4620 = vsel %vm2602, %v3571, %v4406
  %v4621 = vsel %vm2602, %v3707, %v4408
  %v4622 = vsel %vm2602, %v3843, %v4410
  %v4623 = vsel %vm2602, %v3979, %v4412
  %v4624 = vsel %vm2602, %v4115, %v4414
  %v4625 = vsel %vm2602, %v4251, %v4416
  %v4626 = vsel %vm2602, %v4387, %v4418
  %vm4627 = vcmask 130048
  %v4628 = vsel %vm4627, %v4619, %v4436
  %v4629 = vsel %vm4627, %v4620, %v4438
  %v4630 = vsel %vm4627, %v4621, %v4440
  %v4631 = vsel %vm4627, %v4622, %v4442
  %v4632 = vsel %vm4627, %v4623, %v4444
  %v4633 = vsel %vm4627, %v4624, %v4446
  %v4634 = vsel %vm4627, %v4625, %v4448
  %v4635 = vsel %vm4627, %v4626, %v4450
  %vm4636 = vcmask 195584
  %v4637 = vsel %vm4636, %v4628, %v4468
  %v4638 = vsel %vm4636, %v4629, %v4470
  %v4639 = vsel %vm4636, %v4630, %v4472
  %v4640 = vsel %vm4636, %v4631, %v4474
  %v4641 = vsel %vm4636, %v4632, %v4476
  %v4642 = vsel %vm4636, %v4633, %v4478
  %v4643 = vsel %vm4636, %v4634, %v4480
  %v4644 = vsel %vm4636, %v4635, %v4482
  %vm4645 = vcmask 261120
  %v4646 = vsel %vm4645, %v4637, %v4500
  %v4647 = vsel %vm4645, %v4638, %v4502
  %v4648 = vsel %vm4645, %v4639, %v4504
  %v4649 = vsel %vm4645, %v4640, %v4506
  %v4650 = vsel %vm4645, %v4641, %v4508
  %v4651 = vsel %vm4645, %v4642, %v4510
  %v4652 = vsel %vm4645, %v4643, %v4512
  %v4653 = vsel %vm4645, %v4644, %v4514
  %vm4654 = vcmask 326656
  %v4655 = vsel %vm4654, %v4646, %v4532
  %v4656 = vsel %vm4654, %v4647, %v4534
  %v4657 = vsel %vm4654, %v4648, %v4536
  %v4658 = vsel %vm4654, %v4649, %v4538
  %v4659 = vsel %vm4654, %v4650, %v4540
  %v4660 = vsel %vm4654, %v4651, %v4542
  %v4661 = vsel %vm4654, %v4652, %v4544
  %v4662 = vsel %vm4654, %v4653, %v4546
  %vm4663 = vcmask 392192
  %v4664 = vsel %vm4663, %v4655, %v4564
  %v4665 = vsel %vm4663, %v4656, %v4566
  %v4666 = vsel %vm4663, %v4657, %v4568
  %v4667 = vsel %vm4663, %v4658, %v4570
  %v4668 = vsel %vm4663, %v4659, %v4572
  %v4669 = vsel %vm4663, %v4660, %v4574
  %v4670 = vsel %vm4663, %v4661, %v4576
  %v4671 = vsel %vm4663, %v4662, %v4578
  %vm4672 = vcmask 457728
  %v4673 = vsel %vm4672, %v4664, %v4596
  %v4674 = vsel %vm4672, %v4665, %v4598
  %v4675 = vsel %vm4672, %v4666, %v4600
  %v4676 = vsel %vm4672, %v4667, %v4602
  %v4677 = vsel %vm4672, %v4668, %v4604
  %v4678 = vsel %vm4672, %v4669, %v4606
  %v4679 = vsel %vm4672, %v4670, %v4608
  %v4680 = vsel %vm4672, %v4671, %v4610
  %v4682 = vsel %vm97, %v4673, 0
  %4684 = vmatprep.subr.mxu0 0.0
  %4685 = vmatpush1.msra.mxu0 %v362
  %4686 = vmatprep.subr.mxu0 0.0
  %4687 = vmatpush1.msra.mxu0 %v363
  %4688 = vmatprep.subr.mxu0 0.0
  %4689 = vmatpush1.msra.mxu0 %v364
  %4690 = vmatprep.subr.mxu0 0.0
  %4691 = vmatpush1.msra.mxu0 %v365
  %4692 = vmatprep.subr.mxu0 0.0
  %4693 = vmatpush1.msra.mxu0 %v366
  %4694 = vmatprep.subr.mxu0 0.0
  %4695 = vmatpush1.msra.mxu0 %v367
  %4696 = vmatprep.subr.mxu0 0.0
  %4697 = vmatpush1.msra.mxu0 %v368
  %4698 = vmatprep.subr.mxu0 0.0
  %4699 = vmatpush1.msra.mxu0 %v369
  %4700 = vmatprep.subr.mxu0 0.0
  %4701 = vmatpush1.msra.mxu0 0.0
  %4702 = vmatprep.subr.mxu0 0.0
  %4703 = vmatpush1.msra.mxu0 0.0
  %4704 = vmatprep.subr.mxu0 0.0
  %4705 = vmatpush1.msra.mxu0 0.0
  %4706 = vmatprep.subr.mxu0 0.0
  %4707 = vmatpush1.msra.mxu0 0.0
  %4708 = vmatprep.subr.mxu0 0.0
  %4709 = vmatpush1.msra.mxu0 0.0
  %4710 = vmatprep.subr.mxu0 0.0
  %4711 = vmatpush1.msra.mxu0 0.0
  %4712 = vmatprep.subr.mxu0 0.0
  %4713 = vmatpush1.msra.mxu0 0.0
  %4714 = vmatprep.subr.mxu0 0.0
  %4715 = vmatpush1.msra.mxu0 0.0
  %4716 = vmatprep.subr.mxu0 0.0
  %4717 = vmatpush1.msra.mxu0 0.0
  %4718 = vmatprep.subr.mxu0 0.0
  %4719 = vmatpush1.msra.mxu0 0.0
  %4720 = vmatprep.subr.mxu0 0.0
  %4721 = vmatpush1.msra.mxu0 0.0
  %4722 = vmatprep.subr.mxu0 0.0
  %4723 = vmatpush1.msra.mxu0 0.0
  %4724 = vmatprep.subr.mxu0 0.0
  %4725 = vmatpush1.msra.mxu0 0.0
  %4726 = vmatprep.subr.mxu0 0.0
  %4727 = vmatpush1.msra.mxu0 0.0
  %4728 = vmatprep.subr.mxu0 0.0
  %4729 = vmatpush1.msra.mxu0 0.0
  %4730 = vmatprep.subr.mxu0 0.0
  %4731 = vmatpush1.msra.mxu0 0.0
  %4732 = vmatprep.subr.mxu0 0.0
  %4733 = vmatpush1.msra.mxu0 0.0
  %4734 = vmatprep.subr.mxu0 0.0
  %4735 = vmatpush1.msra.mxu0 0.0
  %4736 = vmatprep.subr.mxu0 0.0
  %4737 = vmatpush1.msra.mxu0 0.0
  %4738 = vmatprep.subr.mxu0 0.0
  %4739 = vmatpush1.msra.mxu0 0.0
  %4740 = vmatprep.subr.mxu0 0.0
  %4741 = vmatpush1.msra.mxu0 0.0
  %4742 = vmatprep.subr.mxu0 0.0
  %4743 = vmatpush1.msra.mxu0 0.0
  %4744 = vmatprep.subr.mxu0 0.0
  %4745 = vmatpush1.msra.mxu0 0.0
  %4746 = vmatprep.subr.mxu0 0.0
  %4747 = vmatpush1.msra.mxu0 0.0
  %4748 = vmatprep.mubr.f32.mxu0 0.0
  %4749 = vmatmul.mubr.f32.gmra.mrb[0].mxu0 %v4682
  %v4750 = vpop.f32.mrb[0].mxu0
  %v4751 = vadd.f32 0.0, %v4750
  %v4752 = vpop.f32.mrb[0].mxu0
  %4753 = vdwg.mxu0
  %v4755 = vsel %vm97, %v4674, 0
  %4757 = vmatprep.subr.mxu0 0.0
  %4758 = vmatpush1.msra.mxu0 %v370
  %4759 = vmatprep.subr.mxu0 0.0
  %4760 = vmatpush1.msra.mxu0 %v371
  %4761 = vmatprep.subr.mxu0 0.0
  %4762 = vmatpush1.msra.mxu0 %v372
  %4763 = vmatprep.subr.mxu0 0.0
  %4764 = vmatpush1.msra.mxu0 %v373
  %4765 = vmatprep.subr.mxu0 0.0
  %4766 = vmatpush1.msra.mxu0 %v374
  %4767 = vmatprep.subr.mxu0 0.0
  %4768 = vmatpush1.msra.mxu0 %v375
  %4769 = vmatprep.subr.mxu0 0.0
  %4770 = vmatpush1.msra.mxu0 %v376
  %4771 = vmatprep.subr.mxu0 0.0
  %4772 = vmatpush1.msra.mxu0 %v377
  %4773 = vmatprep.subr.mxu0 0.0
  %4774 = vmatpush1.msra.mxu0 0.0
  %4775 = vmatprep.subr.mxu0 0.0
  %4776 = vmatpush1.msra.mxu0 0.0
  %4777 = vmatprep.subr.mxu0 0.0
  %4778 = vmatpush1.msra.mxu0 0.0
  %4779 = vmatprep.subr.mxu0 0.0
  %4780 = vmatpush1.msra.mxu0 0.0
  %4781 = vmatprep.subr.mxu0 0.0
  %4782 = vmatpush1.msra.mxu0 0.0
  %4783 = vmatprep.subr.mxu0 0.0
  %4784 = vmatpush1.msra.mxu0 0.0
  %4785 = vmatprep.subr.mxu0 0.0
  %4786 = vmatpush1.msra.mxu0 0.0
  %4787 = vmatprep.subr.mxu0 0.0
  %4788 = vmatpush1.msra.mxu0 0.0
  %4789 = vmatprep.subr.mxu0 0.0
  %4790 = vmatpush1.msra.mxu0 0.0
  %4791 = vmatprep.subr.mxu0 0.0
  %4792 = vmatpush1.msra.mxu0 0.0
  %4793 = vmatprep.subr.mxu0 0.0
  %4794 = vmatpush1.msra.mxu0 0.0
  %4795 = vmatprep.subr.mxu0 0.0
  %4796 = vmatpush1.msra.mxu0 0.0
  %4797 = vmatprep.subr.mxu0 0.0
  %4798 = vmatpush1.msra.mxu0 0.0
  %4799 = vmatprep.subr.mxu0 0.0
  %4800 = vmatpush1.msra.mxu0 0.0
  %4801 = vmatprep.subr.mxu0 0.0
  %4802 = vmatpush1.msra.mxu0 0.0
  %4803 = vmatprep.subr.mxu0 0.0
  %4804 = vmatpush1.msra.mxu0 0.0
  %4805 = vmatprep.subr.mxu0 0.0
  %4806 = vmatpush1.msra.mxu0 0.0
  %4807 = vmatprep.subr.mxu0 0.0
  %4808 = vmatpush1.msra.mxu0 0.0
  %4809 = vmatprep.subr.mxu0 0.0
  %4810 = vmatpush1.msra.mxu0 0.0
  %4811 = vmatprep.subr.mxu0 0.0
  %4812 = vmatpush1.msra.mxu0 0.0
  %4813 = vmatprep.subr.mxu0 0.0
  %4814 = vmatpush1.msra.mxu0 0.0
  %4815 = vmatprep.subr.mxu0 0.0
  %4816 = vmatpush1.msra.mxu0 0.0
  %4817 = vmatprep.subr.mxu0 0.0
  %4818 = vmatpush1.msra.mxu0 0.0
  %4819 = vmatprep.subr.mxu0 0.0
  %4820 = vmatpush1.msra.mxu0 0.0
  %4821 = vmatprep.mubr.f32.mxu0 0.0
  %4822 = vmatmul.mubr.f32.gmra.mrb[0].mxu0 %v4755
  %v4823 = vpop.f32.mrb[0].mxu0
  %v4824 = vadd.f32 0.0, %v4823
  %v4825 = vpop.f32.mrb[0].mxu0
  %4826 = vdwg.mxu0
  %v4828 = vsel %vm97, %v4675, 0
  %4830 = vmatprep.subr.mxu0 0.0
  %4831 = vmatpush1.msra.mxu0 %v378
  %4832 = vmatprep.subr.mxu0 0.0
  %4833 = vmatpush1.msra.mxu0 %v379
  %4834 = vmatprep.subr.mxu0 0.0
  %4835 = vmatpush1.msra.mxu0 %v380
  %4836 = vmatprep.subr.mxu0 0.0
  %4837 = vmatpush1.msra.mxu0 %v381
  %4838 = vmatprep.subr.mxu0 0.0
  %4839 = vmatpush1.msra.mxu0 %v382
  %4840 = vmatprep.subr.mxu0 0.0
  %4841 = vmatpush1.msra.mxu0 %v383
  %4842 = vmatprep.subr.mxu0 0.0
  %4843 = vmatpush1.msra.mxu0 %v384
  %4844 = vmatprep.subr.mxu0 0.0
  %4845 = vmatpush1.msra.mxu0 %v385
  %4846 = vmatprep.subr.mxu0 0.0
  %4847 = vmatpush1.msra.mxu0 0.0
  %4848 = vmatprep.subr.mxu0 0.0
  %4849 = vmatpush1.msra.mxu0 0.0
  %4850 = vmatprep.subr.mxu0 0.0
  %4851 = vmatpush1.msra.mxu0 0.0
  %4852 = vmatprep.subr.mxu0 0.0
  %4853 = vmatpush1.msra.mxu0 0.0
  %4854 = vmatprep.subr.mxu0 0.0
  %4855 = vmatpush1.msra.mxu0 0.0
  %4856 = vmatprep.subr.mxu0 0.0
  %4857 = vmatpush1.msra.mxu0 0.0
  %4858 = vmatprep.subr.mxu0 0.0
  %4859 = vmatpush1.msra.mxu0 0.0
  %4860 = vmatprep.subr.mxu0 0.0
  %4861 = vmatpush1.msra.mxu0 0.0
  %4862 = vmatprep.subr.mxu0 0.0
  %4863 = vmatpush1.msra.mxu0 0.0
  %4864 = vmatprep.subr.mxu0 0.0
  %4865 = vmatpush1.msra.mxu0 0.0
  %4866 = vmatprep.subr.mxu0 0.0
  %4867 = vmatpush1.msra.mxu0 0.0
  %4868 = vmatprep.subr.mxu0 0.0
  %4869 = vmatpush1.msra.mxu0 0.0
  %4870 = vmatprep.subr.mxu0 0.0
  %4871 = vmatpush1.msra.mxu0 0.0
  %4872 = vmatprep.subr.mxu0 0.0
  %4873 = vmatpush1.msra.mxu0 0.0
  %4874 = vmatprep.subr.mxu0 0.0
  %4875 = vmatpush1.msra.mxu0 0.0
  %4876 = vmatprep.subr.mxu0 0.0
  %4877 = vmatpush1.msra.mxu0 0.0
  %4878 = vmatprep.subr.mxu0 0.0
  %4879 = vmatpush1.msra.mxu0 0.0
  %4880 = vmatprep.subr.mxu0 0.0
  %4881 = vmatpush1.msra.mxu0 0.0
  %4882 = vmatprep.subr.mxu0 0.0
  %4883 = vmatpush1.msra.mxu0 0.0
  %4884 = vmatprep.subr.mxu0 0.0
  %4885 = vmatpush1.msra.mxu0 0.0
  %4886 = vmatprep.subr.mxu0 0.0
  %4887 = vmatpush1.msra.mxu0 0.0
  %4888 = vmatprep.subr.mxu0 0.0
  %4889 = vmatpush1.msra.mxu0 0.0
  %4890 = vmatprep.subr.mxu0 0.0
  %4891 = vmatpush1.msra.mxu0 0.0
  %4892 = vmatprep.subr.mxu0 0.0
  %4893 = vmatpush1.msra.mxu0 0.0
  %4894 = vmatprep.mubr.f32.mxu0 0.0
  %4895 = vmatmul.mubr.f32.gmra.mrb[0].mxu0 %v4828
  %v4896 = vpop.f32.mrb[0].mxu0
  %v4897 = vadd.f32 0.0, %v4896
  %v4898 = vpop.f32.mrb[0].mxu0
  %4899 = vdwg.mxu0
  %v4901 = vsel %vm97, %v4676, 0
  %4903 = vmatprep.subr.mxu0 0.0
  %4904 = vmatpush1.msra.mxu0 %v386
  %4905 = vmatprep.subr.mxu0 0.0
  %4906 = vmatpush1.msra.mxu0 %v387
  %4907 = vmatprep.subr.mxu0 0.0
  %4908 = vmatpush1.msra.mxu0 %v388
  %4909 = vmatprep.subr.mxu0 0.0
  %4910 = vmatpush1.msra.mxu0 %v389
  %4911 = vmatprep.subr.mxu0 0.0
  %4912 = vmatpush1.msra.mxu0 %v390
  %4913 = vmatprep.subr.mxu0 0.0
  %4914 = vmatpush1.msra.mxu0 %v391
  %4915 = vmatprep.subr.mxu0 0.0
  %4916 = vmatpush1.msra.mxu0 %v392
  %4917 = vmatprep.subr.mxu0 0.0
  %4918 = vmatpush1.msra.mxu0 %v393
  %4919 = vmatprep.subr.mxu0 0.0
  %4920 = vmatpush1.msra.mxu0 0.0
  %4921 = vmatprep.subr.mxu0 0.0
  %4922 = vmatpush1.msra.mxu0 0.0
  %4923 = vmatprep.subr.mxu0 0.0
  %4924 = vmatpush1.msra.mxu0 0.0
  %4925 = vmatprep.subr.mxu0 0.0
  %4926 = vmatpush1.msra.mxu0 0.0
  %4927 = vmatprep.subr.mxu0 0.0
  %4928 = vmatpush1.msra.mxu0 0.0
  %4929 = vmatprep.subr.mxu0 0.0
  %4930 = vmatpush1.msra.mxu0 0.0
  %4931 = vmatprep.subr.mxu0 0.0
  %4932 = vmatpush1.msra.mxu0 0.0
  %4933 = vmatprep.subr.mxu0 0.0
  %4934 = vmatpush1.msra.mxu0 0.0
  %4935 = vmatprep.subr.mxu0 0.0
  %4936 = vmatpush1.msra.mxu0 0.0
  %4937 = vmatprep.subr.mxu0 0.0
  %4938 = vmatpush1.msra.mxu0 0.0
  %4939 = vmatprep.subr.mxu0 0.0
  %4940 = vmatpush1.msra.mxu0 0.0
  %4941 = vmatprep.subr.mxu0 0.0
  %4942 = vmatpush1.msra.mxu0 0.0
  %4943 = vmatprep.subr.mxu0 0.0
  %4944 = vmatpush1.msra.mxu0 0.0
  %4945 = vmatprep.subr.mxu0 0.0
  %4946 = vmatpush1.msra.mxu0 0.0
  %4947 = vmatprep.subr.mxu0 0.0
  %4948 = vmatpush1.msra.mxu0 0.0
  %4949 = vmatprep.subr.mxu0 0.0
  %4950 = vmatpush1.msra.mxu0 0.0
  %4951 = vmatprep.subr.mxu0 0.0
  %4952 = vmatpush1.msra.mxu0 0.0
  %4953 = vmatprep.subr.mxu0 0.0
  %4954 = vmatpush1.msra.mxu0 0.0
  %4955 = vmatprep.subr.mxu0 0.0
  %4956 = vmatpush1.msra.mxu0 0.0
  %4957 = vmatprep.subr.mxu0 0.0
  %4958 = vmatpush1.msra.mxu0 0.0
  %4959 = vmatprep.subr.mxu0 0.0
  %4960 = vmatpush1.msra.mxu0 0.0
  %4961 = vmatprep.subr.mxu0 0.0
  %4962 = vmatpush1.msra.mxu0 0.0
  %4963 = vmatprep.subr.mxu0 0.0
  %4964 = vmatpush1.msra.mxu0 0.0
  %4965 = vmatprep.subr.mxu0 0.0
  %4966 = vmatpush1.msra.mxu0 0.0
  %4967 = vmatprep.mubr.f32.mxu0 0.0
  %4968 = vmatmul.mubr.f32.gmra.mrb[0].mxu0 %v4901
  %v4969 = vpop.f32.mrb[0].mxu0
  %v4970 = vadd.f32 0.0, %v4969
  %v4971 = vpop.f32.mrb[0].mxu0
  %4972 = vdwg.mxu0
  %v4974 = vsel %vm97, %v4677, 0
  %4976 = vmatprep.subr.mxu0 0.0
  %4977 = vmatpush1.msra.mxu0 %v394
  %4978 = vmatprep.subr.mxu0 0.0
  %4979 = vmatpush1.msra.mxu0 %v395
  %4980 = vmatprep.subr.mxu0 0.0
  %4981 = vmatpush1.msra.mxu0 %v396
  %4982 = vmatprep.subr.mxu0 0.0
  %4983 = vmatpush1.msra.mxu0 %v397
  %4984 = vmatprep.subr.mxu0 0.0
  %4985 = vmatpush1.msra.mxu0 %v398
  %4986 = vmatprep.subr.mxu0 0.0
  %4987 = vmatpush1.msra.mxu0 %v399
  %4988 = vmatprep.subr.mxu0 0.0
  %4989 = vmatpush1.msra.mxu0 %v400
  %4990 = vmatprep.subr.mxu0 0.0
  %4991 = vmatpush1.msra.mxu0 %v401
  %4992 = vmatprep.subr.mxu0 0.0
  %4993 = vmatpush1.msra.mxu0 0.0
  %4994 = vmatprep.subr.mxu0 0.0
  %4995 = vmatpush1.msra.mxu0 0.0
  %4996 = vmatprep.subr.mxu0 0.0
  %4997 = vmatpush1.msra.mxu0 0.0
  %4998 = vmatprep.subr.mxu0 0.0
  %4999 = vmatpush1.msra.mxu0 0.0
  %5000 = vmatprep.subr.mxu0 0.0
  %5001 = vmatpush1.msra.mxu0 0.0
  %5002 = vmatprep.subr.mxu0 0.0
  %5003 = vmatpush1.msra.mxu0 0.0
  %5004 = vmatprep.subr.mxu0 0.0
  %5005 = vmatpush1.msra.mxu0 0.0
  %5006 = vmatprep.subr.mxu0 0.0
  %5007 = vmatpush1.msra.mxu0 0.0
  %5008 = vmatprep.subr.mxu0 0.0
  %5009 = vmatpush1.msra.mxu0 0.0
  %5010 = vmatprep.subr.mxu0 0.0
  %5011 = vmatpush1.msra.mxu0 0.0
  %5012 = vmatprep.subr.mxu0 0.0
  %5013 = vmatpush1.msra.mxu0 0.0
  %5014 = vmatprep.subr.mxu0 0.0
  %5015 = vmatpush1.msra.mxu0 0.0
  %5016 = vmatprep.subr.mxu0 0.0
  %5017 = vmatpush1.msra.mxu0 0.0
  %5018 = vmatprep.subr.mxu0 0.0
  %5019 = vmatpush1.msra.mxu0 0.0
  %5020 = vmatprep.subr.mxu0 0.0
  %5021 = vmatpush1.msra.mxu0 0.0
  %5022 = vmatprep.subr.mxu0 0.0
  %5023 = vmatpush1.msra.mxu0 0.0
  %5024 = vmatprep.subr.mxu0 0.0
  %5025 = vmatpush1.msra.mxu0 0.0
  %5026 = vmatprep.subr.mxu0 0.0
  %5027 = vmatpush1.msra.mxu0 0.0
  %5028 = vmatprep.subr.mxu0 0.0
  %5029 = vmatpush1.msra.mxu0 0.0
  %5030 = vmatprep.subr.mxu0 0.0
  %5031 = vmatpush1.msra.mxu0 0.0
  %5032 = vmatprep.subr.mxu0 0.0
  %5033 = vmatpush1.msra.mxu0 0.0
  %5034 = vmatprep.subr.mxu0 0.0
  %5035 = vmatpush1.msra.mxu0 0.0
  %5036 = vmatprep.subr.mxu0 0.0
  %5037 = vmatpush1.msra.mxu0 0.0
  %5038 = vmatprep.subr.mxu0 0.0
  %5039 = vmatpush1.msra.mxu0 0.0
  %5040 = vmatprep.mubr.f32.mxu0 0.0
  %5041 = vmatmul.mubr.f32.gmra.mrb[0].mxu0 %v4974
  %v5042 = vpop.f32.mrb[0].mxu0
  %v5043 = vadd.f32 0.0, %v5042
  %v5044 = vpop.f32.mrb[0].mxu0
  %5045 = vdwg.mxu0
  %v5047 = vsel %vm97, %v4678, 0
  %5049 = vmatprep.subr.mxu0 0.0
  %5050 = vmatpush1.msra.mxu0 %v402
  %5051 = vmatprep.subr.mxu0 0.0
  %5052 = vmatpush1.msra.mxu0 %v403
  %5053 = vmatprep.subr.mxu0 0.0
  %5054 = vmatpush1.msra.mxu0 %v404
  %5055 = vmatprep.subr.mxu0 0.0
  %5056 = vmatpush1.msra.mxu0 %v405
  %5057 = vmatprep.subr.mxu0 0.0
  %5058 = vmatpush1.msra.mxu0 %v406
  %5059 = vmatprep.subr.mxu0 0.0
  %5060 = vmatpush1.msra.mxu0 %v407
  %5061 = vmatprep.subr.mxu0 0.0
  %5062 = vmatpush1.msra.mxu0 %v408
  %5063 = vmatprep.subr.mxu0 0.0
  %5064 = vmatpush1.msra.mxu0 %v409
  %5065 = vmatprep.subr.mxu0 0.0
  %5066 = vmatpush1.msra.mxu0 0.0
  %5067 = vmatprep.subr.mxu0 0.0
  %5068 = vmatpush1.msra.mxu0 0.0
  %5069 = vmatprep.subr.mxu0 0.0
  %5070 = vmatpush1.msra.mxu0 0.0
  %5071 = vmatprep.subr.mxu0 0.0
  %5072 = vmatpush1.msra.mxu0 0.0
  %5073 = vmatprep.subr.mxu0 0.0
  %5074 = vmatpush1.msra.mxu0 0.0
  %5075 = vmatprep.subr.mxu0 0.0
  %5076 = vmatpush1.msra.mxu0 0.0
  %5077 = vmatprep.subr.mxu0 0.0
  %5078 = vmatpush1.msra.mxu0 0.0
  %5079 = vmatprep.subr.mxu0 0.0
  %5080 = vmatpush1.msra.mxu0 0.0
  %5081 = vmatprep.subr.mxu0 0.0
  %5082 = vmatpush1.msra.mxu0 0.0
  %5083 = vmatprep.subr.mxu0 0.0
  %5084 = vmatpush1.msra.mxu0 0.0
  %5085 = vmatprep.subr.mxu0 0.0
  %5086 = vmatpush1.msra.mxu0 0.0
  %5087 = vmatprep.subr.mxu0 0.0
  %5088 = vmatpush1.msra.mxu0 0.0
  %5089 = vmatprep.subr.mxu0 0.0
  %5090 = vmatpush1.msra.mxu0 0.0
  %5091 = vmatprep.subr.mxu0 0.0
  %5092 = vmatpush1.msra.mxu0 0.0
  %5093 = vmatprep.subr.mxu0 0.0
  %5094 = vmatpush1.msra.mxu0 0.0
  %5095 = vmatprep.subr.mxu0 0.0
  %5096 = vmatpush1.msra.mxu0 0.0
  %5097 = vmatprep.subr.mxu0 0.0
  %5098 = vmatpush1.msra.mxu0 0.0
  %5099 = vmatprep.subr.mxu0 0.0
  %5100 = vmatpush1.msra.mxu0 0.0
  %5101 = vmatprep.subr.mxu0 0.0
  %5102 = vmatpush1.msra.mxu0 0.0
  %5103 = vmatprep.subr.mxu0 0.0
  %5104 = vmatpush1.msra.mxu0 0.0
  %5105 = vmatprep.subr.mxu0 0.0
  %5106 = vmatpush1.msra.mxu0 0.0
  %5107 = vmatprep.subr.mxu0 0.0
  %5108 = vmatpush1.msra.mxu0 0.0
  %5109 = vmatprep.subr.mxu0 0.0
  %5110 = vmatpush1.msra.mxu0 0.0
  %5111 = vmatprep.subr.mxu0 0.0
  %5112 = vmatpush1.msra.mxu0 0.0
  %5113 = vmatprep.mubr.f32.mxu0 0.0
  %5114 = vmatmul.mubr.f32.gmra.mrb[0].mxu0 %v5047
  %v5115 = vpop.f32.mrb[0].mxu0
  %v5116 = vadd.f32 0.0, %v5115
  %v5117 = vpop.f32.mrb[0].mxu0
  %5118 = vdwg.mxu0
  %v5120 = vsel %vm97, %v4679, 0
  %5122 = vmatprep.subr.mxu0 0.0
  %5123 = vmatpush1.msra.mxu0 %v410
  %5124 = vmatprep.subr.mxu0 0.0
  %5125 = vmatpush1.msra.mxu0 %v411
  %5126 = vmatprep.subr.mxu0 0.0
  %5127 = vmatpush1.msra.mxu0 %v412
  %5128 = vmatprep.subr.mxu0 0.0
  %5129 = vmatpush1.msra.mxu0 %v413
  %5130 = vmatprep.subr.mxu0 0.0
  %5131 = vmatpush1.msra.mxu0 %v414
  %5132 = vmatprep.subr.mxu0 0.0
  %5133 = vmatpush1.msra.mxu0 %v415
  %5134 = vmatprep.subr.mxu0 0.0
  %5135 = vmatpush1.msra.mxu0 %v416
  %5136 = vmatprep.subr.mxu0 0.0
  %5137 = vmatpush1.msra.mxu0 %v417
  %5138 = vmatprep.subr.mxu0 0.0
  %5139 = vmatpush1.msra.mxu0 0.0
  %5140 = vmatprep.subr.mxu0 0.0
  %5141 = vmatpush1.msra.mxu0 0.0
  %5142 = vmatprep.subr.mxu0 0.0
  %5143 = vmatpush1.msra.mxu0 0.0
  %5144 = vmatprep.subr.mxu0 0.0
  %5145 = vmatpush1.msra.mxu0 0.0
  %5146 = vmatprep.subr.mxu0 0.0
  %5147 = vmatpush1.msra.mxu0 0.0
  %5148 = vmatprep.subr.mxu0 0.0
  %5149 = vmatpush1.msra.mxu0 0.0
  %5150 = vmatprep.subr.mxu0 0.0
  %5151 = vmatpush1.msra.mxu0 0.0
  %5152 = vmatprep.subr.mxu0 0.0
  %5153 = vmatpush1.msra.mxu0 0.0
  %5154 = vmatprep.subr.mxu0 0.0
  %5155 = vmatpush1.msra.mxu0 0.0
  %5156 = vmatprep.subr.mxu0 0.0
  %5157 = vmatpush1.msra.mxu0 0.0
  %5158 = vmatprep.subr.mxu0 0.0
  %5159 = vmatpush1.msra.mxu0 0.0
  %5160 = vmatprep.subr.mxu0 0.0
  %5161 = vmatpush1.msra.mxu0 0.0
  %5162 = vmatprep.subr.mxu0 0.0
  %5163 = vmatpush1.msra.mxu0 0.0
  %5164 = vmatprep.subr.mxu0 0.0
  %5165 = vmatpush1.msra.mxu0 0.0
  %5166 = vmatprep.subr.mxu0 0.0
  %5167 = vmatpush1.msra.mxu0 0.0
  %5168 = vmatprep.subr.mxu0 0.0
  %5169 = vmatpush1.msra.mxu0 0.0
  %5170 = vmatprep.subr.mxu0 0.0
  %5171 = vmatpush1.msra.mxu0 0.0
  %5172 = vmatprep.subr.mxu0 0.0
  %5173 = vmatpush1.msra.mxu0 0.0
  %5174 = vmatprep.subr.mxu0 0.0
  %5175 = vmatpush1.msra.mxu0 0.0
  %5176 = vmatprep.subr.mxu0 0.0
  %5177 = vmatpush1.msra.mxu0 0.0
  %5178 = vmatprep.subr.mxu0 0.0
  %5179 = vmatpush1.msra.mxu0 0.0
  %5180 = vmatprep.subr.mxu0 0.0
  %5181 = vmatpush1.msra.mxu0 0.0
  %5182 = vmatprep.subr.mxu0 0.0
  %5183 = vmatpush1.msra.mxu0 0.0
  %5184 = vmatprep.subr.mxu0 0.0
  %5185 = vmatpush1.msra.mxu0 0.0
  %5186 = vmatprep.mubr.f32.mxu0 0.0
  %5187 = vmatmul.mubr.f32.gmra.mrb[0].mxu0 %v5120
  %v5188 = vpop.f32.mrb[0].mxu0
  %v5189 = vadd.f32 0.0, %v5188
  %v5190 = vpop.f32.mrb[0].mxu0
  %5191 = vdwg.mxu0
  %v5193 = vsel %vm97, %v4680, 0
  %5195 = vmatprep.subr.mxu0 0.0
  %5196 = vmatpush1.msra.mxu0 %v418
  %5197 = vmatprep.subr.mxu0 0.0
  %5198 = vmatpush1.msra.mxu0 %v419
  %5199 = vmatprep.subr.mxu0 0.0
  %5200 = vmatpush1.msra.mxu0 %v420
  %5201 = vmatprep.subr.mxu0 0.0
  %5202 = vmatpush1.msra.mxu0 %v421
  %5203 = vmatprep.subr.mxu0 0.0
  %5204 = vmatpush1.msra.mxu0 %v422
  %5205 = vmatprep.subr.mxu0 0.0
  %5206 = vmatpush1.msra.mxu0 %v423
  %5207 = vmatprep.subr.mxu0 0.0
  %5208 = vmatpush1.msra.mxu0 %v424
  %5209 = vmatprep.subr.mxu0 0.0
  %5210 = vmatpush1.msra.mxu0 %v425
  %5211 = vmatprep.subr.mxu0 0.0
  %5212 = vmatpush1.msra.mxu0 0.0
  %5213 = vmatprep.subr.mxu0 0.0
  %5214 = vmatpush1.msra.mxu0 0.0
  %5215 = vmatprep.subr.mxu0 0.0
  %5216 = vmatpush1.msra.mxu0 0.0
  %5217 = vmatprep.subr.mxu0 0.0
  %5218 = vmatpush1.msra.mxu0 0.0
  %5219 = vmatprep.subr.mxu0 0.0
  %5220 = vmatpush1.msra.mxu0 0.0
  %5221 = vmatprep.subr.mxu0 0.0
  %5222 = vmatpush1.msra.mxu0 0.0
  %5223 = vmatprep.subr.mxu0 0.0
  %5224 = vmatpush1.msra.mxu0 0.0
  %5225 = vmatprep.subr.mxu0 0.0
  %5226 = vmatpush1.msra.mxu0 0.0
  %5227 = vmatprep.subr.mxu0 0.0
  %5228 = vmatpush1.msra.mxu0 0.0
  %5229 = vmatprep.subr.mxu0 0.0
  %5230 = vmatpush1.msra.mxu0 0.0
  %5231 = vmatprep.subr.mxu0 0.0
  %5232 = vmatpush1.msra.mxu0 0.0
  %5233 = vmatprep.subr.mxu0 0.0
  %5234 = vmatpush1.msra.mxu0 0.0
  %5235 = vmatprep.subr.mxu0 0.0
  %5236 = vmatpush1.msra.mxu0 0.0
  %5237 = vmatprep.subr.mxu0 0.0
  %5238 = vmatpush1.msra.mxu0 0.0
  %5239 = vmatprep.subr.mxu0 0.0
  %5240 = vmatpush1.msra.mxu0 0.0
  %5241 = vmatprep.subr.mxu0 0.0
  %5242 = vmatpush1.msra.mxu0 0.0
  %5243 = vmatprep.subr.mxu0 0.0
  %5244 = vmatpush1.msra.mxu0 0.0
  %5245 = vmatprep.subr.mxu0 0.0
  %5246 = vmatpush1.msra.mxu0 0.0
  %5247 = vmatprep.subr.mxu0 0.0
  %5248 = vmatpush1.msra.mxu0 0.0
  %5249 = vmatprep.subr.mxu0 0.0
  %5250 = vmatpush1.msra.mxu0 0.0
  %5251 = vmatprep.subr.mxu0 0.0
  %5252 = vmatpush1.msra.mxu0 0.0
  %5253 = vmatprep.subr.mxu0 0.0
  %5254 = vmatpush1.msra.mxu0 0.0
  %5255 = vmatprep.subr.mxu0 0.0
  %5256 = vmatpush1.msra.mxu0 0.0
  %5257 = vmatprep.subr.mxu0 0.0
  %5258 = vmatpush1.msra.mxu0 0.0
  %5259 = vmatprep.mubr.f32.mxu0 0.0
  %5260 = vmatmul.mubr.f32.gmra.mrb[0].mxu0 %v5193
  %v5261 = vpop.f32.mrb[0].mxu0
  %v5262 = vadd.f32 0.0, %v5261
  %v5263 = vpop.f32.mrb[0].mxu0
  %5264 = vdwg.mxu0
  %v5265 = vcombine.low %v4751, %v4897
  %v5266 = vcombine.high %v4751, %v4897
  %v5268 = vunpack.c.l.s4 1983009808
  %v5269 = vunpack.c.0.s8 %v5268
  %v5270 = vlaneseq
  %v5271 = vshrl.u32 %v5270, 7
  %v5272 = vsub.s32 %v5269, %v5271
  %v5273 = vrot.slane %v5265, %v5272
  %v5275 = vunpack.c.l.s4 1983009808
  %v5276 = vunpack.c.0.s8 %v5275
  %v5277 = vlaneseq
  %v5278 = vshrl.u32 %v5277, 7
  %v5279 = vsub.s32 %v5276, %v5278
  %v5280 = vrot.slane %v5266, %v5279
  %v5281 = vcombine.low %v4824, %v4970
  %v5282 = vcombine.high %v4824, %v4970
  %v5284 = vunpack.c.l.s4 1983009808
  %v5285 = vunpack.c.0.s8 %v5284
  %v5286 = vlaneseq
  %v5287 = vshrl.u32 %v5286, 7
  %v5288 = vsub.s32 %v5285, %v5287
  %v5289 = vrot.slane %v5281, %v5288
  %v5291 = vunpack.c.l.s4 1983009808
  %v5292 = vunpack.c.0.s8 %v5291
  %v5293 = vlaneseq
  %v5294 = vshrl.u32 %v5293, 7
  %v5295 = vsub.s32 %v5292, %v5294
  %v5296 = vrot.slane %v5282, %v5295
  %v5297 = vcombine.low %v5043, %v5189
  %v5298 = vcombine.high %v5043, %v5189
  %v5300 = vunpack.c.l.s4 1983009808
  %v5301 = vunpack.c.0.s8 %v5300
  %v5302 = vlaneseq
  %v5303 = vshrl.u32 %v5302, 7
  %v5304 = vsub.s32 %v5301, %v5303
  %v5305 = vrot.slane %v5297, %v5304
  %v5307 = vunpack.c.l.s4 1983009808
  %v5308 = vunpack.c.0.s8 %v5307
  %v5309 = vlaneseq
  %v5310 = vshrl.u32 %v5309, 7
  %v5311 = vsub.s32 %v5308, %v5310
  %v5312 = vrot.slane %v5298, %v5311
  %v5313 = vcombine.low %v5116, %v5262
  %v5314 = vcombine.high %v5116, %v5262
  %v5316 = vunpack.c.l.s4 1983009808
  %v5317 = vunpack.c.0.s8 %v5316
  %v5318 = vlaneseq
  %v5319 = vshrl.u32 %v5318, 7
  %v5320 = vsub.s32 %v5317, %v5319
  %v5321 = vrot.slane %v5313, %v5320
  %v5323 = vunpack.c.l.s4 1983009808
  %v5324 = vunpack.c.0.s8 %v5323
  %v5325 = vlaneseq
  %v5326 = vshrl.u32 %v5325, 7
  %v5327 = vsub.s32 %v5324, %v5326
  %v5328 = vrot.slane %v5314, %v5327
  %v5329 = vcombine.low %v5273, %v5289
  %v5330 = vcombine.high %v5273, %v5289
  %v5332 = vunpack.c.l.s4 1934713408
  %v5333 = vunpack.c.0.s8 %v5332
  %v5334 = vlaneseq
  %v5335 = vshrl.u32 %v5334, 7
  %v5336 = vsub.s32 %v5333, %v5335
  %v5337 = vrot.slane %v5329, %v5336
  %v5339 = vunpack.c.l.s4 1934713408
  %v5340 = vunpack.c.0.s8 %v5339
  %v5341 = vlaneseq
  %v5342 = vshrl.u32 %v5341, 7
  %v5343 = vsub.s32 %v5340, %v5342
  %v5344 = vrot.slane %v5330, %v5343
  %v5345 = vcombine.low %v5280, %v5296
  %v5346 = vcombine.high %v5280, %v5296
  %v5348 = vunpack.c.l.s4 1934713408
  %v5349 = vunpack.c.0.s8 %v5348
  %v5350 = vlaneseq
  %v5351 = vshrl.u32 %v5350, 7
  %v5352 = vsub.s32 %v5349, %v5351
  %v5353 = vrot.slane %v5345, %v5352
  %v5355 = vunpack.c.l.s4 1934713408
  %v5356 = vunpack.c.0.s8 %v5355
  %v5357 = vlaneseq
  %v5358 = vshrl.u32 %v5357, 7
  %v5359 = vsub.s32 %v5356, %v5358
  %v5360 = vrot.slane %v5346, %v5359
  %v5361 = vcombine.low %v5305, %v5321
  %v5362 = vcombine.high %v5305, %v5321
  %v5364 = vunpack.c.l.s4 1934713408
  %v5365 = vunpack.c.0.s8 %v5364
  %v5366 = vlaneseq
  %v5367 = vshrl.u32 %v5366, 7
  %v5368 = vsub.s32 %v5365, %v5367
  %v5369 = vrot.slane %v5361, %v5368
  %v5371 = vunpack.c.l.s4 1934713408
  %v5372 = vunpack.c.0.s8 %v5371
  %v5373 = vlaneseq
  %v5374 = vshrl.u32 %v5373, 7
  %v5375 = vsub.s32 %v5372, %v5374
  %v5376 = vrot.slane %v5362, %v5375
  %v5377 = vcombine.low %v5312, %v5328
  %v5378 = vcombine.high %v5312, %v5328
  %v5380 = vunpack.c.l.s4 1934713408
  %v5381 = vunpack.c.0.s8 %v5380
  %v5382 = vlaneseq
  %v5383 = vshrl.u32 %v5382, 7
  %v5384 = vsub.s32 %v5381, %v5383
  %v5385 = vrot.slane %v5377, %v5384
  %v5387 = vunpack.c.l.s4 1934713408
  %v5388 = vunpack.c.0.s8 %v5387
  %v5389 = vlaneseq
  %v5390 = vshrl.u32 %v5389, 7
  %v5391 = vsub.s32 %v5388, %v5390
  %v5392 = vrot.slane %v5378, %v5391
  %v5393 = vcombine.low %v5337, %v5369
  %v5394 = vcombine.high %v5337, %v5369
  %v5395 = vcombine.low %v5344, %v5376
  %v5396 = vcombine.high %v5344, %v5376
  %v5397 = vcombine.low %v5353, %v5385
  %v5398 = vcombine.high %v5353, %v5385
  %v5399 = vcombine.low %v5360, %v5392
  %v5400 = vcombine.high %v5360, %v5392
  %5402 = vrot.lane.b32.xlu0 %v5394, 64
  %v5403 = vpop.permute.xlu0 %5402
  %5406 = vrot.lane.b32.xlu0 %v5396, 64
  %v5407 = vpop.permute.xlu0 %5406
  %5410 = vrot.lane.b32.xlu0 %v5398, 64
  %v5411 = vpop.permute.xlu0 %5410
  %5414 = vrot.lane.b32.xlu0 %v5400, 64
  %v5415 = vpop.permute.xlu0 %5414
  %v5417 = vsel %vm97, %v5393, %v5403
  %v5418 = vsel %vm97, %v5395, %v5407
  %v5419 = vsel %vm97, %v5397, %v5411
  %v5420 = vsel %vm97, %v5399, %v5415
  %v5421 = vpack.c.bf16 %v5417, %v5417
  %v5422 = vpack.c.bf16 %v5418, %v5418
  %v5423 = vpack.c.bf16 %v5419, %v5419
  %v5424 = vpack.c.bf16 %v5420, %v5420
  %v5425 = vld [vmem:[%s2] sm:$0xff]
  %v5426 = vld [vmem:[%s2 + $0x8] sm:$0xff]
  %v5427 = vld [vmem:[%s2 + $0x10] sm:$0xff]
  %v5428 = vld [vmem:[%s2 + $0x18] sm:$0xff]
  %v5429 = vld [vmem:[%s2 + $0x20] sm:$0xff]
  %v5430 = vld [vmem:[%s2 + $0x28] sm:$0xff]
  %v5431 = vld [vmem:[%s2 + $0x30] sm:$0xff]
  %v5432 = vld [vmem:[%s2 + $0x38] sm:$0xff]
  %v5433 = vld [vmem:[%s2 + $0x40] sm:$0xff]
  %v5434 = vld [vmem:[%s2 + $0x48] sm:$0xff]
  %v5435 = vld [vmem:[%s2 + $0x50] sm:$0xff]
  %v5436 = vld [vmem:[%s2 + $0x58] sm:$0xff]
  %v5437 = vld [vmem:[%s2 + $0x60] sm:$0xff]
  %v5438 = vld [vmem:[%s2 + $0x68] sm:$0xff]
  %v5439 = vld [vmem:[%s2 + $0x70] sm:$0xff]
  %v5440 = vld [vmem:[%s2 + $0x78] sm:$0xff]
  %v5441 = vld [vmem:[%s2 + $0x80] sm:$0xff]
  %v5442 = vld [vmem:[%s2 + $0x88] sm:$0xff]
  %v5443 = vld [vmem:[%s2 + $0x90] sm:$0xff]
  %v5444 = vld [vmem:[%s2 + $0x98] sm:$0xff]
  %v5445 = vld [vmem:[%s2 + $0xa0] sm:$0xff]
  %v5446 = vld [vmem:[%s2 + $0xa8] sm:$0xff]
  %v5447 = vld [vmem:[%s2 + $0xb0] sm:$0xff]
  %v5448 = vld [vmem:[%s2 + $0xb8] sm:$0xff]
  %v5449 = vld [vmem:[%s2 + $0xc0] sm:$0xff]
  %v5450 = vld [vmem:[%s2 + $0xc8] sm:$0xff]
  %v5451 = vld [vmem:[%s2 + $0xd0] sm:$0xff]
  %v5452 = vld [vmem:[%s2 + $0xd8] sm:$0xff]
  %v5453 = vld [vmem:[%s2 + $0xe0] sm:$0xff]
  %v5454 = vld [vmem:[%s2 + $0xe8] sm:$0xff]
  %v5455 = vld [vmem:[%s2 + $0xf0] sm:$0xff]
  %v5456 = vld [vmem:[%s2 + $0xf8] sm:$0xff]
  %v5457 = vld [vmem:[%s2 + $0x100] sm:$0xff]
  %v5458 = vld [vmem:[%s2 + $0x108] sm:$0xff]
  %v5459 = vld [vmem:[%s2 + $0x110] sm:$0xff]
  %v5460 = vld [vmem:[%s2 + $0x118] sm:$0xff]
  %v5461 = vld [vmem:[%s2 + $0x120] sm:$0xff]
  %v5462 = vld [vmem:[%s2 + $0x128] sm:$0xff]
  %v5463 = vld [vmem:[%s2 + $0x130] sm:$0xff]
  %v5464 = vld [vmem:[%s2 + $0x138] sm:$0xff]
  %v5465 = vld [vmem:[%s2 + $0x140] sm:$0xff]
  %v5466 = vld [vmem:[%s2 + $0x148] sm:$0xff]
  %v5467 = vld [vmem:[%s2 + $0x150] sm:$0xff]
  %v5468 = vld [vmem:[%s2 + $0x158] sm:$0xff]
  %v5469 = vld [vmem:[%s2 + $0x160] sm:$0xff]
  %v5470 = vld [vmem:[%s2 + $0x168] sm:$0xff]
  %v5471 = vld [vmem:[%s2 + $0x170] sm:$0xff]
  %v5472 = vld [vmem:[%s2 + $0x178] sm:$0xff]
  %v5473 = vld [vmem:[%s2 + $0x180] sm:$0xff]
  %v5474 = vld [vmem:[%s2 + $0x188] sm:$0xff]
  %v5475 = vld [vmem:[%s2 + $0x190] sm:$0xff]
  %v5476 = vld [vmem:[%s2 + $0x198] sm:$0xff]
  %v5477 = vld [vmem:[%s2 + $0x1a0] sm:$0xff]
  %v5478 = vld [vmem:[%s2 + $0x1a8] sm:$0xff]
  %v5479 = vld [vmem:[%s2 + $0x1b0] sm:$0xff]
  %v5480 = vld [vmem:[%s2 + $0x1b8] sm:$0xff]
  %v5481 = vld [vmem:[%s2 + $0x1c0] sm:$0xff]
  %v5482 = vld [vmem:[%s2 + $0x1c8] sm:$0xff]
  %v5483 = vld [vmem:[%s2 + $0x1d0] sm:$0xff]
  %v5484 = vld [vmem:[%s2 + $0x1d8] sm:$0xff]
  %v5485 = vld [vmem:[%s2 + $0x1e0] sm:$0xff]
  %v5486 = vld [vmem:[%s2 + $0x1e8] sm:$0xff]
  %v5487 = vld [vmem:[%s2 + $0x1f0] sm:$0xff]
  %v5488 = vld [vmem:[%s2 + $0x1f8] sm:$0xff]
  %v5489 = vld [vmem:[%s2 + $0x200] sm:$0xff]
  %v5490 = vld [vmem:[%s2 + $0x208] sm:$0xff]
  %v5491 = vld [vmem:[%s2 + $0x210] sm:$0xff]
  %v5492 = vld [vmem:[%s2 + $0x218] sm:$0xff]
  %v5493 = vld [vmem:[%s2 + $0x220] sm:$0xff]
  %v5494 = vld [vmem:[%s2 + $0x228] sm:$0xff]
  %v5495 = vld [vmem:[%s2 + $0x230] sm:$0xff]
  %v5496 = vld [vmem:[%s2 + $0x238] sm:$0xff]
  %v5497 = vld [vmem:[%s2 + $0x240] sm:$0xff]
  %v5498 = vld [vmem:[%s2 + $0x248] sm:$0xff]
  %v5499 = vld [vmem:[%s2 + $0x250] sm:$0xff]
  %v5500 = vld [vmem:[%s2 + $0x258] sm:$0xff]
  %v5501 = vld [vmem:[%s2 + $0x260] sm:$0xff]
  %v5502 = vld [vmem:[%s2 + $0x268] sm:$0xff]
  %v5503 = vld [vmem:[%s2 + $0x270] sm:$0xff]
  %v5504 = vld [vmem:[%s2 + $0x278] sm:$0xff]
  %v5505 = vld [vmem:[%s2 + $0x280] sm:$0xff]
  %v5506 = vld [vmem:[%s2 + $0x288] sm:$0xff]
  %v5507 = vld [vmem:[%s2 + $0x290] sm:$0xff]
  %v5508 = vld [vmem:[%s2 + $0x298] sm:$0xff]
  %v5509 = vld [vmem:[%s2 + $0x2a0] sm:$0xff]
  %v5510 = vld [vmem:[%s2 + $0x2a8] sm:$0xff]
  %v5511 = vld [vmem:[%s2 + $0x2b0] sm:$0xff]
  %v5512 = vld [vmem:[%s2 + $0x2b8] sm:$0xff]
  %v5513 = vld [vmem:[%s2 + $0x2c0] sm:$0xff]
  %v5514 = vld [vmem:[%s2 + $0x2c8] sm:$0xff]
  %v5515 = vld [vmem:[%s2 + $0x2d0] sm:$0xff]
  %v5516 = vld [vmem:[%s2 + $0x2d8] sm:$0xff]
  %v5517 = vld [vmem:[%s2 + $0x2e0] sm:$0xff]
  %v5518 = vld [vmem:[%s2 + $0x2e8] sm:$0xff]
  %v5519 = vld [vmem:[%s2 + $0x2f0] sm:$0xff]
  %v5520 = vld [vmem:[%s2 + $0x2f8] sm:$0xff]
  %v5521 = vld [vmem:[%s2 + $0x300] sm:$0xff]
  %v5522 = vld [vmem:[%s2 + $0x308] sm:$0xff]
  %v5523 = vld [vmem:[%s2 + $0x310] sm:$0xff]
  %v5524 = vld [vmem:[%s2 + $0x318] sm:$0xff]
  %v5525 = vld [vmem:[%s2 + $0x320] sm:$0xff]
  %v5526 = vld [vmem:[%s2 + $0x328] sm:$0xff]
  %v5527 = vld [vmem:[%s2 + $0x330] sm:$0xff]
  %v5528 = vld [vmem:[%s2 + $0x338] sm:$0xff]
  %v5529 = vld [vmem:[%s2 + $0x340] sm:$0xff]
  %v5530 = vld [vmem:[%s2 + $0x348] sm:$0xff]
  %v5531 = vld [vmem:[%s2 + $0x350] sm:$0xff]
  %v5532 = vld [vmem:[%s2 + $0x358] sm:$0xff]
  %v5533 = vld [vmem:[%s2 + $0x360] sm:$0xff]
  %v5534 = vld [vmem:[%s2 + $0x368] sm:$0xff]
  %v5535 = vld [vmem:[%s2 + $0x370] sm:$0xff]
  %v5536 = vld [vmem:[%s2 + $0x378] sm:$0xff]
  %v5537 = vld [vmem:[%s2 + $0x380] sm:$0xff]
  %v5538 = vld [vmem:[%s2 + $0x388] sm:$0xff]
  %v5539 = vld [vmem:[%s2 + $0x390] sm:$0xff]
  %v5540 = vld [vmem:[%s2 + $0x398] sm:$0xff]
  %v5541 = vld [vmem:[%s2 + $0x3a0] sm:$0xff]
  %v5542 = vld [vmem:[%s2 + $0x3a8] sm:$0xff]
  %v5543 = vld [vmem:[%s2 + $0x3b0] sm:$0xff]
  %v5544 = vld [vmem:[%s2 + $0x3b8] sm:$0xff]
  %v5545 = vld [vmem:[%s2 + $0x3c0] sm:$0xff]
  %v5546 = vld [vmem:[%s2 + $0x3c8] sm:$0xff]
  %v5547 = vld [vmem:[%s2 + $0x3d0] sm:$0xff]
  %v5548 = vld [vmem:[%s2 + $0x3d8] sm:$0xff]
  %v5549 = vld [vmem:[%s2 + $0x3e0] sm:$0xff]
  %v5550 = vld [vmem:[%s2 + $0x3e8] sm:$0xff]
  %v5551 = vld [vmem:[%s2 + $0x3f0] sm:$0xff]
  %v5552 = vld [vmem:[%s2 + $0x3f8] sm:$0xff]
  %v5553 = vld [vmem:[%s3] sm:$0xf]
  %v5555 = vlaneseq
  %v5556 = vshrl.u32 %v5555, 7
  %v5557 = vsub.s32 0, %v5556
  %v5558 = vrot.slane %v5553, %v5557
  %v5559 = vlaneseq
  %v5560 = vshrl.u32 %v5559, 7
  %v5561 = vsub.s32 1, %v5560
  %v5562 = vrot.slane %v5553, %v5561
  %v5563 = vlaneseq
  %v5564 = vshrl.u32 %v5563, 7
  %v5565 = vsub.s32 2, %v5564
  %v5566 = vrot.slane %v5553, %v5565
  %v5567 = vlaneseq
  %v5568 = vshrl.u32 %v5567, 7
  %v5569 = vsub.s32 3, %v5568
  %v5570 = vrot.slane %v5553, %v5569
  %v5703 = vunpack.c.l.b16 %v5425
  %v5704 = vunpack.c.h.b16 %v5425
  %v5705 = vunpack.c.l.b16 %v5426
  %v5706 = vunpack.c.h.b16 %v5426
  %v5707 = vunpack.c.l.b16 %v5427
  %v5708 = vunpack.c.h.b16 %v5427
  %v5709 = vunpack.c.l.b16 %v5428
  %v5710 = vunpack.c.h.b16 %v5428
  %v5711 = vunpack.c.l.b16 %v5429
  %v5712 = vunpack.c.h.b16 %v5429
  %v5713 = vunpack.c.l.b16 %v5430
  %v5714 = vunpack.c.h.b16 %v5430
  %v5715 = vunpack.c.l.b16 %v5431
  %v5716 = vunpack.c.h.b16 %v5431
  %v5717 = vunpack.c.l.b16 %v5432
  %v5718 = vunpack.c.h.b16 %v5432
  %v5719 = vunpack.c.l.b16 %v5433
  %v5720 = vunpack.c.h.b16 %v5433
  %v5721 = vunpack.c.l.b16 %v5434
  %v5722 = vunpack.c.h.b16 %v5434
  %v5723 = vunpack.c.l.b16 %v5435
  %v5724 = vunpack.c.h.b16 %v5435
  %v5725 = vunpack.c.l.b16 %v5436
  %v5726 = vunpack.c.h.b16 %v5436
  %v5727 = vunpack.c.l.b16 %v5437
  %v5728 = vunpack.c.h.b16 %v5437
  %v5729 = vunpack.c.l.b16 %v5438
  %v5730 = vunpack.c.h.b16 %v5438
  %v5731 = vunpack.c.l.b16 %v5439
  %v5732 = vunpack.c.h.b16 %v5439
  %v5733 = vunpack.c.l.b16 %v5440
  %v5734 = vunpack.c.h.b16 %v5440
  %v5735 = vunpack.c.l.b16 %v5441
  %v5736 = vunpack.c.h.b16 %v5441
  %v5737 = vunpack.c.l.b16 %v5442
  %v5738 = vunpack.c.h.b16 %v5442
  %v5739 = vunpack.c.l.b16 %v5443
  %v5740 = vunpack.c.h.b16 %v5443
  %v5741 = vunpack.c.l.b16 %v5444
  %v5742 = vunpack.c.h.b16 %v5444
  %v5743 = vunpack.c.l.b16 %v5445
  %v5744 = vunpack.c.h.b16 %v5445
  %v5745 = vunpack.c.l.b16 %v5446
  %v5746 = vunpack.c.h.b16 %v5446
  %v5747 = vunpack.c.l.b16 %v5447
  %v5748 = vunpack.c.h.b16 %v5447
  %v5749 = vunpack.c.l.b16 %v5448
  %v5750 = vunpack.c.h.b16 %v5448
  %v5751 = vunpack.c.l.b16 %v5449
  %v5752 = vunpack.c.h.b16 %v5449
  %v5753 = vunpack.c.l.b16 %v5450
  %v5754 = vunpack.c.h.b16 %v5450
  %v5755 = vunpack.c.l.b16 %v5451
  %v5756 = vunpack.c.h.b16 %v5451
  %v5757 = vunpack.c.l.b16 %v5452
  %v5758 = vunpack.c.h.b16 %v5452
  %v5759 = vunpack.c.l.b16 %v5453
  %v5760 = vunpack.c.h.b16 %v5453
  %v5761 = vunpack.c.l.b16 %v5454
  %v5762 = vunpack.c.h.b16 %v5454
  %v5763 = vunpack.c.l.b16 %v5455
  %v5764 = vunpack.c.h.b16 %v5455
  %v5765 = vunpack.c.l.b16 %v5456
  %v5766 = vunpack.c.h.b16 %v5456
  %v5767 = vunpack.c.l.b16 %v5457
  %v5768 = vunpack.c.h.b16 %v5457
  %v5769 = vunpack.c.l.b16 %v5458
  %v5770 = vunpack.c.h.b16 %v5458
  %v5771 = vunpack.c.l.b16 %v5459
  %v5772 = vunpack.c.h.b16 %v5459
  %v5773 = vunpack.c.l.b16 %v5460
  %v5774 = vunpack.c.h.b16 %v5460
  %v5775 = vunpack.c.l.b16 %v5461
  %v5776 = vunpack.c.h.b16 %v5461
  %v5777 = vunpack.c.l.b16 %v5462
  %v5778 = vunpack.c.h.b16 %v5462
  %v5779 = vunpack.c.l.b16 %v5463
  %v5780 = vunpack.c.h.b16 %v5463
  %v5781 = vunpack.c.l.b16 %v5464
  %v5782 = vunpack.c.h.b16 %v5464
  %v5783 = vunpack.c.l.b16 %v5465
  %v5784 = vunpack.c.h.b16 %v5465
  %v5785 = vunpack.c.l.b16 %v5466
  %v5786 = vunpack.c.h.b16 %v5466
  %v5787 = vunpack.c.l.b16 %v5467
  %v5788 = vunpack.c.h.b16 %v5467
  %v5789 = vunpack.c.l.b16 %v5468
  %v5790 = vunpack.c.h.b16 %v5468
  %v5791 = vunpack.c.l.b16 %v5469
  %v5792 = vunpack.c.h.b16 %v5469
  %v5793 = vunpack.c.l.b16 %v5470
  %v5794 = vunpack.c.h.b16 %v5470
  %v5795 = vunpack.c.l.b16 %v5471
  %v5796 = vunpack.c.h.b16 %v5471
  %v5797 = vunpack.c.l.b16 %v5472
  %v5798 = vunpack.c.h.b16 %v5472
  %v5799 = vunpack.c.l.b16 %v5473
  %v5800 = vunpack.c.h.b16 %v5473
  %v5801 = vunpack.c.l.b16 %v5474
  %v5802 = vunpack.c.h.b16 %v5474
  %v5803 = vunpack.c.l.b16 %v5475
  %v5804 = vunpack.c.h.b16 %v5475
  %v5805 = vunpack.c.l.b16 %v5476
  %v5806 = vunpack.c.h.b16 %v5476
  %v5807 = vunpack.c.l.b16 %v5477
  %v5808 = vunpack.c.h.b16 %v5477
  %v5809 = vunpack.c.l.b16 %v5478
  %v5810 = vunpack.c.h.b16 %v5478
  %v5811 = vunpack.c.l.b16 %v5479
  %v5812 = vunpack.c.h.b16 %v5479
  %v5813 = vunpack.c.l.b16 %v5480
  %v5814 = vunpack.c.h.b16 %v5480
  %v5815 = vunpack.c.l.b16 %v5481
  %v5816 = vunpack.c.h.b16 %v5481
  %v5817 = vunpack.c.l.b16 %v5482
  %v5818 = vunpack.c.h.b16 %v5482
  %v5819 = vunpack.c.l.b16 %v5483
  %v5820 = vunpack.c.h.b16 %v5483
  %v5821 = vunpack.c.l.b16 %v5484
  %v5822 = vunpack.c.h.b16 %v5484
  %v5823 = vunpack.c.l.b16 %v5485
  %v5824 = vunpack.c.h.b16 %v5485
  %v5825 = vunpack.c.l.b16 %v5486
  %v5826 = vunpack.c.h.b16 %v5486
  %v5827 = vunpack.c.l.b16 %v5487
  %v5828 = vunpack.c.h.b16 %v5487
  %v5829 = vunpack.c.l.b16 %v5488
  %v5830 = vunpack.c.h.b16 %v5488
  %v5831 = vunpack.c.l.b16 %v5489
  %v5832 = vunpack.c.h.b16 %v5489
  %v5833 = vunpack.c.l.b16 %v5490
  %v5834 = vunpack.c.h.b16 %v5490
  %v5835 = vunpack.c.l.b16 %v5491
  %v5836 = vunpack.c.h.b16 %v5491
  %v5837 = vunpack.c.l.b16 %v5492
  %v5838 = vunpack.c.h.b16 %v5492
  %v5839 = vunpack.c.l.b16 %v5493
  %v5840 = vunpack.c.h.b16 %v5493
  %v5841 = vunpack.c.l.b16 %v5494
  %v5842 = vunpack.c.h.b16 %v5494
  %v5843 = vunpack.c.l.b16 %v5495
  %v5844 = vunpack.c.h.b16 %v5495
  %v5845 = vunpack.c.l.b16 %v5496
  %v5846 = vunpack.c.h.b16 %v5496
  %v5847 = vunpack.c.l.b16 %v5497
  %v5848 = vunpack.c.h.b16 %v5497
  %v5849 = vunpack.c.l.b16 %v5498
  %v5850 = vunpack.c.h.b16 %v5498
  %v5851 = vunpack.c.l.b16 %v5499
  %v5852 = vunpack.c.h.b16 %v5499
  %v5853 = vunpack.c.l.b16 %v5500
  %v5854 = vunpack.c.h.b16 %v5500
  %v5855 = vunpack.c.l.b16 %v5501
  %v5856 = vunpack.c.h.b16 %v5501
  %v5857 = vunpack.c.l.b16 %v5502
  %v5858 = vunpack.c.h.b16 %v5502
  %v5859 = vunpack.c.l.b16 %v5503
  %v5860 = vunpack.c.h.b16 %v5503
  %v5861 = vunpack.c.l.b16 %v5504
  %v5862 = vunpack.c.h.b16 %v5504
  %v5863 = vunpack.c.l.b16 %v5505
  %v5864 = vunpack.c.h.b16 %v5505
  %v5865 = vunpack.c.l.b16 %v5506
  %v5866 = vunpack.c.h.b16 %v5506
  %v5867 = vunpack.c.l.b16 %v5507
  %v5868 = vunpack.c.h.b16 %v5507
  %v5869 = vunpack.c.l.b16 %v5508
  %v5870 = vunpack.c.h.b16 %v5508
  %v5871 = vunpack.c.l.b16 %v5509
  %v5872 = vunpack.c.h.b16 %v5509
  %v5873 = vunpack.c.l.b16 %v5510
  %v5874 = vunpack.c.h.b16 %v5510
  %v5875 = vunpack.c.l.b16 %v5511
  %v5876 = vunpack.c.h.b16 %v5511
  %v5877 = vunpack.c.l.b16 %v5512
  %v5878 = vunpack.c.h.b16 %v5512
  %v5879 = vunpack.c.l.b16 %v5513
  %v5880 = vunpack.c.h.b16 %v5513
  %v5881 = vunpack.c.l.b16 %v5514
  %v5882 = vunpack.c.h.b16 %v5514
  %v5883 = vunpack.c.l.b16 %v5515
  %v5884 = vunpack.c.h.b16 %v5515
  %v5885 = vunpack.c.l.b16 %v5516
  %v5886 = vunpack.c.h.b16 %v5516
  %v5887 = vunpack.c.l.b16 %v5517
  %v5888 = vunpack.c.h.b16 %v5517
  %v5889 = vunpack.c.l.b16 %v5518
  %v5890 = vunpack.c.h.b16 %v5518
  %v5891 = vunpack.c.l.b16 %v5519
  %v5892 = vunpack.c.h.b16 %v5519
  %v5893 = vunpack.c.l.b16 %v5520
  %v5894 = vunpack.c.h.b16 %v5520
  %v5895 = vunpack.c.l.b16 %v5521
  %v5896 = vunpack.c.h.b16 %v5521
  %v5897 = vunpack.c.l.b16 %v5522
  %v5898 = vunpack.c.h.b16 %v5522
  %v5899 = vunpack.c.l.b16 %v5523
  %v5900 = vunpack.c.h.b16 %v5523
  %v5901 = vunpack.c.l.b16 %v5524
  %v5902 = vunpack.c.h.b16 %v5524
  %v5903 = vunpack.c.l.b16 %v5525
  %v5904 = vunpack.c.h.b16 %v5525
  %v5905 = vunpack.c.l.b16 %v5526
  %v5906 = vunpack.c.h.b16 %v5526
  %v5907 = vunpack.c.l.b16 %v5527
  %v5908 = vunpack.c.h.b16 %v5527
  %v5909 = vunpack.c.l.b16 %v5528
  %v5910 = vunpack.c.h.b16 %v5528
  %v5911 = vunpack.c.l.b16 %v5529
  %v5912 = vunpack.c.h.b16 %v5529
  %v5913 = vunpack.c.l.b16 %v5530
  %v5914 = vunpack.c.h.b16 %v5530
  %v5915 = vunpack.c.l.b16 %v5531
  %v5916 = vunpack.c.h.b16 %v5531
  %v5917 = vunpack.c.l.b16 %v5532
  %v5918 = vunpack.c.h.b16 %v5532
  %v5919 = vunpack.c.l.b16 %v5533
  %v5920 = vunpack.c.h.b16 %v5533
  %v5921 = vunpack.c.l.b16 %v5534
  %v5922 = vunpack.c.h.b16 %v5534
  %v5923 = vunpack.c.l.b16 %v5535
  %v5924 = vunpack.c.h.b16 %v5535
  %v5925 = vunpack.c.l.b16 %v5536
  %v5926 = vunpack.c.h.b16 %v5536
  %v5927 = vunpack.c.l.b16 %v5537
  %v5928 = vunpack.c.h.b16 %v5537
  %v5929 = vunpack.c.l.b16 %v5538
  %v5930 = vunpack.c.h.b16 %v5538
  %v5931 = vunpack.c.l.b16 %v5539
  %v5932 = vunpack.c.h.b16 %v5539
  %v5933 = vunpack.c.l.b16 %v5540
  %v5934 = vunpack.c.h.b16 %v5540
  %v5935 = vunpack.c.l.b16 %v5541
  %v5936 = vunpack.c.h.b16 %v5541
  %v5937 = vunpack.c.l.b16 %v5542
  %v5938 = vunpack.c.h.b16 %v5542
  %v5939 = vunpack.c.l.b16 %v5543
  %v5940 = vunpack.c.h.b16 %v5543
  %v5941 = vunpack.c.l.b16 %v5544
  %v5942 = vunpack.c.h.b16 %v5544
  %v5943 = vunpack.c.l.b16 %v5545
  %v5944 = vunpack.c.h.b16 %v5545
  %v5945 = vunpack.c.l.b16 %v5546
  %v5946 = vunpack.c.h.b16 %v5546
  %v5947 = vunpack.c.l.b16 %v5547
  %v5948 = vunpack.c.h.b16 %v5547
  %v5949 = vunpack.c.l.b16 %v5548
  %v5950 = vunpack.c.h.b16 %v5548
  %v5951 = vunpack.c.l.b16 %v5549
  %v5952 = vunpack.c.h.b16 %v5549
  %v5953 = vunpack.c.l.b16 %v5550
  %v5954 = vunpack.c.h.b16 %v5550
  %v5955 = vunpack.c.l.b16 %v5551
  %v5956 = vunpack.c.h.b16 %v5551
  %v5957 = vunpack.c.l.b16 %v5552
  %v5958 = vunpack.c.h.b16 %v5552
  %v5959 = vpack.c.b16 %v5707, %v5703
  %v5960 = vpack.c.b16 %v5708, %v5704
  %v5961 = vpack.c.b16 %v5709, %v5705
  %v5962 = vpack.c.b16 %v5710, %v5706
  %v5963 = vpack.c.b16 %v5715, %v5711
  %v5964 = vpack.c.b16 %v5716, %v5712
  %v5965 = vpack.c.b16 %v5717, %v5713
  %v5966 = vpack.c.b16 %v5718, %v5714
  %v5967 = vpack.c.b16 %v5723, %v5719
  %v5968 = vpack.c.b16 %v5724, %v5720
  %v5969 = vpack.c.b16 %v5725, %v5721
  %v5970 = vpack.c.b16 %v5726, %v5722
  %v5971 = vpack.c.b16 %v5731, %v5727
  %v5972 = vpack.c.b16 %v5732, %v5728
  %v5973 = vpack.c.b16 %v5733, %v5729
  %v5974 = vpack.c.b16 %v5734, %v5730
  %v5975 = vpack.c.b16 %v5739, %v5735
  %v5976 = vpack.c.b16 %v5740, %v5736
  %v5977 = vpack.c.b16 %v5741, %v5737
  %v5978 = vpack.c.b16 %v5742, %v5738
  %v5979 = vpack.c.b16 %v5747, %v5743
  %v5980 = vpack.c.b16 %v5748, %v5744
  %v5981 = vpack.c.b16 %v5749, %v5745
  %v5982 = vpack.c.b16 %v5750, %v5746
  %v5983 = vpack.c.b16 %v5755, %v5751
  %v5984 = vpack.c.b16 %v5756, %v5752
  %v5985 = vpack.c.b16 %v5757, %v5753
  %v5986 = vpack.c.b16 %v5758, %v5754
  %v5987 = vpack.c.b16 %v5763, %v5759
  %v5988 = vpack.c.b16 %v5764, %v5760
  %v5989 = vpack.c.b16 %v5765, %v5761
  %v5990 = vpack.c.b16 %v5766, %v5762
  %v5991 = vpack.c.b16 %v5771, %v5767
  %v5992 = vpack.c.b16 %v5772, %v5768
  %v5993 = vpack.c.b16 %v5773, %v5769
  %v5994 = vpack.c.b16 %v5774, %v5770
  %v5995 = vpack.c.b16 %v5779, %v5775
  %v5996 = vpack.c.b16 %v5780, %v5776
  %v5997 = vpack.c.b16 %v5781, %v5777
  %v5998 = vpack.c.b16 %v5782, %v5778
  %v5999 = vpack.c.b16 %v5787, %v5783
  %v6000 = vpack.c.b16 %v5788, %v5784
  %v6001 = vpack.c.b16 %v5789, %v5785
  %v6002 = vpack.c.b16 %v5790, %v5786
  %v6003 = vpack.c.b16 %v5795, %v5791
  %v6004 = vpack.c.b16 %v5796, %v5792
  %v6005 = vpack.c.b16 %v5797, %v5793
  %v6006 = vpack.c.b16 %v5798, %v5794
  %v6007 = vpack.c.b16 %v5803, %v5799
  %v6008 = vpack.c.b16 %v5804, %v5800
  %v6009 = vpack.c.b16 %v5805, %v5801
  %v6010 = vpack.c.b16 %v5806, %v5802
  %v6011 = vpack.c.b16 %v5811, %v5807
  %v6012 = vpack.c.b16 %v5812, %v5808
  %v6013 = vpack.c.b16 %v5813, %v5809
  %v6014 = vpack.c.b16 %v5814, %v5810
  %v6015 = vpack.c.b16 %v5819, %v5815
  %v6016 = vpack.c.b16 %v5820, %v5816
  %v6017 = vpack.c.b16 %v5821, %v5817
  %v6018 = vpack.c.b16 %v5822, %v5818
  %v6019 = vpack.c.b16 %v5827, %v5823
  %v6020 = vpack.c.b16 %v5828, %v5824
  %v6021 = vpack.c.b16 %v5829, %v5825
  %v6022 = vpack.c.b16 %v5830, %v5826
  %v6023 = vpack.c.b16 %v5835, %v5831
  %v6024 = vpack.c.b16 %v5836, %v5832
  %v6025 = vpack.c.b16 %v5837, %v5833
  %v6026 = vpack.c.b16 %v5838, %v5834
  %v6027 = vpack.c.b16 %v5843, %v5839
  %v6028 = vpack.c.b16 %v5844, %v5840
  %v6029 = vpack.c.b16 %v5845, %v5841
  %v6030 = vpack.c.b16 %v5846, %v5842
  %v6031 = vpack.c.b16 %v5851, %v5847
  %v6032 = vpack.c.b16 %v5852, %v5848
  %v6033 = vpack.c.b16 %v5853, %v5849
  %v6034 = vpack.c.b16 %v5854, %v5850
  %v6035 = vpack.c.b16 %v5859, %v5855
  %v6036 = vpack.c.b16 %v5860, %v5856
  %v6037 = vpack.c.b16 %v5861, %v5857
  %v6038 = vpack.c.b16 %v5862, %v5858
  %v6039 = vpack.c.b16 %v5867, %v5863
  %v6040 = vpack.c.b16 %v5868, %v5864
  %v6041 = vpack.c.b16 %v5869, %v5865
  %v6042 = vpack.c.b16 %v5870, %v5866
  %v6043 = vpack.c.b16 %v5875, %v5871
  %v6044 = vpack.c.b16 %v5876, %v5872
  %v6045 = vpack.c.b16 %v5877, %v5873
  %v6046 = vpack.c.b16 %v5878, %v5874
  %v6047 = vpack.c.b16 %v5883, %v5879
  %v6048 = vpack.c.b16 %v5884, %v5880
  %v6049 = vpack.c.b16 %v5885, %v5881
  %v6050 = vpack.c.b16 %v5886, %v5882
  %v6051 = vpack.c.b16 %v5891, %v5887
  %v6052 = vpack.c.b16 %v5892, %v5888
  %v6053 = vpack.c.b16 %v5893, %v5889
  %v6054 = vpack.c.b16 %v5894, %v5890
  %v6055 = vpack.c.b16 %v5899, %v5895
  %v6056 = vpack.c.b16 %v5900, %v5896
  %v6057 = vpack.c.b16 %v5901, %v5897
  %v6058 = vpack.c.b16 %v5902, %v5898
  %v6059 = vpack.c.b16 %v5907, %v5903
  %v6060 = vpack.c.b16 %v5908, %v5904
  %v6061 = vpack.c.b16 %v5909, %v5905
  %v6062 = vpack.c.b16 %v5910, %v5906
  %v6063 = vpack.c.b16 %v5915, %v5911
  %v6064 = vpack.c.b16 %v5916, %v5912
  %v6065 = vpack.c.b16 %v5917, %v5913
  %v6066 = vpack.c.b16 %v5918, %v5914
  %v6067 = vpack.c.b16 %v5923, %v5919
  %v6068 = vpack.c.b16 %v5924, %v5920
  %v6069 = vpack.c.b16 %v5925, %v5921
  %v6070 = vpack.c.b16 %v5926, %v5922
  %v6071 = vpack.c.b16 %v5931, %v5927
  %v6072 = vpack.c.b16 %v5932, %v5928
  %v6073 = vpack.c.b16 %v5933, %v5929
  %v6074 = vpack.c.b16 %v5934, %v5930
  %v6075 = vpack.c.b16 %v5939, %v5935
  %v6076 = vpack.c.b16 %v5940, %v5936
  %v6077 = vpack.c.b16 %v5941, %v5937
  %v6078 = vpack.c.b16 %v5942, %v5938
  %v6079 = vpack.c.b16 %v5947, %v5943
  %v6080 = vpack.c.b16 %v5948, %v5944
  %v6081 = vpack.c.b16 %v5949, %v5945
  %v6082 = vpack.c.b16 %v5950, %v5946
  %v6083 = vpack.c.b16 %v5955, %v5951
  %v6084 = vpack.c.b16 %v5956, %v5952
  %v6085 = vpack.c.b16 %v5957, %v5953
  %v6086 = vpack.c.b16 %v5958, %v5954
  %6215 = vmatprep.subr.bf16.mxu0 %v5960
  %6216 = vmatpush1.bf16.msra.mxu0 %v5959
  %6217 = vmatprep.subr.bf16.mxu0 %v5964
  %6218 = vmatpush1.bf16.msra.mxu0 %v5963
  %6219 = vmatprep.subr.bf16.mxu0 %v5968
  %6220 = vmatpush1.bf16.msra.mxu0 %v5967
  %6221 = vmatprep.subr.bf16.mxu0 %v5972
  %6222 = vmatpush1.bf16.msra.mxu0 %v5971
  %6223 = vmatprep.subr.bf16.mxu0 %v5976
  %6224 = vmatpush1.bf16.msra.mxu0 %v5975
  %6225 = vmatprep.subr.bf16.mxu0 %v5980
  %6226 = vmatpush1.bf16.msra.mxu0 %v5979
  %6227 = vmatprep.subr.bf16.mxu0 %v5984
  %6228 = vmatpush1.bf16.msra.mxu0 %v5983
  %6229 = vmatprep.subr.bf16.mxu0 %v5988
  %6230 = vmatpush1.bf16.msra.mxu0 %v5987
  %6231 = vmatprep.subr.bf16.mxu0 %v5992
  %6232 = vmatpush1.bf16.msra.mxu0 %v5991
  %6233 = vmatprep.subr.bf16.mxu0 %v5996
  %6234 = vmatpush1.bf16.msra.mxu0 %v5995
  %6235 = vmatprep.subr.bf16.mxu0 %v6000
  %6236 = vmatpush1.bf16.msra.mxu0 %v5999
  %6237 = vmatprep.subr.bf16.mxu0 %v6004
  %6238 = vmatpush1.bf16.msra.mxu0 %v6003
  %6239 = vmatprep.subr.bf16.mxu0 %v6008
  %6240 = vmatpush1.bf16.msra.mxu0 %v6007
  %6241 = vmatprep.subr.bf16.mxu0 %v6012
  %6242 = vmatpush1.bf16.msra.mxu0 %v6011
  %6243 = vmatprep.subr.bf16.mxu0 %v6016
  %6244 = vmatpush1.bf16.msra.mxu0 %v6015
  %6245 = vmatprep.subr.bf16.mxu0 %v6020
  %6246 = vmatpush1.bf16.msra.mxu0 %v6019
  %6247 = vmatprep.mubr.bf16.mxu0 %v5422
  %6248 = vmatmul.mubr.bf16.gmra.mrb[0].mxu0 %v5421
  %v6249 = vpop.f32.mrb[0].mxu0
  %v6250 = vadd.f32 %v5558, %v6249
  %v6251 = vpop.f32.mrb[0].mxu0
  %v6252 = vadd.f32 %v5562, %v6251
  %v6253 = vpop.f32.mrb[0].mxu0
  %v6254 = vpop.f32.mrb[0].mxu0
  %6255 = vdwg.mxu0
  %6256 = vmatprep.subr.bf16.mxu0 %v6024
  %6257 = vmatpush1.bf16.msra.mxu0 %v6023
  %6258 = vmatprep.subr.bf16.mxu0 %v6028
  %6259 = vmatpush1.bf16.msra.mxu0 %v6027
  %6260 = vmatprep.subr.bf16.mxu0 %v6032
  %6261 = vmatpush1.bf16.msra.mxu0 %v6031
  %6262 = vmatprep.subr.bf16.mxu0 %v6036
  %6263 = vmatpush1.bf16.msra.mxu0 %v6035
  %6264 = vmatprep.subr.bf16.mxu0 %v6040
  %6265 = vmatpush1.bf16.msra.mxu0 %v6039
  %6266 = vmatprep.subr.bf16.mxu0 %v6044
  %6267 = vmatpush1.bf16.msra.mxu0 %v6043
  %6268 = vmatprep.subr.bf16.mxu0 %v6048
  %6269 = vmatpush1.bf16.msra.mxu0 %v6047
  %6270 = vmatprep.subr.bf16.mxu0 %v6052
  %6271 = vmatpush1.bf16.msra.mxu0 %v6051
  %6272 = vmatprep.subr.bf16.mxu0 %v6056
  %6273 = vmatpush1.bf16.msra.mxu0 %v6055
  %6274 = vmatprep.subr.bf16.mxu0 %v6060
  %6275 = vmatpush1.bf16.msra.mxu0 %v6059
  %6276 = vmatprep.subr.bf16.mxu0 %v6064
  %6277 = vmatpush1.bf16.msra.mxu0 %v6063
  %6278 = vmatprep.subr.bf16.mxu0 %v6068
  %6279 = vmatpush1.bf16.msra.mxu0 %v6067
  %6280 = vmatprep.subr.bf16.mxu0 %v6072
  %6281 = vmatpush1.bf16.msra.mxu0 %v6071
  %6282 = vmatprep.subr.bf16.mxu0 %v6076
  %6283 = vmatpush1.bf16.msra.mxu0 %v6075
  %6284 = vmatprep.subr.bf16.mxu0 %v6080
  %6285 = vmatpush1.bf16.msra.mxu0 %v6079
  %6286 = vmatprep.subr.bf16.mxu0 %v6084
  %6287 = vmatpush1.bf16.msra.mxu0 %v6083
  %6288 = vmatprep.mubr.bf16.mxu0 %v5424
  %6289 = vmatmul.mubr.bf16.gmra.mrb[0].mxu0 %v5423
  %v6290 = vpop.f32.mrb[0].mxu0
  %v6291 = vadd.f32 %v6250, %v6290
  %v6292 = vpop.f32.mrb[0].mxu0
  %v6293 = vadd.f32 %v6252, %v6292
  %v6294 = vpop.f32.mrb[0].mxu0
  %v6295 = vpop.f32.mrb[0].mxu0
  %6296 = vdwg.mxu0
  %6297 = vmatprep.subr.bf16.mxu0 %v5962
  %6298 = vmatpush1.bf16.msra.mxu0 %v5961
  %6299 = vmatprep.subr.bf16.mxu0 %v5966
  %6300 = vmatpush1.bf16.msra.mxu0 %v5965
  %6301 = vmatprep.subr.bf16.mxu0 %v5970
  %6302 = vmatpush1.bf16.msra.mxu0 %v5969
  %6303 = vmatprep.subr.bf16.mxu0 %v5974
  %6304 = vmatpush1.bf16.msra.mxu0 %v5973
  %6305 = vmatprep.subr.bf16.mxu0 %v5978
  %6306 = vmatpush1.bf16.msra.mxu0 %v5977
  %6307 = vmatprep.subr.bf16.mxu0 %v5982
  %6308 = vmatpush1.bf16.msra.mxu0 %v5981
  %6309 = vmatprep.subr.bf16.mxu0 %v5986
  %6310 = vmatpush1.bf16.msra.mxu0 %v5985
  %6311 = vmatprep.subr.bf16.mxu0 %v5990
  %6312 = vmatpush1.bf16.msra.mxu0 %v5989
  %6313 = vmatprep.subr.bf16.mxu0 %v5994
  %6314 = vmatpush1.bf16.msra.mxu0 %v5993
  %6315 = vmatprep.subr.bf16.mxu0 %v5998
  %6316 = vmatpush1.bf16.msra.mxu0 %v5997
  %6317 = vmatprep.subr.bf16.mxu0 %v6002
  %6318 = vmatpush1.bf16.msra.mxu0 %v6001
  %6319 = vmatprep.subr.bf16.mxu0 %v6006
  %6320 = vmatpush1.bf16.msra.mxu0 %v6005
  %6321 = vmatprep.subr.bf16.mxu0 %v6010
  %6322 = vmatpush1.bf16.msra.mxu0 %v6009
  %6323 = vmatprep.subr.bf16.mxu0 %v6014
  %6324 = vmatpush1.bf16.msra.mxu0 %v6013
  %6325 = vmatprep.subr.bf16.mxu0 %v6018
  %6326 = vmatpush1.bf16.msra.mxu0 %v6017
  %6327 = vmatprep.subr.bf16.mxu0 %v6022
  %6328 = vmatpush1.bf16.msra.mxu0 %v6021
  %6329 = vmatprep.mubr.bf16.mxu0 %v5422
  %6330 = vmatmul.mubr.bf16.gmra.mrb[0].mxu0 %v5421
  %v6331 = vpop.f32.mrb[0].mxu0
  %v6332 = vadd.f32 %v5566, %v6331
  %v6333 = vpop.f32.mrb[0].mxu0
  %v6334 = vadd.f32 %v5570, %v6333
  %v6335 = vpop.f32.mrb[0].mxu0
  %v6336 = vpop.f32.mrb[0].mxu0
  %6337 = vdwg.mxu0
  %6338 = vmatprep.subr.bf16.mxu0 %v6026
  %6339 = vmatpush1.bf16.msra.mxu0 %v6025
  %6340 = vmatprep.subr.bf16.mxu0 %v6030
  %6341 = vmatpush1.bf16.msra.mxu0 %v6029
  %6342 = vmatprep.subr.bf16.mxu0 %v6034
  %6343 = vmatpush1.bf16.msra.mxu0 %v6033
  %6344 = vmatprep.subr.bf16.mxu0 %v6038
  %6345 = vmatpush1.bf16.msra.mxu0 %v6037
  %6346 = vmatprep.subr.bf16.mxu0 %v6042
  %6347 = vmatpush1.bf16.msra.mxu0 %v6041
  %6348 = vmatprep.subr.bf16.mxu0 %v6046
  %6349 = vmatpush1.bf16.msra.mxu0 %v6045
  %6350 = vmatprep.subr.bf16.mxu0 %v6050
  %6351 = vmatpush1.bf16.msra.mxu0 %v6049
  %6352 = vmatprep.subr.bf16.mxu0 %v6054
  %6353 = vmatpush1.bf16.msra.mxu0 %v6053
  %6354 = vmatprep.subr.bf16.mxu0 %v6058
  %6355 = vmatpush1.bf16.msra.mxu0 %v6057
  %6356 = vmatprep.subr.bf16.mxu0 %v6062
  %6357 = vmatpush1.bf16.msra.mxu0 %v6061
  %6358 = vmatprep.subr.bf16.mxu0 %v6066
  %6359 = vmatpush1.bf16.msra.mxu0 %v6065
  %6360 = vmatprep.subr.bf16.mxu0 %v6070
  %6361 = vmatpush1.bf16.msra.mxu0 %v6069
  %6362 = vmatprep.subr.bf16.mxu0 %v6074
  %6363 = vmatpush1.bf16.msra.mxu0 %v6073
  %6364 = vmatprep.subr.bf16.mxu0 %v6078
  %6365 = vmatpush1.bf16.msra.mxu0 %v6077
  %6366 = vmatprep.subr.bf16.mxu0 %v6082
  %6367 = vmatpush1.bf16.msra.mxu0 %v6081
  %6368 = vmatprep.subr.bf16.mxu0 %v6086
  %6369 = vmatpush1.bf16.msra.mxu0 %v6085
  %6370 = vmatprep.mubr.bf16.mxu0 %v5424
  %6371 = vmatmul.mubr.bf16.gmra.mrb[0].mxu0 %v5423
  %v6372 = vpop.f32.mrb[0].mxu0
  %v6373 = vadd.f32 %v6332, %v6372
  %v6374 = vpop.f32.mrb[0].mxu0
  %v6375 = vadd.f32 %v6334, %v6374
  %v6376 = vpop.f32.mrb[0].mxu0
  %v6377 = vpop.f32.mrb[0].mxu0
  %6378 = vdwg.mxu0
  %6379 = vst [vmem:[%s5] sm:$0xff] %v6291
  %6380 = vst [vmem:[%s5 + $0x8] sm:$0xff] %v6293
  %6381 = vst [vmem:[%s5 + $0x10] sm:$0xff] %v6373
  %6382 = vst [vmem:[%s5 + $0x18] sm:$0xff] %v6375
  // Predicated region
  $region22: #{attention_layer.1} parent=0 // pred_check
    _
  $region23: #{attention_layer.1} parent=0 // pred_check_branch
    %6384 = sbr.rel (0) target = $region25
  $region24: #{attention_layer.1} parent=0 // pred_region
    _
  $region25: #{attention_layer.1} parent=0 // pred_fallthru
    _
  // Predicated region
  $region26: #{attention_layer.1} parent=0 // pred_check
    _
  $region27: #{attention_layer.1} parent=0 // pred_check_branch
    %6386 = sbr.rel (0) target = $region29
  $region28: #{attention_layer.1} parent=0 // pred_region
    _
  $region29: #{attention_layer.1} parent=0 // pred_fallthru
    _

</llo_original>
